<compile_context>
chip_gen: v5e
topology: v5e:2x2
jax: 0.10.0
libtpu: 0.0.40
codegen_flags: <defaults>
</compile_context>

<pallas_src>
import jax
import jax.numpy as jnp
from jax.experimental import pallas as pl
from jax.experimental.pallas import tpu as pltpu

F32 = jnp.float32


def _relu(x):
    return jnp.maximum(x, 0.0)


def _mm(a, b):
    return jnp.dot(a, b, preferred_element_type=jnp.float32)


# ----------------------------------------------------------------------------
# Single fused kernel (no grid; the short time loops are unrolled in-kernel).
# ----------------------------------------------------------------------------
def latent_ode_kernel(
    # data
    x_ref,          # (n_tp, n_traj, D)    time-major observed values
    mgate_ref,      # (n_tp, n_traj, 2R)   masked-update gate, pre-broadcast
    init_ref,       # (n_traj, input_init)
    dt_enc_ref,     # (n_tp,)  SMEM  encoder Euler step sizes
    dt_gen_ref,     # (T,)     SMEM  rollout Euler step sizes (dt[0] unused)
    # hidden_init
    w_hi, b_hi,
    # ode_func_rec, zero-padded onto the fused [y || std] state
    w_r1, b_r1, w_r2, b_r2, w_r3, b_r3,
    # GRU gates: fused layer-1 (2R+D, 2G), block-diag duplicated layer-2 (2G, 4R)
    w_ur1, b_ur1, w_gate2, b_gate2,
    # GRU new-state net
    w_n1, b_n1, w_n2, b_n2,
    # transform_z0
    w_t1, b_t1, w_t2, b_t2,
    # ode_func_gen
    w_p1, b_p1, w_p2, b_p2, w_p3, b_p3,
    # decoder
    w_dec, b_dec,
    # classifier (layer-1 pre-folded through transform_z0)
    w_tc, b_tc, w_c2, b_c2, w_c3, b_c3,
    # output: single lane-dense packed slab
    out_ref,        # (T*n_traj, slab_w)
):
    n_tp, n_traj, D = x_ref.shape
    R2 = w_t1.shape[0]          # 2 * rec_dims
    R = R2 // 2
    L = w_p1.shape[0]
    T = dt_gen_ref.shape[0]
    n_labels = w_c3.shape[1]
    rows = T * n_traj

    # column mask selecting the std half of the fused [y || std] state
    is_std_col = jax.lax.broadcasted_iota(jnp.int32, (n_traj, R2), 1) >= R

    # ------------------- encoder ODE-RNN (fused [y || std] state) -------------------
    temp = _relu(_mm(init_ref[...], w_hi[...]) + b_hi[...])     # (n_traj, 2R)
    ys = jnp.where(is_std_col, jnp.abs(temp), temp)

    # hoist only the weights reused across the unrolled encoder steps
    W_r1, B_r1 = w_r1[...], b_r1[...]
    W_r2, B_r2 = w_r2[...], b_r2[...]
    W_r3, B_r3 = w_r3[...], b_r3[...]
    W_ur1, B_ur1 = w_ur1[...], b_ur1[...]
    W_g2, B_g2 = w_gate2[...], b_gate2[...]
    W_n1, B_n1 = w_n1[...], b_n1[...]
    W_n2, B_n2 = w_n2[...], b_n2[...]

    for i in range(n_tp):                                       # static, unrolled
        dt = dt_enc_ref[i]
        # One explicit-Euler step of ode_func_rec.  The std columns of
        # W_r1 / W_r3 / B_r3 are zero, so the std half passes through untouched;
        # dt == 0 reproduces the |prev_t - t_i| < 1e-8 shortcut (ys_ode == ys).
        h = _relu(_mm(ys, W_r1) + B_r1)
        h = _relu(_mm(h, W_r2) + B_r2)
        ys_ode = ys + dt * (_mm(h, W_r3) + B_r3)

        x_i = x_ref[i]          # (n_traj, D)
        mg = mgate_ref[i]       # (n_traj, 2R)

        # GRU_unit: update+reset layer-1 fused column-wise; layer-2 is one
        # block-diagonal matmul whose output is already [upd, upd, rst, rst].
        yx = jnp.concatenate([ys_ode, x_i], axis=-1)            # (n_traj, 2R+D)
        h_ur = _relu(_mm(yx, W_ur1) + B_ur1)                    # (n_traj, 2G)
        gates = jax.nn.sigmoid(_mm(h_ur, W_g2) + B_g2)          # (n_traj, 4R)
        upd = gates[:, :R2]                                     # [u || u]
        rst = gates[:, R2:]                                     # [r || r]

        yr = jnp.concatenate([ys_ode * rst, x_i], axis=-1)      # (n_traj, 2R+D)
        hn = _relu(_mm(yr, W_n1) + B_n1)
        ns = _mm(hn, W_n2) + B_n2                               # (n_traj, 2R)
        ns = jnp.where(is_std_col, jnp.abs(ns), ns)

        new_ys = (1.0 - upd) * ns + upd * ys_ode
        # masked update: rows with an all-zero observation mask keep ys_ode
        ys = mg * new_ys + (1.0 - mg) * ys_ode

    # ------------------------------- transform_z0 -------------------------------
    th = _relu(_mm(ys, w_t1[...]) + b_t1[...])                  # (n_traj, 100)
    tz = _mm(th, w_t2[...]) + b_t2[...]                         # (n_traj, 2L)
    mean_z0 = tz[:, :L]
    std_z0 = jnp.abs(tz[:, L:])

    # classifier; layer-1 folded through transform_z0 (mean_z0 is linear in th)
    ch = _relu(_mm(th, w_tc[...]) + b_tc[...])
    ch = _relu(_mm(ch, w_c2[...]) + b_c2[...])
    logits = _mm(ch, w_c3[...]) + b_c3[...]                     # (n_traj, n_labels)

    # ---------- generative Euler rollout (first_point_enc = mean_z0, eval) ----------
    W_p1, B_p1 = w_p1[...], b_p1[...]
    W_p2, B_p2 = w_p2[...], b_p2[...]
    W_p3, B_p3 = w_p3[...], b_p3[...]
    yg = mean_z0
    lat = [yg]
    for k in range(1, T):                                       # static, unrolled
        h = _relu(_mm(yg, W_p1) + B_p1)
        h = _relu(_mm(h, W_p2) + B_p2)
        yg = yg + dt_gen_ref[k] * (_mm(h, W_p3) + B_p3)
        lat.append(yg)

    lat_flat = jnp.concatenate(lat, axis=0)                     # (T*n_traj, L)
    pred_flat = _mm(lat_flat, w_dec[...]) + b_dec[...]          # (T*n_traj, D)

    # --------------- single lane-dense packed output, written once ---------------
    head = jnp.concatenate([mean_z0, std_z0, logits], axis=-1)  # (n_traj, 2L+nl)
    if rows > n_traj:
        head = jnp.concatenate(
            [head, jnp.zeros((rows - n_traj, head.shape[1]), F32)], axis=0)
    pieces = [lat_flat, pred_flat, head]
    used = L + D + head.shape[1]
    pad_w = out_ref.shape[1] - used
    if pad_w > 0:
        pieces.append(jnp.zeros((rows, pad_w), F32))
    out_ref[...] = jnp.concatenate(pieces, axis=-1)


# ----------------------------------------------------------------------------
# Wrapper-side weight fusion (exact rewrites of the PyTorch Linears)
# ----------------------------------------------------------------------------
def _prepare_weights(params):
    w_hi, b_hi = params["hi"]
    w_r1, b_r1, w_r2, b_r2, w_r3, b_r3 = params["ode_rec"]
    R, U = w_r1.shape
    w_u1, b_u1, w_u2, b_u2 = params["gru_update"]
    w_g1, b_g1, w_g2, b_g2 = params["gru_reset"]
    G = w_u2.shape[0]
    w_n1, b_n1, w_n2, b_n2 = params["gru_new"]
    w_t1, b_t1, w_t2, b_t2 = params["transform_z0"]
    w_p1, b_p1, w_p2, b_p2, w_p3, b_p3 = params["ode_gen"]
    w_dec, b_dec = params["decoder"]
    w_c1, b_c1, w_c2, b_c2, w_c3, b_c3 = params["classifier"]
    L = w_dec.shape[0]

    # ode_func_rec padded onto the fused [y || std] state (std half is a no-op)
    w_r1p = jnp.concatenate([w_r1, jnp.zeros((R, U), F32)], axis=0)    # (2R, U)
    w_r3p = jnp.concatenate([w_r3, jnp.zeros((U, R), F32)], axis=1)    # (U, 2R)
    b_r3p = jnp.concatenate([b_r3, jnp.zeros((1, R), F32)], axis=1)    # (1, 2R)

    # GRU update/reset layer-1 fused column-wise
    w_ur1 = jnp.concatenate([w_u1, w_g1], axis=1)                      # (2R+D, 2G)
    b_ur1 = jnp.concatenate([b_u1, b_g1], axis=1)                      # (1, 2G)

    # GRU layer-2 block-diagonal, each gate duplicated across both state halves:
    # one matmul yields [update, update, reset, reset]
    zGR = jnp.zeros((G, R), F32)
    w_gate2 = jnp.concatenate(
        [jnp.concatenate([w_u2, w_u2, zGR, zGR], axis=1),
         jnp.concatenate([zGR, zGR, w_g2, w_g2], axis=1)], axis=0)     # (2G, 4R)
    b_gate2 = jnp.concatenate([b_u2, b_u2, b_g2, b_g2], axis=1)        # (1, 4R)

    # classifier layer-1 folded through transform_z0's (linear) mean output
    w_tc = jnp.dot(w_t2[:, :L], w_c1)                                  # (100, 50)
    b_tc = jnp.dot(b_t2[:, :L], w_c1) + b_c1                           # (1, 50)

    return (w_hi, b_hi,
            w_r1p, b_r1, w_r2, b_r2, w_r3p, b_r3p,
            w_ur1, b_ur1, w_gate2, b_gate2,
            w_n1, b_n1, w_n2, b_n2,
            w_t1, b_t1, w_t2, b_t2,
            w_p1, b_p1, w_p2, b_p2, w_p3, b_p3,
            w_dec, b_dec,
            w_tc, b_tc, w_c2, b_c2, w_c3, b_c3)


# ----------------------------------------------------------------------------
# Wrapper
# ----------------------------------------------------------------------------
def latent_ode_forward(params, x, time_steps_observed, time_steps_to_predict,
                       init_data):
    """x: (n_traj, n_tp, 2*D) -- data concatenated with its observation mask."""
    n_traj, n_tp, two_d = x.shape
    D = two_d // 2
    R = params["ode_rec"][0].shape[0]
    L = params["decoder"][0].shape[0]
    T = time_steps_to_predict.shape[0]
    n_labels = params["classifier"][-1].shape[-1]

    x = x.astype(F32)
    data_tm = jnp.transpose(x[..., :D], (1, 0, 2))        # (n_tp, n_traj, D)
    mask_tm = jnp.transpose(x[..., D:], (1, 0, 2))        # (n_tp, n_traj, D)
    # masked-update gate precomputed (and pre-broadcast) outside the kernel
    mgate_tm = (jnp.sum(mask_tm, axis=-1, keepdims=True) > 0.0).astype(F32)
    mgate_tm = jnp.broadcast_to(mgate_tm, (n_tp, n_traj, 2 * R))

    ts_obs = time_steps_observed.astype(F32)
    ts_pred = time_steps_to_predict.astype(F32)
    # run_odernn (forward direction): prev_t starts at time_steps[0]*0 = 0
    dt_enc = jnp.concatenate([ts_obs[:1], ts_obs[1:] - ts_obs[:-1]])
    # generative Euler rollout: y(t0) = first_point, dt[0] unused
    dt_gen = jnp.concatenate([jnp.zeros((1,), F32), ts_pred[1:] - ts_pred[:-1]])

    weights = _prepare_weights(params)

    # packed output slab: [lat(L) | pred(D) | mean(L) | std(L) | logits(nl) | 0-pad]
    used = 3 * L + D + n_labels
    slab_w = ((used + 127) // 128) * 128

    vmem = pl.BlockSpec(memory_space=pltpu.MemorySpace.VMEM)
    smem = pl.BlockSpec(memory_space=pltpu.MemorySpace.SMEM)

    slab = pl.pallas_call(
        latent_ode_kernel,
        out_shape=jax.ShapeDtypeStruct((T * n_traj, slab_w), F32),
        in_specs=[vmem, vmem, vmem, smem, smem] + [vmem] * len(weights),
        out_specs=vmem,
    )(data_tm, mgate_tm, init_data.astype(F32), dt_enc, dt_gen, *weights)

    # unpack / reshape with XLA in the wrapper (cheap, off the kernel store path)
    sol_flat = slab[:, :L]                                 # (T*n_traj, L)
    pred_flat = slab[:, L:L + D]                           # (T*n_traj, D)
    mean_z0 = slab[:n_traj, L + D:2 * L + D]               # (n_traj, L)
    std_z0 = slab[:n_traj, 2 * L + D:3 * L + D]            # (n_traj, L)
    logits = slab[:n_traj, 3 * L + D:3 * L + D + n_labels]  # (n_traj, n_labels)

    sol_y = jnp.transpose(sol_flat.reshape(T, n_traj, L), (1, 0, 2))[None]
    pred_x = jnp.transpose(pred_flat.reshape(T, n_traj, D), (1, 0, 2))[None]

    first_point_mu = mean_z0[None]                         # (1, n_traj, L)
    first_point_std = std_z0[None]
    first_point_enc = first_point_mu                       # eval path (no sampling)

    label_predictions = logits[None]                       # (1, n_traj, n_labels)
    if n_labels == 1:                                      # torch .squeeze(-1)
        label_predictions = label_predictions[..., 0]

    all_extra_info = {
        "first_point": (first_point_mu, first_point_std, first_point_enc),
        "latent_traj": sol_y,
        "label_predictions": label_predictions,
    }
    return pred_x, all_extra_info


# ----------------------------------------------------------------------------
# Deterministic parameter init (PyTorch-Linear-style uniform, (in, out) layout)
# ----------------------------------------------------------------------------
def _linear_params(key, fan_in, fan_out):
    kw, kb = jax.random.split(key)
    bound = 1.0 / (fan_in ** 0.5)
    w = jax.random.uniform(kw, (fan_in, fan_out), F32, -bound, bound)
    b = jax.random.uniform(kb, (1, fan_out), F32, -bound, bound)
    return w, b


def init_params(key, *, D, latents, rec_dims, units, gru_units, input_init,
                inbet_dim=100, classif_dim=50, n_labels=1):
    R, L, U, G = rec_dims, latents, units, gru_units
    keys = iter(jax.random.split(key, 19))   # exactly 19 Linears
    p = {}

    # hidden_init: Linear(input_init, 2R) + ReLU
    p["hi"] = _linear_params(next(keys), input_init, 2 * R)

    # ode_func_rec (rec_layers = 1): R -> U -> U -> R
    p["ode_rec"] = (*_linear_params(next(keys), R, U),
                    *_linear_params(next(keys), U, U),
                    *_linear_params(next(keys), U, R))

    # GRU update / reset gates: Linear(2R+D, G) -> ReLU -> Linear(G, R) -> Sigmoid
    p["gru_update"] = (*_linear_params(next(keys), 2 * R + D, G),
                       *_linear_params(next(keys), G, R))
    p["gru_reset"] = (*_linear_params(next(keys), 2 * R + D, G),
                      *_linear_params(next(keys), G, R))

    # new_state_net: Linear(2R+D, G) -> ReLU -> Linear(G, 2R)
    p["gru_new"] = (*_linear_params(next(keys), 2 * R + D, G),
                    *_linear_params(next(keys), G, 2 * R))

    # transform_z0: Linear(2R, 100) -> ReLU -> Linear(100, 2L)
    p["transform_z0"] = (*_linear_params(next(keys), 2 * R, inbet_dim),
                         *_linear_params(next(keys), inbet_dim, 2 * L))

    # ode_func_gen (gen_layers = 1): L -> U -> U -> L
    p["ode_gen"] = (*_linear_params(next(keys), L, U),
                    *_linear_params(next(keys), U, U),
                    *_linear_params(next(keys), U, L))

    # decoder: Linear(L, D)
    p["decoder"] = _linear_params(next(keys), L, D)

    # classifier: L -> 50 -> 50 -> n_labels
    p["classifier"] = (*_linear_params(next(keys), L, classif_dim),
                       *_linear_params(next(keys), classif_dim, classif_dim),
                       *_linear_params(next(keys), classif_dim, n_labels))
    return p


# ----------------------------------------------------------------------------
# Demo
# ----------------------------------------------------------------------------
if __name__ == "__main__":
    # args: latents=8, rec_dims=16, units=32, gru_units=32, gen_layers=1,
    #       rec_layers=1, act='relu', method='euler', classif=True
    D = 4            # input_dim (data features); enc_input_dim = 2*D
    latents = 8
    rec_dims = 16
    units = 32
    gru_units = 32
    input_init = 8
    n_traj = 8
    n_tp = 6
    T_pred = 8

    key = jax.random.PRNGKey(0)
    k_param, k_val, k_mask, k_init = jax.random.split(key, 4)

    params = init_params(k_param, D=D, latents=latents, rec_dims=rec_dims,
                         units=units, gru_units=gru_units, input_init=input_init)

    values = jax.random.normal(k_val, (n_traj, n_tp, D), F32)
    mask = (jax.random.uniform(k_mask, (n_traj, n_tp, D)) < 0.7).astype(F32)
    x = jnp.concatenate([values * mask, mask], axis=-1)          # (n_traj, n_tp, 2D)
    init_data = jax.random.normal(k_init, (n_traj, input_init), F32)

    time_steps_observed = jnp.linspace(0.0, 1.0, n_tp).astype(F32)
    time_steps_to_predict = jnp.linspace(0.0, 1.5, T_pred).astype(F32)

    forward = jax.jit(latent_ode_forward)
    pred_x, extra = forward(params, x, time_steps_observed,
                            time_steps_to_predict, init_data)
    jax.block_until_ready(pred_x)
    jax.block_until_ready(extra["latent_traj"])
    jax.block_until_ready(extra["label_predictions"])

    assert pred_x.shape == (1, n_traj, T_pred, D)
    assert extra["latent_traj"].shape == (1, n_traj, T_pred, latents)
    assert extra["first_point"][0].shape == (1, n_traj, latents)
    assert extra["first_point"][1].shape == (1, n_traj, latents)
    assert extra["label_predictions"].shape == (1, n_traj)
    assert not bool(jnp.isnan(pred_x).any())
    assert not bool(jnp.isnan(extra["latent_traj"]).any())
    assert not bool(jnp.isnan(extra["first_point"][0]).any())
    assert not bool(jnp.isnan(extra["label_predictions"]).any())

    print("KERNEL_OK")
</pallas_src>

<mosaic_0001>
module attributes {stable_mosaic.version = 11 : i64} {
  func.func @latent_ode_kernel(%arg0: memref<6x8x4xf32, #tpu.memory_space<vmem>>, %arg1: memref<6x8x32xf32, #tpu.memory_space<vmem>>, %arg2: memref<8x8xf32, #tpu.memory_space<vmem>>, %arg3: memref<6xf32, #tpu.memory_space<smem>>, %arg4: memref<8xf32, #tpu.memory_space<smem>>, %arg5: memref<8x32xf32, #tpu.memory_space<vmem>>, %arg6: memref<1x32xf32, #tpu.memory_space<vmem>>, %arg7: memref<32x32xf32, #tpu.memory_space<vmem>>, %arg8: memref<1x32xf32, #tpu.memory_space<vmem>>, %arg9: memref<32x32xf32, #tpu.memory_space<vmem>>, %arg10: memref<1x32xf32, #tpu.memory_space<vmem>>, %arg11: memref<32x32xf32, #tpu.memory_space<vmem>>, %arg12: memref<1x32xf32, #tpu.memory_space<vmem>>, %arg13: memref<36x64xf32, #tpu.memory_space<vmem>>, %arg14: memref<1x64xf32, #tpu.memory_space<vmem>>, %arg15: memref<64x64xf32, #tpu.memory_space<vmem>>, %arg16: memref<1x64xf32, #tpu.memory_space<vmem>>, %arg17: memref<36x32xf32, #tpu.memory_space<vmem>>, %arg18: memref<1x32xf32, #tpu.memory_space<vmem>>, %arg19: memref<32x32xf32, #tpu.memory_space<vmem>>, %arg20: memref<1x32xf32, #tpu.memory_space<vmem>>, %arg21: memref<32x100xf32, #tpu.memory_space<vmem>>, %arg22: memref<1x100xf32, #tpu.memory_space<vmem>>, %arg23: memref<100x16xf32, #tpu.memory_space<vmem>>, %arg24: memref<1x16xf32, #tpu.memory_space<vmem>>, %arg25: memref<8x32xf32, #tpu.memory_space<vmem>>, %arg26: memref<1x32xf32, #tpu.memory_space<vmem>>, %arg27: memref<32x32xf32, #tpu.memory_space<vmem>>, %arg28: memref<1x32xf32, #tpu.memory_space<vmem>>, %arg29: memref<32x8xf32, #tpu.memory_space<vmem>>, %arg30: memref<1x8xf32, #tpu.memory_space<vmem>>, %arg31: memref<8x4xf32, #tpu.memory_space<vmem>>, %arg32: memref<1x4xf32, #tpu.memory_space<vmem>>, %arg33: memref<100x50xf32, #tpu.memory_space<vmem>>, %arg34: memref<1x50xf32, #tpu.memory_space<vmem>>, %arg35: memref<50x50xf32, #tpu.memory_space<vmem>>, %arg36: memref<1x50xf32, #tpu.memory_space<vmem>>, %arg37: memref<50x1xf32, #tpu.memory_space<vmem>>, %arg38: memref<1x1xf32, #tpu.memory_space<vmem>>, %arg39: memref<64x128xf32, #tpu.memory_space<vmem>>) attributes {dimension_semantics = [], scalar_prefetch = 0 : i64, scratch_operands = 0 : i64, tpu.core_type = #tpu.core_type<tc>} {
    %0 = tpu.iota {dimensions = array<i32: 1>} : vector<8x32xi32>
    %c16_i32 = arith.constant 16 : i32
    %1 = vector.broadcast %c16_i32 : i32 to vector<8x32xi32>
    %2 = arith.cmpi sge, %0, %1 : vector<8x32xi32>
    %c0 = arith.constant 0 : index
    %c0_0 = arith.constant 0 : index
    %3 = vector.load %arg2[%c0, %c0_0] : memref<8x8xf32, #tpu.memory_space<vmem>>, vector<8x8xf32>
    %c0_1 = arith.constant 0 : index
    %c0_2 = arith.constant 0 : index
    %4 = vector.load %arg5[%c0_1, %c0_2] : memref<8x32xf32, #tpu.memory_space<vmem>>, vector<8x32xf32>
    %cst = arith.constant dense<0.000000e+00> : vector<8x32xf32>
    %5 = tpu.matmul %3, %4, %cst {dimension_numbers = #tpu.dot_dimension_numbers<[1], [0], [0], [1], [0, 0, 1, 1], [], []>} : vector<8x8xf32>, vector<8x32xf32>, vector<8x32xf32> -> vector<8x32xf32>
    %c0_3 = arith.constant 0 : index
    %c0_4 = arith.constant 0 : index
    %6 = vector.load %arg6[%c0_3, %c0_4] : memref<1x32xf32, #tpu.memory_space<vmem>>, vector<1x32xf32>
    %7 = vector.broadcast %6 : vector<1x32xf32> to vector<8x32xf32>
    %8 = arith.addf %5, %7 : vector<8x32xf32>
    %cst_5 = arith.constant 0.000000e+00 : f32
    %9 = vector.broadcast %cst_5 : f32 to vector<8x32xf32>
    %10 = arith.maximumf %8, %9 : vector<8x32xf32>
    %11 = math.absf %10 : vector<8x32xf32>
    %12 = arith.select %2, %11, %10 : vector<8x32xi1>, vector<8x32xf32>
    %c0_6 = arith.constant 0 : index
    %c0_7 = arith.constant 0 : index
    %13 = vector.load %arg7[%c0_6, %c0_7] : memref<32x32xf32, #tpu.memory_space<vmem>>, vector<32x32xf32>
    %c0_8 = arith.constant 0 : index
    %c0_9 = arith.constant 0 : index
    %14 = vector.load %arg8[%c0_8, %c0_9] : memref<1x32xf32, #tpu.memory_space<vmem>>, vector<1x32xf32>
    %c0_10 = arith.constant 0 : index
    %c0_11 = arith.constant 0 : index
    %15 = vector.load %arg9[%c0_10, %c0_11] : memref<32x32xf32, #tpu.memory_space<vmem>>, vector<32x32xf32>
    %c0_12 = arith.constant 0 : index
    %c0_13 = arith.constant 0 : index
    %16 = vector.load %arg10[%c0_12, %c0_13] : memref<1x32xf32, #tpu.memory_space<vmem>>, vector<1x32xf32>
    %c0_14 = arith.constant 0 : index
    %c0_15 = arith.constant 0 : index
    %17 = vector.load %arg11[%c0_14, %c0_15] : memref<32x32xf32, #tpu.memory_space<vmem>>, vector<32x32xf32>
    %c0_16 = arith.constant 0 : index
    %c0_17 = arith.constant 0 : index
    %18 = vector.load %arg12[%c0_16, %c0_17] : memref<1x32xf32, #tpu.memory_space<vmem>>, vector<1x32xf32>
    %c0_18 = arith.constant 0 : index
    %c0_19 = arith.constant 0 : index
    %19 = vector.load %arg13[%c0_18, %c0_19] : memref<36x64xf32, #tpu.memory_space<vmem>>, vector<36x64xf32>
    %c0_20 = arith.constant 0 : index
    %c0_21 = arith.constant 0 : index
    %20 = vector.load %arg14[%c0_20, %c0_21] : memref<1x64xf32, #tpu.memory_space<vmem>>, vector<1x64xf32>
    %c0_22 = arith.constant 0 : index
    %c0_23 = arith.constant 0 : index
    %21 = vector.load %arg15[%c0_22, %c0_23] : memref<64x64xf32, #tpu.memory_space<vmem>>, vector<64x64xf32>
    %c0_24 = arith.constant 0 : index
    %c0_25 = arith.constant 0 : index
    %22 = vector.load %arg16[%c0_24, %c0_25] : memref<1x64xf32, #tpu.memory_space<vmem>>, vector<1x64xf32>
    %c0_26 = arith.constant 0 : index
    %c0_27 = arith.constant 0 : index
    %23 = vector.load %arg17[%c0_26, %c0_27] : memref<36x32xf32, #tpu.memory_space<vmem>>, vector<36x32xf32>
    %c0_28 = arith.constant 0 : index
    %c0_29 = arith.constant 0 : index
    %24 = vector.load %arg18[%c0_28, %c0_29] : memref<1x32xf32, #tpu.memory_space<vmem>>, vector<1x32xf32>
    %c0_30 = arith.constant 0 : index
    %c0_31 = arith.constant 0 : index
    %25 = vector.load %arg19[%c0_30, %c0_31] : memref<32x32xf32, #tpu.memory_space<vmem>>, vector<32x32xf32>
    %c0_32 = arith.constant 0 : index
    %c0_33 = arith.constant 0 : index
    %26 = vector.load %arg20[%c0_32, %c0_33] : memref<1x32xf32, #tpu.memory_space<vmem>>, vector<1x32xf32>
    %c0_34 = arith.constant 0 : index
    %27 = memref.load %arg3[%c0_34] : memref<6xf32, #tpu.memory_space<smem>>
    %cst_35 = arith.constant dense<0.000000e+00> : vector<8x32xf32>
    %28 = tpu.matmul %12, %13, %cst_35 {dimension_numbers = #tpu.dot_dimension_numbers<[1], [0], [0], [1], [0, 0, 1, 1], [], []>} : vector<8x32xf32>, vector<32x32xf32>, vector<8x32xf32> -> vector<8x32xf32>
    %29 = vector.broadcast %14 : vector<1x32xf32> to vector<8x32xf32>
    %30 = arith.addf %28, %29 : vector<8x32xf32>
    %cst_36 = arith.constant 0.000000e+00 : f32
    %31 = vector.broadcast %cst_36 : f32 to vector<8x32xf32>
    %32 = arith.maximumf %30, %31 : vector<8x32xf32>
    %cst_37 = arith.constant dense<0.000000e+00> : vector<8x32xf32>
    %33 = tpu.matmul %32, %15, %cst_37 {dimension_numbers = #tpu.dot_dimension_numbers<[1], [0], [0], [1], [0, 0, 1, 1], [], []>} : vector<8x32xf32>, vector<32x32xf32>, vector<8x32xf32> -> vector<8x32xf32>
    %34 = vector.broadcast %16 : vector<1x32xf32> to vector<8x32xf32>
    %35 = arith.addf %33, %34 : vector<8x32xf32>
    %cst_38 = arith.constant 0.000000e+00 : f32
    %36 = vector.broadcast %cst_38 : f32 to vector<8x32xf32>
    %37 = arith.maximumf %35, %36 : vector<8x32xf32>
    %cst_39 = arith.constant dense<0.000000e+00> : vector<8x32xf32>
    %38 = tpu.matmul %37, %17, %cst_39 {dimension_numbers = #tpu.dot_dimension_numbers<[1], [0], [0], [1], [0, 0, 1, 1], [], []>} : vector<8x32xf32>, vector<32x32xf32>, vector<8x32xf32> -> vector<8x32xf32>
    %39 = vector.broadcast %18 : vector<1x32xf32> to vector<8x32xf32>
    %40 = arith.addf %38, %39 : vector<8x32xf32>
    %41 = vector.broadcast %27 : f32 to vector<8x32xf32>
    %42 = arith.mulf %41, %40 : vector<8x32xf32>
    %43 = arith.addf %12, %42 : vector<8x32xf32>
    %c0_40 = arith.constant 0 : index
    %c0_41 = arith.constant 0 : index
    %c0_42 = arith.constant 0 : index
    %44 = vector.load %arg0[%c0_40, %c0_41, %c0_42] : memref<6x8x4xf32, #tpu.memory_space<vmem>>, vector<1x8x4xf32>
    %45 = vector.shape_cast %44 : vector<1x8x4xf32> to vector<8x4xf32>
    %c0_43 = arith.constant 0 : index
    %c0_44 = arith.constant 0 : index
    %c0_45 = arith.constant 0 : index
    %46 = vector.load %arg1[%c0_43, %c0_44, %c0_45] : memref<6x8x32xf32, #tpu.memory_space<vmem>>, vector<1x8x32xf32>
    %47 = vector.shape_cast %46 : vector<1x8x32xf32> to vector<8x32xf32>
    %48 = tpu.concatenate %43, %45 in 1 : vector<8x32xf32>, vector<8x4xf32> -> vector<8x36xf32>
    %cst_46 = arith.constant dense<0.000000e+00> : vector<8x64xf32>
    %49 = tpu.matmul %48, %19, %cst_46 {dimension_numbers = #tpu.dot_dimension_numbers<[1], [0], [0], [1], [0, 0, 1, 1], [], []>} : vector<8x36xf32>, vector<36x64xf32>, vector<8x64xf32> -> vector<8x64xf32>
    %50 = vector.broadcast %20 : vector<1x64xf32> to vector<8x64xf32>
    %51 = arith.addf %49, %50 : vector<8x64xf32>
    %cst_47 = arith.constant 0.000000e+00 : f32
    %52 = vector.broadcast %cst_47 : f32 to vector<8x64xf32>
    %53 = arith.maximumf %51, %52 : vector<8x64xf32>
    %cst_48 = arith.constant dense<0.000000e+00> : vector<8x64xf32>
    %54 = tpu.matmul %53, %21, %cst_48 {dimension_numbers = #tpu.dot_dimension_numbers<[1], [0], [0], [1], [0, 0, 1, 1], [], []>} : vector<8x64xf32>, vector<64x64xf32>, vector<8x64xf32> -> vector<8x64xf32>
    %55 = vector.broadcast %22 : vector<1x64xf32> to vector<8x64xf32>
    %56 = arith.addf %54, %55 : vector<8x64xf32>
    %57 = arith.negf %56 : vector<8x64xf32>
    %58 = math.exp %57 : vector<8x64xf32>
    %cst_49 = arith.constant 1.000000e+00 : f32
    %59 = vector.broadcast %cst_49 : f32 to vector<8x64xf32>
    %60 = arith.addf %59, %58 : vector<8x64xf32>
    %61 = arith.divf %59, %60 : vector<8x64xf32>
    %62 = vector.extract_strided_slice %61 {offsets = [0, 0], sizes = [8, 32], strides = [1, 1]} : vector<8x64xf32> to vector<8x32xf32>
    %63 = vector.extract_strided_slice %61 {offsets = [0, 32], sizes = [8, 32], strides = [1, 1]} : vector<8x64xf32> to vector<8x32xf32>
    %64 = arith.mulf %43, %63 : vector<8x32xf32>
    %65 = tpu.concatenate %64, %45 in 1 : vector<8x32xf32>, vector<8x4xf32> -> vector<8x36xf32>
    %cst_50 = arith.constant dense<0.000000e+00> : vector<8x32xf32>
    %66 = tpu.matmul %65, %23, %cst_50 {dimension_numbers = #tpu.dot_dimension_numbers<[1], [0], [0], [1], [0, 0, 1, 1], [], []>} : vector<8x36xf32>, vector<36x32xf32>, vector<8x32xf32> -> vector<8x32xf32>
    %67 = vector.broadcast %24 : vector<1x32xf32> to vector<8x32xf32>
    %68 = arith.addf %66, %67 : vector<8x32xf32>
    %cst_51 = arith.constant 0.000000e+00 : f32
    %69 = vector.broadcast %cst_51 : f32 to vector<8x32xf32>
    %70 = arith.maximumf %68, %69 : vector<8x32xf32>
    %cst_52 = arith.constant dense<0.000000e+00> : vector<8x32xf32>
    %71 = tpu.matmul %70, %25, %cst_52 {dimension_numbers = #tpu.dot_dimension_numbers<[1], [0], [0], [1], [0, 0, 1, 1], [], []>} : vector<8x32xf32>, vector<32x32xf32>, vector<8x32xf32> -> vector<8x32xf32>
    %72 = vector.broadcast %26 : vector<1x32xf32> to vector<8x32xf32>
    %73 = arith.addf %71, %72 : vector<8x32xf32>
    %74 = math.absf %73 : vector<8x32xf32>
    %75 = arith.select %2, %74, %73 : vector<8x32xi1>, vector<8x32xf32>
    %cst_53 = arith.constant 1.000000e+00 : f32
    %76 = vector.broadcast %cst_53 : f32 to vector<8x32xf32>
    %77 = arith.subf %76, %62 : vector<8x32xf32>
    %78 = arith.mulf %77, %75 : vector<8x32xf32>
    %79 = arith.mulf %62, %43 : vector<8x32xf32>
    %80 = arith.addf %78, %79 : vector<8x32xf32>
    %81 = arith.mulf %47, %80 : vector<8x32xf32>
    %cst_54 = arith.constant 1.000000e+00 : f32
    %82 = vector.broadcast %cst_54 : f32 to vector<8x32xf32>
    %83 = arith.subf %82, %47 : vector<8x32xf32>
    %84 = arith.mulf %83, %43 : vector<8x32xf32>
    %85 = arith.addf %81, %84 : vector<8x32xf32>
    %c1 = arith.constant 1 : index
    %86 = memref.load %arg3[%c1] : memref<6xf32, #tpu.memory_space<smem>>
    %cst_55 = arith.constant dense<0.000000e+00> : vector<8x32xf32>
    %87 = tpu.matmul %85, %13, %cst_55 {dimension_numbers = #tpu.dot_dimension_numbers<[1], [0], [0], [1], [0, 0, 1, 1], [], []>} : vector<8x32xf32>, vector<32x32xf32>, vector<8x32xf32> -> vector<8x32xf32>
    %88 = vector.broadcast %14 : vector<1x32xf32> to vector<8x32xf32>
    %89 = arith.addf %87, %88 : vector<8x32xf32>
    %cst_56 = arith.constant 0.000000e+00 : f32
    %90 = vector.broadcast %cst_56 : f32 to vector<8x32xf32>
    %91 = arith.maximumf %89, %90 : vector<8x32xf32>
    %cst_57 = arith.constant dense<0.000000e+00> : vector<8x32xf32>
    %92 = tpu.matmul %91, %15, %cst_57 {dimension_numbers = #tpu.dot_dimension_numbers<[1], [0], [0], [1], [0, 0, 1, 1], [], []>} : vector<8x32xf32>, vector<32x32xf32>, vector<8x32xf32> -> vector<8x32xf32>
    %93 = vector.broadcast %16 : vector<1x32xf32> to vector<8x32xf32>
    %94 = arith.addf %92, %93 : vector<8x32xf32>
    %cst_58 = arith.constant 0.000000e+00 : f32
    %95 = vector.broadcast %cst_58 : f32 to vector<8x32xf32>
    %96 = arith.maximumf %94, %95 : vector<8x32xf32>
    %cst_59 = arith.constant dense<0.000000e+00> : vector<8x32xf32>
    %97 = tpu.matmul %96, %17, %cst_59 {dimension_numbers = #tpu.dot_dimension_numbers<[1], [0], [0], [1], [0, 0, 1, 1], [], []>} : vector<8x32xf32>, vector<32x32xf32>, vector<8x32xf32> -> vector<8x32xf32>
    %98 = vector.broadcast %18 : vector<1x32xf32> to vector<8x32xf32>
    %99 = arith.addf %97, %98 : vector<8x32xf32>
    %100 = vector.broadcast %86 : f32 to vector<8x32xf32>
    %101 = arith.mulf %100, %99 : vector<8x32xf32>
    %102 = arith.addf %85, %101 : vector<8x32xf32>
    %c1_60 = arith.constant 1 : index
    %c0_61 = arith.constant 0 : index
    %c0_62 = arith.constant 0 : index
    %103 = vector.load %arg0[%c1_60, %c0_61, %c0_62] : memref<6x8x4xf32, #tpu.memory_space<vmem>>, vector<1x8x4xf32>
    %104 = vector.shape_cast %103 : vector<1x8x4xf32> to vector<8x4xf32>
    %c1_63 = arith.constant 1 : index
    %c0_64 = arith.constant 0 : index
    %c0_65 = arith.constant 0 : index
    %105 = vector.load %arg1[%c1_63, %c0_64, %c0_65] : memref<6x8x32xf32, #tpu.memory_space<vmem>>, vector<1x8x32xf32>
    %106 = vector.shape_cast %105 : vector<1x8x32xf32> to vector<8x32xf32>
    %107 = tpu.concatenate %102, %104 in 1 : vector<8x32xf32>, vector<8x4xf32> -> vector<8x36xf32>
    %cst_66 = arith.constant dense<0.000000e+00> : vector<8x64xf32>
    %108 = tpu.matmul %107, %19, %cst_66 {dimension_numbers = #tpu.dot_dimension_numbers<[1], [0], [0], [1], [0, 0, 1, 1], [], []>} : vector<8x36xf32>, vector<36x64xf32>, vector<8x64xf32> -> vector<8x64xf32>
    %109 = vector.broadcast %20 : vector<1x64xf32> to vector<8x64xf32>
    %110 = arith.addf %108, %109 : vector<8x64xf32>
    %cst_67 = arith.constant 0.000000e+00 : f32
    %111 = vector.broadcast %cst_67 : f32 to vector<8x64xf32>
    %112 = arith.maximumf %110, %111 : vector<8x64xf32>
    %cst_68 = arith.constant dense<0.000000e+00> : vector<8x64xf32>
    %113 = tpu.matmul %112, %21, %cst_68 {dimension_numbers = #tpu.dot_dimension_numbers<[1], [0], [0], [1], [0, 0, 1, 1], [], []>} : vector<8x64xf32>, vector<64x64xf32>, vector<8x64xf32> -> vector<8x64xf32>
    %114 = vector.broadcast %22 : vector<1x64xf32> to vector<8x64xf32>
    %115 = arith.addf %113, %114 : vector<8x64xf32>
    %116 = arith.negf %115 : vector<8x64xf32>
    %117 = math.exp %116 : vector<8x64xf32>
    %cst_69 = arith.constant 1.000000e+00 : f32
    %118 = vector.broadcast %cst_69 : f32 to vector<8x64xf32>
    %119 = arith.addf %118, %117 : vector<8x64xf32>
    %120 = arith.divf %118, %119 : vector<8x64xf32>
    %121 = vector.extract_strided_slice %120 {offsets = [0, 0], sizes = [8, 32], strides = [1, 1]} : vector<8x64xf32> to vector<8x32xf32>
    %122 = vector.extract_strided_slice %120 {offsets = [0, 32], sizes = [8, 32], strides = [1, 1]} : vector<8x64xf32> to vector<8x32xf32>
    %123 = arith.mulf %102, %122 : vector<8x32xf32>
    %124 = tpu.concatenate %123, %104 in 1 : vector<8x32xf32>, vector<8x4xf32> -> vector<8x36xf32>
    %cst_70 = arith.constant dense<0.000000e+00> : vector<8x32xf32>
    %125 = tpu.matmul %124, %23, %cst_70 {dimension_numbers = #tpu.dot_dimension_numbers<[1], [0], [0], [1], [0, 0, 1, 1], [], []>} : vector<8x36xf32>, vector<36x32xf32>, vector<8x32xf32> -> vector<8x32xf32>
    %126 = vector.broadcast %24 : vector<1x32xf32> to vector<8x32xf32>
    %127 = arith.addf %125, %126 : vector<8x32xf32>
    %cst_71 = arith.constant 0.000000e+00 : f32
    %128 = vector.broadcast %cst_71 : f32 to vector<8x32xf32>
    %129 = arith.maximumf %127, %128 : vector<8x32xf32>
    %cst_72 = arith.constant dense<0.000000e+00> : vector<8x32xf32>
    %130 = tpu.matmul %129, %25, %cst_72 {dimension_numbers = #tpu.dot_dimension_numbers<[1], [0], [0], [1], [0, 0, 1, 1], [], []>} : vector<8x32xf32>, vector<32x32xf32>, vector<8x32xf32> -> vector<8x32xf32>
    %131 = vector.broadcast %26 : vector<1x32xf32> to vector<8x32xf32>
    %132 = arith.addf %130, %131 : vector<8x32xf32>
    %133 = math.absf %132 : vector<8x32xf32>
    %134 = arith.select %2, %133, %132 : vector<8x32xi1>, vector<8x32xf32>
    %cst_73 = arith.constant 1.000000e+00 : f32
    %135 = vector.broadcast %cst_73 : f32 to vector<8x32xf32>
    %136 = arith.subf %135, %121 : vector<8x32xf32>
    %137 = arith.mulf %136, %134 : vector<8x32xf32>
    %138 = arith.mulf %121, %102 : vector<8x32xf32>
    %139 = arith.addf %137, %138 : vector<8x32xf32>
    %140 = arith.mulf %106, %139 : vector<8x32xf32>
    %cst_74 = arith.constant 1.000000e+00 : f32
    %141 = vector.broadcast %cst_74 : f32 to vector<8x32xf32>
    %142 = arith.subf %141, %106 : vector<8x32xf32>
    %143 = arith.mulf %142, %102 : vector<8x32xf32>
    %144 = arith.addf %140, %143 : vector<8x32xf32>
    %c2 = arith.constant 2 : index
    %145 = memref.load %arg3[%c2] : memref<6xf32, #tpu.memory_space<smem>>
    %cst_75 = arith.constant dense<0.000000e+00> : vector<8x32xf32>
    %146 = tpu.matmul %144, %13, %cst_75 {dimension_numbers = #tpu.dot_dimension_numbers<[1], [0], [0], [1], [0, 0, 1, 1], [], []>} : vector<8x32xf32>, vector<32x32xf32>, vector<8x32xf32> -> vector<8x32xf32>
    %147 = vector.broadcast %14 : vector<1x32xf32> to vector<8x32xf32>
    %148 = arith.addf %146, %147 : vector<8x32xf32>
    %cst_76 = arith.constant 0.000000e+00 : f32
    %149 = vector.broadcast %cst_76 : f32 to vector<8x32xf32>
    %150 = arith.maximumf %148, %149 : vector<8x32xf32>
    %cst_77 = arith.constant dense<0.000000e+00> : vector<8x32xf32>
    %151 = tpu.matmul %150, %15, %cst_77 {dimension_numbers = #tpu.dot_dimension_numbers<[1], [0], [0], [1], [0, 0, 1, 1], [], []>} : vector<8x32xf32>, vector<32x32xf32>, vector<8x32xf32> -> vector<8x32xf32>
    %152 = vector.broadcast %16 : vector<1x32xf32> to vector<8x32xf32>
    %153 = arith.addf %151, %152 : vector<8x32xf32>
    %cst_78 = arith.constant 0.000000e+00 : f32
    %154 = vector.broadcast %cst_78 : f32 to vector<8x32xf32>
    %155 = arith.maximumf %153, %154 : vector<8x32xf32>
    %cst_79 = arith.constant dense<0.000000e+00> : vector<8x32xf32>
    %156 = tpu.matmul %155, %17, %cst_79 {dimension_numbers = #tpu.dot_dimension_numbers<[1], [0], [0], [1], [0, 0, 1, 1], [], []>} : vector<8x32xf32>, vector<32x32xf32>, vector<8x32xf32> -> vector<8x32xf32>
    %157 = vector.broadcast %18 : vector<1x32xf32> to vector<8x32xf32>
    %158 = arith.addf %156, %157 : vector<8x32xf32>
    %159 = vector.broadcast %145 : f32 to vector<8x32xf32>
    %160 = arith.mulf %159, %158 : vector<8x32xf32>
    %161 = arith.addf %144, %160 : vector<8x32xf32>
    %c2_80 = arith.constant 2 : index
    %c0_81 = arith.constant 0 : index
    %c0_82 = arith.constant 0 : index
    %162 = vector.load %arg0[%c2_80, %c0_81, %c0_82] : memref<6x8x4xf32, #tpu.memory_space<vmem>>, vector<1x8x4xf32>
    %163 = vector.shape_cast %162 : vector<1x8x4xf32> to vector<8x4xf32>
    %c2_83 = arith.constant 2 : index
    %c0_84 = arith.constant 0 : index
    %c0_85 = arith.constant 0 : index
    %164 = vector.load %arg1[%c2_83, %c0_84, %c0_85] : memref<6x8x32xf32, #tpu.memory_space<vmem>>, vector<1x8x32xf32>
    %165 = vector.shape_cast %164 : vector<1x8x32xf32> to vector<8x32xf32>
    %166 = tpu.concatenate %161, %163 in 1 : vector<8x32xf32>, vector<8x4xf32> -> vector<8x36xf32>
    %cst_86 = arith.constant dense<0.000000e+00> : vector<8x64xf32>
    %167 = tpu.matmul %166, %19, %cst_86 {dimension_numbers = #tpu.dot_dimension_numbers<[1], [0], [0], [1], [0, 0, 1, 1], [], []>} : vector<8x36xf32>, vector<36x64xf32>, vector<8x64xf32> -> vector<8x64xf32>
    %168 = vector.broadcast %20 : vector<1x64xf32> to vector<8x64xf32>
    %169 = arith.addf %167, %168 : vector<8x64xf32>
    %cst_87 = arith.constant 0.000000e+00 : f32
    %170 = vector.broadcast %cst_87 : f32 to vector<8x64xf32>
    %171 = arith.maximumf %169, %170 : vector<8x64xf32>
    %cst_88 = arith.constant dense<0.000000e+00> : vector<8x64xf32>
    %172 = tpu.matmul %171, %21, %cst_88 {dimension_numbers = #tpu.dot_dimension_numbers<[1], [0], [0], [1], [0, 0, 1, 1], [], []>} : vector<8x64xf32>, vector<64x64xf32>, vector<8x64xf32> -> vector<8x64xf32>
    %173 = vector.broadcast %22 : vector<1x64xf32> to vector<8x64xf32>
    %174 = arith.addf %172, %173 : vector<8x64xf32>
    %175 = arith.negf %174 : vector<8x64xf32>
    %176 = math.exp %175 : vector<8x64xf32>
    %cst_89 = arith.constant 1.000000e+00 : f32
    %177 = vector.broadcast %cst_89 : f32 to vector<8x64xf32>
    %178 = arith.addf %177, %176 : vector<8x64xf32>
    %179 = arith.divf %177, %178 : vector<8x64xf32>
    %180 = vector.extract_strided_slice %179 {offsets = [0, 0], sizes = [8, 32], strides = [1, 1]} : vector<8x64xf32> to vector<8x32xf32>
    %181 = vector.extract_strided_slice %179 {offsets = [0, 32], sizes = [8, 32], strides = [1, 1]} : vector<8x64xf32> to vector<8x32xf32>
    %182 = arith.mulf %161, %181 : vector<8x32xf32>
    %183 = tpu.concatenate %182, %163 in 1 : vector<8x32xf32>, vector<8x4xf32> -> vector<8x36xf32>
    %cst_90 = arith.constant dense<0.000000e+00> : vector<8x32xf32>
    %184 = tpu.matmul %183, %23, %cst_90 {dimension_numbers = #tpu.dot_dimension_numbers<[1], [0], [0], [1], [0, 0, 1, 1], [], []>} : vector<8x36xf32>, vector<36x32xf32>, vector<8x32xf32> -> vector<8x32xf32>
    %185 = vector.broadcast %24 : vector<1x32xf32> to vector<8x32xf32>
    %186 = arith.addf %184, %185 : vector<8x32xf32>
    %cst_91 = arith.constant 0.000000e+00 : f32
    %187 = vector.broadcast %cst_91 : f32 to vector<8x32xf32>
    %188 = arith.maximumf %186, %187 : vector<8x32xf32>
    %cst_92 = arith.constant dense<0.000000e+00> : vector<8x32xf32>
    %189 = tpu.matmul %188, %25, %cst_92 {dimension_numbers = #tpu.dot_dimension_numbers<[1], [0], [0], [1], [0, 0, 1, 1], [], []>} : vector<8x32xf32>, vector<32x32xf32>, vector<8x32xf32> -> vector<8x32xf32>
    %190 = vector.broadcast %26 : vector<1x32xf32> to vector<8x32xf32>
    %191 = arith.addf %189, %190 : vector<8x32xf32>
    %192 = math.absf %191 : vector<8x32xf32>
    %193 = arith.select %2, %192, %191 : vector<8x32xi1>, vector<8x32xf32>
    %cst_93 = arith.constant 1.000000e+00 : f32
    %194 = vector.broadcast %cst_93 : f32 to vector<8x32xf32>
    %195 = arith.subf %194, %180 : vector<8x32xf32>
    %196 = arith.mulf %195, %193 : vector<8x32xf32>
    %197 = arith.mulf %180, %161 : vector<8x32xf32>
    %198 = arith.addf %196, %197 : vector<8x32xf32>
    %199 = arith.mulf %165, %198 : vector<8x32xf32>
    %cst_94 = arith.constant 1.000000e+00 : f32
    %200 = vector.broadcast %cst_94 : f32 to vector<8x32xf32>
    %201 = arith.subf %200, %165 : vector<8x32xf32>
    %202 = arith.mulf %201, %161 : vector<8x32xf32>
    %203 = arith.addf %199, %202 : vector<8x32xf32>
    %c3 = arith.constant 3 : index
    %204 = memref.load %arg3[%c3] : memref<6xf32, #tpu.memory_space<smem>>
    %cst_95 = arith.constant dense<0.000000e+00> : vector<8x32xf32>
    %205 = tpu.matmul %203, %13, %cst_95 {dimension_numbers = #tpu.dot_dimension_numbers<[1], [0], [0], [1], [0, 0, 1, 1], [], []>} : vector<8x32xf32>, vector<32x32xf32>, vector<8x32xf32> -> vector<8x32xf32>
    %206 = vector.broadcast %14 : vector<1x32xf32> to vector<8x32xf32>
    %207 = arith.addf %205, %206 : vector<8x32xf32>
    %cst_96 = arith.constant 0.000000e+00 : f32
    %208 = vector.broadcast %cst_96 : f32 to vector<8x32xf32>
    %209 = arith.maximumf %207, %208 : vector<8x32xf32>
    %cst_97 = arith.constant dense<0.000000e+00> : vector<8x32xf32>
    %210 = tpu.matmul %209, %15, %cst_97 {dimension_numbers = #tpu.dot_dimension_numbers<[1], [0], [0], [1], [0, 0, 1, 1], [], []>} : vector<8x32xf32>, vector<32x32xf32>, vector<8x32xf32> -> vector<8x32xf32>
    %211 = vector.broadcast %16 : vector<1x32xf32> to vector<8x32xf32>
    %212 = arith.addf %210, %211 : vector<8x32xf32>
    %cst_98 = arith.constant 0.000000e+00 : f32
    %213 = vector.broadcast %cst_98 : f32 to vector<8x32xf32>
    %214 = arith.maximumf %212, %213 : vector<8x32xf32>
    %cst_99 = arith.constant dense<0.000000e+00> : vector<8x32xf32>
    %215 = tpu.matmul %214, %17, %cst_99 {dimension_numbers = #tpu.dot_dimension_numbers<[1], [0], [0], [1], [0, 0, 1, 1], [], []>} : vector<8x32xf32>, vector<32x32xf32>, vector<8x32xf32> -> vector<8x32xf32>
    %216 = vector.broadcast %18 : vector<1x32xf32> to vector<8x32xf32>
    %217 = arith.addf %215, %216 : vector<8x32xf32>
    %218 = vector.broadcast %204 : f32 to vector<8x32xf32>
    %219 = arith.mulf %218, %217 : vector<8x32xf32>
    %220 = arith.addf %203, %219 : vector<8x32xf32>
    %c3_100 = arith.constant 3 : index
    %c0_101 = arith.constant 0 : index
    %c0_102 = arith.constant 0 : index
    %221 = vector.load %arg0[%c3_100, %c0_101, %c0_102] : memref<6x8x4xf32, #tpu.memory_space<vmem>>, vector<1x8x4xf32>
    %222 = vector.shape_cast %221 : vector<1x8x4xf32> to vector<8x4xf32>
    %c3_103 = arith.constant 3 : index
    %c0_104 = arith.constant 0 : index
    %c0_105 = arith.constant 0 : index
    %223 = vector.load %arg1[%c3_103, %c0_104, %c0_105] : memref<6x8x32xf32, #tpu.memory_space<vmem>>, vector<1x8x32xf32>
    %224 = vector.shape_cast %223 : vector<1x8x32xf32> to vector<8x32xf32>
    %225 = tpu.concatenate %220, %222 in 1 : vector<8x32xf32>, vector<8x4xf32> -> vector<8x36xf32>
    %cst_106 = arith.constant dense<0.000000e+00> : vector<8x64xf32>
    %226 = tpu.matmul %225, %19, %cst_106 {dimension_numbers = #tpu.dot_dimension_numbers<[1], [0], [0], [1], [0, 0, 1, 1], [], []>} : vector<8x36xf32>, vector<36x64xf32>, vector<8x64xf32> -> vector<8x64xf32>
    %227 = vector.broadcast %20 : vector<1x64xf32> to vector<8x64xf32>
    %228 = arith.addf %226, %227 : vector<8x64xf32>
    %cst_107 = arith.constant 0.000000e+00 : f32
    %229 = vector.broadcast %cst_107 : f32 to vector<8x64xf32>
    %230 = arith.maximumf %228, %229 : vector<8x64xf32>
    %cst_108 = arith.constant dense<0.000000e+00> : vector<8x64xf32>
    %231 = tpu.matmul %230, %21, %cst_108 {dimension_numbers = #tpu.dot_dimension_numbers<[1], [0], [0], [1], [0, 0, 1, 1], [], []>} : vector<8x64xf32>, vector<64x64xf32>, vector<8x64xf32> -> vector<8x64xf32>
    %232 = vector.broadcast %22 : vector<1x64xf32> to vector<8x64xf32>
    %233 = arith.addf %231, %232 : vector<8x64xf32>
    %234 = arith.negf %233 : vector<8x64xf32>
    %235 = math.exp %234 : vector<8x64xf32>
    %cst_109 = arith.constant 1.000000e+00 : f32
    %236 = vector.broadcast %cst_109 : f32 to vector<8x64xf32>
    %237 = arith.addf %236, %235 : vector<8x64xf32>
    %238 = arith.divf %236, %237 : vector<8x64xf32>
    %239 = vector.extract_strided_slice %238 {offsets = [0, 0], sizes = [8, 32], strides = [1, 1]} : vector<8x64xf32> to vector<8x32xf32>
    %240 = vector.extract_strided_slice %238 {offsets = [0, 32], sizes = [8, 32], strides = [1, 1]} : vector<8x64xf32> to vector<8x32xf32>
    %241 = arith.mulf %220, %240 : vector<8x32xf32>
    %242 = tpu.concatenate %241, %222 in 1 : vector<8x32xf32>, vector<8x4xf32> -> vector<8x36xf32>
    %cst_110 = arith.constant dense<0.000000e+00> : vector<8x32xf32>
    %243 = tpu.matmul %242, %23, %cst_110 {dimension_numbers = #tpu.dot_dimension_numbers<[1], [0], [0], [1], [0, 0, 1, 1], [], []>} : vector<8x36xf32>, vector<36x32xf32>, vector<8x32xf32> -> vector<8x32xf32>
    %244 = vector.broadcast %24 : vector<1x32xf32> to vector<8x32xf32>
    %245 = arith.addf %243, %244 : vector<8x32xf32>
    %cst_111 = arith.constant 0.000000e+00 : f32
    %246 = vector.broadcast %cst_111 : f32 to vector<8x32xf32>
    %247 = arith.maximumf %245, %246 : vector<8x32xf32>
    %cst_112 = arith.constant dense<0.000000e+00> : vector<8x32xf32>
    %248 = tpu.matmul %247, %25, %cst_112 {dimension_numbers = #tpu.dot_dimension_numbers<[1], [0], [0], [1], [0, 0, 1, 1], [], []>} : vector<8x32xf32>, vector<32x32xf32>, vector<8x32xf32> -> vector<8x32xf32>
    %249 = vector.broadcast %26 : vector<1x32xf32> to vector<8x32xf32>
    %250 = arith.addf %248, %249 : vector<8x32xf32>
    %251 = math.absf %250 : vector<8x32xf32>
    %252 = arith.select %2, %251, %250 : vector<8x32xi1>, vector<8x32xf32>
    %cst_113 = arith.constant 1.000000e+00 : f32
    %253 = vector.broadcast %cst_113 : f32 to vector<8x32xf32>
    %254 = arith.subf %253, %239 : vector<8x32xf32>
    %255 = arith.mulf %254, %252 : vector<8x32xf32>
    %256 = arith.mulf %239, %220 : vector<8x32xf32>
    %257 = arith.addf %255, %256 : vector<8x32xf32>
    %258 = arith.mulf %224, %257 : vector<8x32xf32>
    %cst_114 = arith.constant 1.000000e+00 : f32
    %259 = vector.broadcast %cst_114 : f32 to vector<8x32xf32>
    %260 = arith.subf %259, %224 : vector<8x32xf32>
    %261 = arith.mulf %260, %220 : vector<8x32xf32>
    %262 = arith.addf %258, %261 : vector<8x32xf32>
    %c4 = arith.constant 4 : index
    %263 = memref.load %arg3[%c4] : memref<6xf32, #tpu.memory_space<smem>>
    %cst_115 = arith.constant dense<0.000000e+00> : vector<8x32xf32>
    %264 = tpu.matmul %262, %13, %cst_115 {dimension_numbers = #tpu.dot_dimension_numbers<[1], [0], [0], [1], [0, 0, 1, 1], [], []>} : vector<8x32xf32>, vector<32x32xf32>, vector<8x32xf32> -> vector<8x32xf32>
    %265 = vector.broadcast %14 : vector<1x32xf32> to vector<8x32xf32>
    %266 = arith.addf %264, %265 : vector<8x32xf32>
    %cst_116 = arith.constant 0.000000e+00 : f32
    %267 = vector.broadcast %cst_116 : f32 to vector<8x32xf32>
    %268 = arith.maximumf %266, %267 : vector<8x32xf32>
    %cst_117 = arith.constant dense<0.000000e+00> : vector<8x32xf32>
    %269 = tpu.matmul %268, %15, %cst_117 {dimension_numbers = #tpu.dot_dimension_numbers<[1], [0], [0], [1], [0, 0, 1, 1], [], []>} : vector<8x32xf32>, vector<32x32xf32>, vector<8x32xf32> -> vector<8x32xf32>
    %270 = vector.broadcast %16 : vector<1x32xf32> to vector<8x32xf32>
    %271 = arith.addf %269, %270 : vector<8x32xf32>
    %cst_118 = arith.constant 0.000000e+00 : f32
    %272 = vector.broadcast %cst_118 : f32 to vector<8x32xf32>
    %273 = arith.maximumf %271, %272 : vector<8x32xf32>
    %cst_119 = arith.constant dense<0.000000e+00> : vector<8x32xf32>
    %274 = tpu.matmul %273, %17, %cst_119 {dimension_numbers = #tpu.dot_dimension_numbers<[1], [0], [0], [1], [0, 0, 1, 1], [], []>} : vector<8x32xf32>, vector<32x32xf32>, vector<8x32xf32> -> vector<8x32xf32>
    %275 = vector.broadcast %18 : vector<1x32xf32> to vector<8x32xf32>
    %276 = arith.addf %274, %275 : vector<8x32xf32>
    %277 = vector.broadcast %263 : f32 to vector<8x32xf32>
    %278 = arith.mulf %277, %276 : vector<8x32xf32>
    %279 = arith.addf %262, %278 : vector<8x32xf32>
    %c4_120 = arith.constant 4 : index
    %c0_121 = arith.constant 0 : index
    %c0_122 = arith.constant 0 : index
    %280 = vector.load %arg0[%c4_120, %c0_121, %c0_122] : memref<6x8x4xf32, #tpu.memory_space<vmem>>, vector<1x8x4xf32>
    %281 = vector.shape_cast %280 : vector<1x8x4xf32> to vector<8x4xf32>
    %c4_123 = arith.constant 4 : index
    %c0_124 = arith.constant 0 : index
    %c0_125 = arith.constant 0 : index
    %282 = vector.load %arg1[%c4_123, %c0_124, %c0_125] : memref<6x8x32xf32, #tpu.memory_space<vmem>>, vector<1x8x32xf32>
    %283 = vector.shape_cast %282 : vector<1x8x32xf32> to vector<8x32xf32>
    %284 = tpu.concatenate %279, %281 in 1 : vector<8x32xf32>, vector<8x4xf32> -> vector<8x36xf32>
    %cst_126 = arith.constant dense<0.000000e+00> : vector<8x64xf32>
    %285 = tpu.matmul %284, %19, %cst_126 {dimension_numbers = #tpu.dot_dimension_numbers<[1], [0], [0], [1], [0, 0, 1, 1], [], []>} : vector<8x36xf32>, vector<36x64xf32>, vector<8x64xf32> -> vector<8x64xf32>
    %286 = vector.broadcast %20 : vector<1x64xf32> to vector<8x64xf32>
    %287 = arith.addf %285, %286 : vector<8x64xf32>
    %cst_127 = arith.constant 0.000000e+00 : f32
    %288 = vector.broadcast %cst_127 : f32 to vector<8x64xf32>
    %289 = arith.maximumf %287, %288 : vector<8x64xf32>
    %cst_128 = arith.constant dense<0.000000e+00> : vector<8x64xf32>
    %290 = tpu.matmul %289, %21, %cst_128 {dimension_numbers = #tpu.dot_dimension_numbers<[1], [0], [0], [1], [0, 0, 1, 1], [], []>} : vector<8x64xf32>, vector<64x64xf32>, vector<8x64xf32> -> vector<8x64xf32>
    %291 = vector.broadcast %22 : vector<1x64xf32> to vector<8x64xf32>
    %292 = arith.addf %290, %291 : vector<8x64xf32>
    %293 = arith.negf %292 : vector<8x64xf32>
    %294 = math.exp %293 : vector<8x64xf32>
    %cst_129 = arith.constant 1.000000e+00 : f32
    %295 = vector.broadcast %cst_129 : f32 to vector<8x64xf32>
    %296 = arith.addf %295, %294 : vector<8x64xf32>
    %297 = arith.divf %295, %296 : vector<8x64xf32>
    %298 = vector.extract_strided_slice %297 {offsets = [0, 0], sizes = [8, 32], strides = [1, 1]} : vector<8x64xf32> to vector<8x32xf32>
    %299 = vector.extract_strided_slice %297 {offsets = [0, 32], sizes = [8, 32], strides = [1, 1]} : vector<8x64xf32> to vector<8x32xf32>
    %300 = arith.mulf %279, %299 : vector<8x32xf32>
    %301 = tpu.concatenate %300, %281 in 1 : vector<8x32xf32>, vector<8x4xf32> -> vector<8x36xf32>
    %cst_130 = arith.constant dense<0.000000e+00> : vector<8x32xf32>
    %302 = tpu.matmul %301, %23, %cst_130 {dimension_numbers = #tpu.dot_dimension_numbers<[1], [0], [0], [1], [0, 0, 1, 1], [], []>} : vector<8x36xf32>, vector<36x32xf32>, vector<8x32xf32> -> vector<8x32xf32>
    %303 = vector.broadcast %24 : vector<1x32xf32> to vector<8x32xf32>
    %304 = arith.addf %302, %303 : vector<8x32xf32>
    %cst_131 = arith.constant 0.000000e+00 : f32
    %305 = vector.broadcast %cst_131 : f32 to vector<8x32xf32>
    %306 = arith.maximumf %304, %305 : vector<8x32xf32>
    %cst_132 = arith.constant dense<0.000000e+00> : vector<8x32xf32>
    %307 = tpu.matmul %306, %25, %cst_132 {dimension_numbers = #tpu.dot_dimension_numbers<[1], [0], [0], [1], [0, 0, 1, 1], [], []>} : vector<8x32xf32>, vector<32x32xf32>, vector<8x32xf32> -> vector<8x32xf32>
    %308 = vector.broadcast %26 : vector<1x32xf32> to vector<8x32xf32>
    %309 = arith.addf %307, %308 : vector<8x32xf32>
    %310 = math.absf %309 : vector<8x32xf32>
    %311 = arith.select %2, %310, %309 : vector<8x32xi1>, vector<8x32xf32>
    %cst_133 = arith.constant 1.000000e+00 : f32
    %312 = vector.broadcast %cst_133 : f32 to vector<8x32xf32>
    %313 = arith.subf %312, %298 : vector<8x32xf32>
    %314 = arith.mulf %313, %311 : vector<8x32xf32>
    %315 = arith.mulf %298, %279 : vector<8x32xf32>
    %316 = arith.addf %314, %315 : vector<8x32xf32>
    %317 = arith.mulf %283, %316 : vector<8x32xf32>
    %cst_134 = arith.constant 1.000000e+00 : f32
    %318 = vector.broadcast %cst_134 : f32 to vector<8x32xf32>
    %319 = arith.subf %318, %283 : vector<8x32xf32>
    %320 = arith.mulf %319, %279 : vector<8x32xf32>
    %321 = arith.addf %317, %320 : vector<8x32xf32>
    %c5 = arith.constant 5 : index
    %322 = memref.load %arg3[%c5] : memref<6xf32, #tpu.memory_space<smem>>
    %cst_135 = arith.constant dense<0.000000e+00> : vector<8x32xf32>
    %323 = tpu.matmul %321, %13, %cst_135 {dimension_numbers = #tpu.dot_dimension_numbers<[1], [0], [0], [1], [0, 0, 1, 1], [], []>} : vector<8x32xf32>, vector<32x32xf32>, vector<8x32xf32> -> vector<8x32xf32>
    %324 = vector.broadcast %14 : vector<1x32xf32> to vector<8x32xf32>
    %325 = arith.addf %323, %324 : vector<8x32xf32>
    %cst_136 = arith.constant 0.000000e+00 : f32
    %326 = vector.broadcast %cst_136 : f32 to vector<8x32xf32>
    %327 = arith.maximumf %325, %326 : vector<8x32xf32>
    %cst_137 = arith.constant dense<0.000000e+00> : vector<8x32xf32>
    %328 = tpu.matmul %327, %15, %cst_137 {dimension_numbers = #tpu.dot_dimension_numbers<[1], [0], [0], [1], [0, 0, 1, 1], [], []>} : vector<8x32xf32>, vector<32x32xf32>, vector<8x32xf32> -> vector<8x32xf32>
    %329 = vector.broadcast %16 : vector<1x32xf32> to vector<8x32xf32>
    %330 = arith.addf %328, %329 : vector<8x32xf32>
    %cst_138 = arith.constant 0.000000e+00 : f32
    %331 = vector.broadcast %cst_138 : f32 to vector<8x32xf32>
    %332 = arith.maximumf %330, %331 : vector<8x32xf32>
    %cst_139 = arith.constant dense<0.000000e+00> : vector<8x32xf32>
    %333 = tpu.matmul %332, %17, %cst_139 {dimension_numbers = #tpu.dot_dimension_numbers<[1], [0], [0], [1], [0, 0, 1, 1], [], []>} : vector<8x32xf32>, vector<32x32xf32>, vector<8x32xf32> -> vector<8x32xf32>
    %334 = vector.broadcast %18 : vector<1x32xf32> to vector<8x32xf32>
    %335 = arith.addf %333, %334 : vector<8x32xf32>
    %336 = vector.broadcast %322 : f32 to vector<8x32xf32>
    %337 = arith.mulf %336, %335 : vector<8x32xf32>
    %338 = arith.addf %321, %337 : vector<8x32xf32>
    %c5_140 = arith.constant 5 : index
    %c0_141 = arith.constant 0 : index
    %c0_142 = arith.constant 0 : index
    %339 = vector.load %arg0[%c5_140, %c0_141, %c0_142] : memref<6x8x4xf32, #tpu.memory_space<vmem>>, vector<1x8x4xf32>
    %340 = vector.shape_cast %339 : vector<1x8x4xf32> to vector<8x4xf32>
    %c5_143 = arith.constant 5 : index
    %c0_144 = arith.constant 0 : index
    %c0_145 = arith.constant 0 : index
    %341 = vector.load %arg1[%c5_143, %c0_144, %c0_145] : memref<6x8x32xf32, #tpu.memory_space<vmem>>, vector<1x8x32xf32>
    %342 = vector.shape_cast %341 : vector<1x8x32xf32> to vector<8x32xf32>
    %343 = tpu.concatenate %338, %340 in 1 : vector<8x32xf32>, vector<8x4xf32> -> vector<8x36xf32>
    %cst_146 = arith.constant dense<0.000000e+00> : vector<8x64xf32>
    %344 = tpu.matmul %343, %19, %cst_146 {dimension_numbers = #tpu.dot_dimension_numbers<[1], [0], [0], [1], [0, 0, 1, 1], [], []>} : vector<8x36xf32>, vector<36x64xf32>, vector<8x64xf32> -> vector<8x64xf32>
    %345 = vector.broadcast %20 : vector<1x64xf32> to vector<8x64xf32>
    %346 = arith.addf %344, %345 : vector<8x64xf32>
    %cst_147 = arith.constant 0.000000e+00 : f32
    %347 = vector.broadcast %cst_147 : f32 to vector<8x64xf32>
    %348 = arith.maximumf %346, %347 : vector<8x64xf32>
    %cst_148 = arith.constant dense<0.000000e+00> : vector<8x64xf32>
    %349 = tpu.matmul %348, %21, %cst_148 {dimension_numbers = #tpu.dot_dimension_numbers<[1], [0], [0], [1], [0, 0, 1, 1], [], []>} : vector<8x64xf32>, vector<64x64xf32>, vector<8x64xf32> -> vector<8x64xf32>
    %350 = vector.broadcast %22 : vector<1x64xf32> to vector<8x64xf32>
    %351 = arith.addf %349, %350 : vector<8x64xf32>
    %352 = arith.negf %351 : vector<8x64xf32>
    %353 = math.exp %352 : vector<8x64xf32>
    %cst_149 = arith.constant 1.000000e+00 : f32
    %354 = vector.broadcast %cst_149 : f32 to vector<8x64xf32>
    %355 = arith.addf %354, %353 : vector<8x64xf32>
    %356 = arith.divf %354, %355 : vector<8x64xf32>
    %357 = vector.extract_strided_slice %356 {offsets = [0, 0], sizes = [8, 32], strides = [1, 1]} : vector<8x64xf32> to vector<8x32xf32>
    %358 = vector.extract_strided_slice %356 {offsets = [0, 32], sizes = [8, 32], strides = [1, 1]} : vector<8x64xf32> to vector<8x32xf32>
    %359 = arith.mulf %338, %358 : vector<8x32xf32>
    %360 = tpu.concatenate %359, %340 in 1 : vector<8x32xf32>, vector<8x4xf32> -> vector<8x36xf32>
    %cst_150 = arith.constant dense<0.000000e+00> : vector<8x32xf32>
    %361 = tpu.matmul %360, %23, %cst_150 {dimension_numbers = #tpu.dot_dimension_numbers<[1], [0], [0], [1], [0, 0, 1, 1], [], []>} : vector<8x36xf32>, vector<36x32xf32>, vector<8x32xf32> -> vector<8x32xf32>
    %362 = vector.broadcast %24 : vector<1x32xf32> to vector<8x32xf32>
    %363 = arith.addf %361, %362 : vector<8x32xf32>
    %cst_151 = arith.constant 0.000000e+00 : f32
    %364 = vector.broadcast %cst_151 : f32 to vector<8x32xf32>
    %365 = arith.maximumf %363, %364 : vector<8x32xf32>
    %cst_152 = arith.constant dense<0.000000e+00> : vector<8x32xf32>
    %366 = tpu.matmul %365, %25, %cst_152 {dimension_numbers = #tpu.dot_dimension_numbers<[1], [0], [0], [1], [0, 0, 1, 1], [], []>} : vector<8x32xf32>, vector<32x32xf32>, vector<8x32xf32> -> vector<8x32xf32>
    %367 = vector.broadcast %26 : vector<1x32xf32> to vector<8x32xf32>
    %368 = arith.addf %366, %367 : vector<8x32xf32>
    %369 = math.absf %368 : vector<8x32xf32>
    %370 = arith.select %2, %369, %368 : vector<8x32xi1>, vector<8x32xf32>
    %cst_153 = arith.constant 1.000000e+00 : f32
    %371 = vector.broadcast %cst_153 : f32 to vector<8x32xf32>
    %372 = arith.subf %371, %357 : vector<8x32xf32>
    %373 = arith.mulf %372, %370 : vector<8x32xf32>
    %374 = arith.mulf %357, %338 : vector<8x32xf32>
    %375 = arith.addf %373, %374 : vector<8x32xf32>
    %376 = arith.mulf %342, %375 : vector<8x32xf32>
    %cst_154 = arith.constant 1.000000e+00 : f32
    %377 = vector.broadcast %cst_154 : f32 to vector<8x32xf32>
    %378 = arith.subf %377, %342 : vector<8x32xf32>
    %379 = arith.mulf %378, %338 : vector<8x32xf32>
    %380 = arith.addf %376, %379 : vector<8x32xf32>
    %c0_155 = arith.constant 0 : index
    %c0_156 = arith.constant 0 : index
    %381 = vector.load %arg21[%c0_155, %c0_156] : memref<32x100xf32, #tpu.memory_space<vmem>>, vector<32x100xf32>
    %cst_157 = arith.constant dense<0.000000e+00> : vector<8x100xf32>
    %382 = tpu.matmul %380, %381, %cst_157 {dimension_numbers = #tpu.dot_dimension_numbers<[1], [0], [0], [1], [0, 0, 1, 1], [], []>} : vector<8x32xf32>, vector<32x100xf32>, vector<8x100xf32> -> vector<8x100xf32>
    %c0_158 = arith.constant 0 : index
    %c0_159 = arith.constant 0 : index
    %383 = vector.load %arg22[%c0_158, %c0_159] : memref<1x100xf32, #tpu.memory_space<vmem>>, vector<1x100xf32>
    %384 = vector.broadcast %383 : vector<1x100xf32> to vector<8x100xf32>
    %385 = arith.addf %382, %384 : vector<8x100xf32>
    %cst_160 = arith.constant 0.000000e+00 : f32
    %386 = vector.broadcast %cst_160 : f32 to vector<8x100xf32>
    %387 = arith.maximumf %385, %386 : vector<8x100xf32>
    %c0_161 = arith.constant 0 : index
    %c0_162 = arith.constant 0 : index
    %388 = vector.load %arg23[%c0_161, %c0_162] : memref<100x16xf32, #tpu.memory_space<vmem>>, vector<100x16xf32>
    %cst_163 = arith.constant dense<0.000000e+00> : vector<8x16xf32>
    %389 = tpu.matmul %387, %388, %cst_163 {dimension_numbers = #tpu.dot_dimension_numbers<[1], [0], [0], [1], [0, 0, 1, 1], [], []>} : vector<8x100xf32>, vector<100x16xf32>, vector<8x16xf32> -> vector<8x16xf32>
    %c0_164 = arith.constant 0 : index
    %c0_165 = arith.constant 0 : index
    %390 = vector.load %arg24[%c0_164, %c0_165] : memref<1x16xf32, #tpu.memory_space<vmem>>, vector<1x16xf32>
    %391 = vector.broadcast %390 : vector<1x16xf32> to vector<8x16xf32>
    %392 = arith.addf %389, %391 : vector<8x16xf32>
    %393 = vector.extract_strided_slice %392 {offsets = [0, 0], sizes = [8, 8], strides = [1, 1]} : vector<8x16xf32> to vector<8x8xf32>
    %394 = vector.extract_strided_slice %392 {offsets = [0, 8], sizes = [8, 8], strides = [1, 1]} : vector<8x16xf32> to vector<8x8xf32>
    %395 = math.absf %394 : vector<8x8xf32>
    %c0_166 = arith.constant 0 : index
    %c0_167 = arith.constant 0 : index
    %396 = vector.load %arg33[%c0_166, %c0_167] : memref<100x50xf32, #tpu.memory_space<vmem>>, vector<100x50xf32>
    %cst_168 = arith.constant dense<0.000000e+00> : vector<8x50xf32>
    %397 = tpu.matmul %387, %396, %cst_168 {dimension_numbers = #tpu.dot_dimension_numbers<[1], [0], [0], [1], [0, 0, 1, 1], [], []>} : vector<8x100xf32>, vector<100x50xf32>, vector<8x50xf32> -> vector<8x50xf32>
    %c0_169 = arith.constant 0 : index
    %c0_170 = arith.constant 0 : index
    %398 = vector.load %arg34[%c0_169, %c0_170] : memref<1x50xf32, #tpu.memory_space<vmem>>, vector<1x50xf32>
    %399 = vector.broadcast %398 : vector<1x50xf32> to vector<8x50xf32>
    %400 = arith.addf %397, %399 : vector<8x50xf32>
    %cst_171 = arith.constant 0.000000e+00 : f32
    %401 = vector.broadcast %cst_171 : f32 to vector<8x50xf32>
    %402 = arith.maximumf %400, %401 : vector<8x50xf32>
    %c0_172 = arith.constant 0 : index
    %c0_173 = arith.constant 0 : index
    %403 = vector.load %arg35[%c0_172, %c0_173] : memref<50x50xf32, #tpu.memory_space<vmem>>, vector<50x50xf32>
    %cst_174 = arith.constant dense<0.000000e+00> : vector<8x50xf32>
    %404 = tpu.matmul %402, %403, %cst_174 {dimension_numbers = #tpu.dot_dimension_numbers<[1], [0], [0], [1], [0, 0, 1, 1], [], []>} : vector<8x50xf32>, vector<50x50xf32>, vector<8x50xf32> -> vector<8x50xf32>
    %c0_175 = arith.constant 0 : index
    %c0_176 = arith.constant 0 : index
    %405 = vector.load %arg36[%c0_175, %c0_176] : memref<1x50xf32, #tpu.memory_space<vmem>>, vector<1x50xf32>
    %406 = vector.broadcast %405 : vector<1x50xf32> to vector<8x50xf32>
    %407 = arith.addf %404, %406 : vector<8x50xf32>
    %cst_177 = arith.constant 0.000000e+00 : f32
    %408 = vector.broadcast %cst_177 : f32 to vector<8x50xf32>
    %409 = arith.maximumf %407, %408 : vector<8x50xf32>
    %c0_178 = arith.constant 0 : index
    %c0_179 = arith.constant 0 : index
    %410 = vector.load %arg37[%c0_178, %c0_179] : memref<50x1xf32, #tpu.memory_space<vmem>>, vector<50x1xf32>
    %cst_180 = arith.constant dense<0.000000e+00> : vector<8x1xf32>
    %411 = tpu.matmul %409, %410, %cst_180 {dimension_numbers = #tpu.dot_dimension_numbers<[1], [0], [0], [1], [0, 0, 1, 1], [], []>} : vector<8x50xf32>, vector<50x1xf32>, vector<8x1xf32> -> vector<8x1xf32>
    %c0_181 = arith.constant 0 : index
    %c0_182 = arith.constant 0 : index
    %412 = vector.load %arg38[%c0_181, %c0_182] : memref<1x1xf32, #tpu.memory_space<vmem>>, vector<1x1xf32>
    %413 = vector.broadcast %412 : vector<1x1xf32> to vector<8x1xf32>
    %414 = arith.addf %411, %413 : vector<8x1xf32>
    %c0_183 = arith.constant 0 : index
    %c0_184 = arith.constant 0 : index
    %415 = vector.load %arg25[%c0_183, %c0_184] : memref<8x32xf32, #tpu.memory_space<vmem>>, vector<8x32xf32>
    %c0_185 = arith.constant 0 : index
    %c0_186 = arith.constant 0 : index
    %416 = vector.load %arg26[%c0_185, %c0_186] : memref<1x32xf32, #tpu.memory_space<vmem>>, vector<1x32xf32>
    %c0_187 = arith.constant 0 : index
    %c0_188 = arith.constant 0 : index
    %417 = vector.load %arg27[%c0_187, %c0_188] : memref<32x32xf32, #tpu.memory_space<vmem>>, vector<32x32xf32>
    %c0_189 = arith.constant 0 : index
    %c0_190 = arith.constant 0 : index
    %418 = vector.load %arg28[%c0_189, %c0_190] : memref<1x32xf32, #tpu.memory_space<vmem>>, vector<1x32xf32>
    %c0_191 = arith.constant 0 : index
    %c0_192 = arith.constant 0 : index
    %419 = vector.load %arg29[%c0_191, %c0_192] : memref<32x8xf32, #tpu.memory_space<vmem>>, vector<32x8xf32>
    %c0_193 = arith.constant 0 : index
    %c0_194 = arith.constant 0 : index
    %420 = vector.load %arg30[%c0_193, %c0_194] : memref<1x8xf32, #tpu.memory_space<vmem>>, vector<1x8xf32>
    %cst_195 = arith.constant dense<0.000000e+00> : vector<8x32xf32>
    %421 = tpu.matmul %393, %415, %cst_195 {dimension_numbers = #tpu.dot_dimension_numbers<[1], [0], [0], [1], [0, 0, 1, 1], [], []>} : vector<8x8xf32>, vector<8x32xf32>, vector<8x32xf32> -> vector<8x32xf32>
    %422 = vector.broadcast %416 : vector<1x32xf32> to vector<8x32xf32>
    %423 = arith.addf %421, %422 : vector<8x32xf32>
    %cst_196 = arith.constant 0.000000e+00 : f32
    %424 = vector.broadcast %cst_196 : f32 to vector<8x32xf32>
    %425 = arith.maximumf %423, %424 : vector<8x32xf32>
    %cst_197 = arith.constant dense<0.000000e+00> : vector<8x32xf32>
    %426 = tpu.matmul %425, %417, %cst_197 {dimension_numbers = #tpu.dot_dimension_numbers<[1], [0], [0], [1], [0, 0, 1, 1], [], []>} : vector<8x32xf32>, vector<32x32xf32>, vector<8x32xf32> -> vector<8x32xf32>
    %427 = vector.broadcast %418 : vector<1x32xf32> to vector<8x32xf32>
    %428 = arith.addf %426, %427 : vector<8x32xf32>
    %cst_198 = arith.constant 0.000000e+00 : f32
    %429 = vector.broadcast %cst_198 : f32 to vector<8x32xf32>
    %430 = arith.maximumf %428, %429 : vector<8x32xf32>
    %c1_199 = arith.constant 1 : index
    %431 = memref.load %arg4[%c1_199] : memref<8xf32, #tpu.memory_space<smem>>
    %cst_200 = arith.constant dense<0.000000e+00> : vector<8x8xf32>
    %432 = tpu.matmul %430, %419, %cst_200 {dimension_numbers = #tpu.dot_dimension_numbers<[1], [0], [0], [1], [0, 0, 1, 1], [], []>} : vector<8x32xf32>, vector<32x8xf32>, vector<8x8xf32> -> vector<8x8xf32>
    %433 = vector.broadcast %420 : vector<1x8xf32> to vector<8x8xf32>
    %434 = arith.addf %432, %433 : vector<8x8xf32>
    %435 = vector.broadcast %431 : f32 to vector<8x8xf32>
    %436 = arith.mulf %435, %434 : vector<8x8xf32>
    %437 = arith.addf %393, %436 : vector<8x8xf32>
    %cst_201 = arith.constant dense<0.000000e+00> : vector<8x32xf32>
    %438 = tpu.matmul %437, %415, %cst_201 {dimension_numbers = #tpu.dot_dimension_numbers<[1], [0], [0], [1], [0, 0, 1, 1], [], []>} : vector<8x8xf32>, vector<8x32xf32>, vector<8x32xf32> -> vector<8x32xf32>
    %439 = vector.broadcast %416 : vector<1x32xf32> to vector<8x32xf32>
    %440 = arith.addf %438, %439 : vector<8x32xf32>
    %cst_202 = arith.constant 0.000000e+00 : f32
    %441 = vector.broadcast %cst_202 : f32 to vector<8x32xf32>
    %442 = arith.maximumf %440, %441 : vector<8x32xf32>
    %cst_203 = arith.constant dense<0.000000e+00> : vector<8x32xf32>
    %443 = tpu.matmul %442, %417, %cst_203 {dimension_numbers = #tpu.dot_dimension_numbers<[1], [0], [0], [1], [0, 0, 1, 1], [], []>} : vector<8x32xf32>, vector<32x32xf32>, vector<8x32xf32> -> vector<8x32xf32>
    %444 = vector.broadcast %418 : vector<1x32xf32> to vector<8x32xf32>
    %445 = arith.addf %443, %444 : vector<8x32xf32>
    %cst_204 = arith.constant 0.000000e+00 : f32
    %446 = vector.broadcast %cst_204 : f32 to vector<8x32xf32>
    %447 = arith.maximumf %445, %446 : vector<8x32xf32>
    %c2_205 = arith.constant 2 : index
    %448 = memref.load %arg4[%c2_205] : memref<8xf32, #tpu.memory_space<smem>>
    %cst_206 = arith.constant dense<0.000000e+00> : vector<8x8xf32>
    %449 = tpu.matmul %447, %419, %cst_206 {dimension_numbers = #tpu.dot_dimension_numbers<[1], [0], [0], [1], [0, 0, 1, 1], [], []>} : vector<8x32xf32>, vector<32x8xf32>, vector<8x8xf32> -> vector<8x8xf32>
    %450 = vector.broadcast %420 : vector<1x8xf32> to vector<8x8xf32>
    %451 = arith.addf %449, %450 : vector<8x8xf32>
    %452 = vector.broadcast %448 : f32 to vector<8x8xf32>
    %453 = arith.mulf %452, %451 : vector<8x8xf32>
    %454 = arith.addf %437, %453 : vector<8x8xf32>
    %cst_207 = arith.constant dense<0.000000e+00> : vector<8x32xf32>
    %455 = tpu.matmul %454, %415, %cst_207 {dimension_numbers = #tpu.dot_dimension_numbers<[1], [0], [0], [1], [0, 0, 1, 1], [], []>} : vector<8x8xf32>, vector<8x32xf32>, vector<8x32xf32> -> vector<8x32xf32>
    %456 = vector.broadcast %416 : vector<1x32xf32> to vector<8x32xf32>
    %457 = arith.addf %455, %456 : vector<8x32xf32>
    %cst_208 = arith.constant 0.000000e+00 : f32
    %458 = vector.broadcast %cst_208 : f32 to vector<8x32xf32>
    %459 = arith.maximumf %457, %458 : vector<8x32xf32>
    %cst_209 = arith.constant dense<0.000000e+00> : vector<8x32xf32>
    %460 = tpu.matmul %459, %417, %cst_209 {dimension_numbers = #tpu.dot_dimension_numbers<[1], [0], [0], [1], [0, 0, 1, 1], [], []>} : vector<8x32xf32>, vector<32x32xf32>, vector<8x32xf32> -> vector<8x32xf32>
    %461 = vector.broadcast %418 : vector<1x32xf32> to vector<8x32xf32>
    %462 = arith.addf %460, %461 : vector<8x32xf32>
    %cst_210 = arith.constant 0.000000e+00 : f32
    %463 = vector.broadcast %cst_210 : f32 to vector<8x32xf32>
    %464 = arith.maximumf %462, %463 : vector<8x32xf32>
    %c3_211 = arith.constant 3 : index
    %465 = memref.load %arg4[%c3_211] : memref<8xf32, #tpu.memory_space<smem>>
    %cst_212 = arith.constant dense<0.000000e+00> : vector<8x8xf32>
    %466 = tpu.matmul %464, %419, %cst_212 {dimension_numbers = #tpu.dot_dimension_numbers<[1], [0], [0], [1], [0, 0, 1, 1], [], []>} : vector<8x32xf32>, vector<32x8xf32>, vector<8x8xf32> -> vector<8x8xf32>
    %467 = vector.broadcast %420 : vector<1x8xf32> to vector<8x8xf32>
    %468 = arith.addf %466, %467 : vector<8x8xf32>
    %469 = vector.broadcast %465 : f32 to vector<8x8xf32>
    %470 = arith.mulf %469, %468 : vector<8x8xf32>
    %471 = arith.addf %454, %470 : vector<8x8xf32>
    %cst_213 = arith.constant dense<0.000000e+00> : vector<8x32xf32>
    %472 = tpu.matmul %471, %415, %cst_213 {dimension_numbers = #tpu.dot_dimension_numbers<[1], [0], [0], [1], [0, 0, 1, 1], [], []>} : vector<8x8xf32>, vector<8x32xf32>, vector<8x32xf32> -> vector<8x32xf32>
    %473 = vector.broadcast %416 : vector<1x32xf32> to vector<8x32xf32>
    %474 = arith.addf %472, %473 : vector<8x32xf32>
    %cst_214 = arith.constant 0.000000e+00 : f32
    %475 = vector.broadcast %cst_214 : f32 to vector<8x32xf32>
    %476 = arith.maximumf %474, %475 : vector<8x32xf32>
    %cst_215 = arith.constant dense<0.000000e+00> : vector<8x32xf32>
    %477 = tpu.matmul %476, %417, %cst_215 {dimension_numbers = #tpu.dot_dimension_numbers<[1], [0], [0], [1], [0, 0, 1, 1], [], []>} : vector<8x32xf32>, vector<32x32xf32>, vector<8x32xf32> -> vector<8x32xf32>
    %478 = vector.broadcast %418 : vector<1x32xf32> to vector<8x32xf32>
    %479 = arith.addf %477, %478 : vector<8x32xf32>
    %cst_216 = arith.constant 0.000000e+00 : f32
    %480 = vector.broadcast %cst_216 : f32 to vector<8x32xf32>
    %481 = arith.maximumf %479, %480 : vector<8x32xf32>
    %c4_217 = arith.constant 4 : index
    %482 = memref.load %arg4[%c4_217] : memref<8xf32, #tpu.memory_space<smem>>
    %cst_218 = arith.constant dense<0.000000e+00> : vector<8x8xf32>
    %483 = tpu.matmul %481, %419, %cst_218 {dimension_numbers = #tpu.dot_dimension_numbers<[1], [0], [0], [1], [0, 0, 1, 1], [], []>} : vector<8x32xf32>, vector<32x8xf32>, vector<8x8xf32> -> vector<8x8xf32>
    %484 = vector.broadcast %420 : vector<1x8xf32> to vector<8x8xf32>
    %485 = arith.addf %483, %484 : vector<8x8xf32>
    %486 = vector.broadcast %482 : f32 to vector<8x8xf32>
    %487 = arith.mulf %486, %485 : vector<8x8xf32>
    %488 = arith.addf %471, %487 : vector<8x8xf32>
    %cst_219 = arith.constant dense<0.000000e+00> : vector<8x32xf32>
    %489 = tpu.matmul %488, %415, %cst_219 {dimension_numbers = #tpu.dot_dimension_numbers<[1], [0], [0], [1], [0, 0, 1, 1], [], []>} : vector<8x8xf32>, vector<8x32xf32>, vector<8x32xf32> -> vector<8x32xf32>
    %490 = vector.broadcast %416 : vector<1x32xf32> to vector<8x32xf32>
    %491 = arith.addf %489, %490 : vector<8x32xf32>
    %cst_220 = arith.constant 0.000000e+00 : f32
    %492 = vector.broadcast %cst_220 : f32 to vector<8x32xf32>
    %493 = arith.maximumf %491, %492 : vector<8x32xf32>
    %cst_221 = arith.constant dense<0.000000e+00> : vector<8x32xf32>
    %494 = tpu.matmul %493, %417, %cst_221 {dimension_numbers = #tpu.dot_dimension_numbers<[1], [0], [0], [1], [0, 0, 1, 1], [], []>} : vector<8x32xf32>, vector<32x32xf32>, vector<8x32xf32> -> vector<8x32xf32>
    %495 = vector.broadcast %418 : vector<1x32xf32> to vector<8x32xf32>
    %496 = arith.addf %494, %495 : vector<8x32xf32>
    %cst_222 = arith.constant 0.000000e+00 : f32
    %497 = vector.broadcast %cst_222 : f32 to vector<8x32xf32>
    %498 = arith.maximumf %496, %497 : vector<8x32xf32>
    %c5_223 = arith.constant 5 : index
    %499 = memref.load %arg4[%c5_223] : memref<8xf32, #tpu.memory_space<smem>>
    %cst_224 = arith.constant dense<0.000000e+00> : vector<8x8xf32>
    %500 = tpu.matmul %498, %419, %cst_224 {dimension_numbers = #tpu.dot_dimension_numbers<[1], [0], [0], [1], [0, 0, 1, 1], [], []>} : vector<8x32xf32>, vector<32x8xf32>, vector<8x8xf32> -> vector<8x8xf32>
    %501 = vector.broadcast %420 : vector<1x8xf32> to vector<8x8xf32>
    %502 = arith.addf %500, %501 : vector<8x8xf32>
    %503 = vector.broadcast %499 : f32 to vector<8x8xf32>
    %504 = arith.mulf %503, %502 : vector<8x8xf32>
    %505 = arith.addf %488, %504 : vector<8x8xf32>
    %cst_225 = arith.constant dense<0.000000e+00> : vector<8x32xf32>
    %506 = tpu.matmul %505, %415, %cst_225 {dimension_numbers = #tpu.dot_dimension_numbers<[1], [0], [0], [1], [0, 0, 1, 1], [], []>} : vector<8x8xf32>, vector<8x32xf32>, vector<8x32xf32> -> vector<8x32xf32>
    %507 = vector.broadcast %416 : vector<1x32xf32> to vector<8x32xf32>
    %508 = arith.addf %506, %507 : vector<8x32xf32>
    %cst_226 = arith.constant 0.000000e+00 : f32
    %509 = vector.broadcast %cst_226 : f32 to vector<8x32xf32>
    %510 = arith.maximumf %508, %509 : vector<8x32xf32>
    %cst_227 = arith.constant dense<0.000000e+00> : vector<8x32xf32>
    %511 = tpu.matmul %510, %417, %cst_227 {dimension_numbers = #tpu.dot_dimension_numbers<[1], [0], [0], [1], [0, 0, 1, 1], [], []>} : vector<8x32xf32>, vector<32x32xf32>, vector<8x32xf32> -> vector<8x32xf32>
    %512 = vector.broadcast %418 : vector<1x32xf32> to vector<8x32xf32>
    %513 = arith.addf %511, %512 : vector<8x32xf32>
    %cst_228 = arith.constant 0.000000e+00 : f32
    %514 = vector.broadcast %cst_228 : f32 to vector<8x32xf32>
    %515 = arith.maximumf %513, %514 : vector<8x32xf32>
    %c6 = arith.constant 6 : index
    %516 = memref.load %arg4[%c6] : memref<8xf32, #tpu.memory_space<smem>>
    %cst_229 = arith.constant dense<0.000000e+00> : vector<8x8xf32>
    %517 = tpu.matmul %515, %419, %cst_229 {dimension_numbers = #tpu.dot_dimension_numbers<[1], [0], [0], [1], [0, 0, 1, 1], [], []>} : vector<8x32xf32>, vector<32x8xf32>, vector<8x8xf32> -> vector<8x8xf32>
    %518 = vector.broadcast %420 : vector<1x8xf32> to vector<8x8xf32>
    %519 = arith.addf %517, %518 : vector<8x8xf32>
    %520 = vector.broadcast %516 : f32 to vector<8x8xf32>
    %521 = arith.mulf %520, %519 : vector<8x8xf32>
    %522 = arith.addf %505, %521 : vector<8x8xf32>
    %cst_230 = arith.constant dense<0.000000e+00> : vector<8x32xf32>
    %523 = tpu.matmul %522, %415, %cst_230 {dimension_numbers = #tpu.dot_dimension_numbers<[1], [0], [0], [1], [0, 0, 1, 1], [], []>} : vector<8x8xf32>, vector<8x32xf32>, vector<8x32xf32> -> vector<8x32xf32>
    %524 = vector.broadcast %416 : vector<1x32xf32> to vector<8x32xf32>
    %525 = arith.addf %523, %524 : vector<8x32xf32>
    %cst_231 = arith.constant 0.000000e+00 : f32
    %526 = vector.broadcast %cst_231 : f32 to vector<8x32xf32>
    %527 = arith.maximumf %525, %526 : vector<8x32xf32>
    %cst_232 = arith.constant dense<0.000000e+00> : vector<8x32xf32>
    %528 = tpu.matmul %527, %417, %cst_232 {dimension_numbers = #tpu.dot_dimension_numbers<[1], [0], [0], [1], [0, 0, 1, 1], [], []>} : vector<8x32xf32>, vector<32x32xf32>, vector<8x32xf32> -> vector<8x32xf32>
    %529 = vector.broadcast %418 : vector<1x32xf32> to vector<8x32xf32>
    %530 = arith.addf %528, %529 : vector<8x32xf32>
    %cst_233 = arith.constant 0.000000e+00 : f32
    %531 = vector.broadcast %cst_233 : f32 to vector<8x32xf32>
    %532 = arith.maximumf %530, %531 : vector<8x32xf32>
    %c7 = arith.constant 7 : index
    %533 = memref.load %arg4[%c7] : memref<8xf32, #tpu.memory_space<smem>>
    %cst_234 = arith.constant dense<0.000000e+00> : vector<8x8xf32>
    %534 = tpu.matmul %532, %419, %cst_234 {dimension_numbers = #tpu.dot_dimension_numbers<[1], [0], [0], [1], [0, 0, 1, 1], [], []>} : vector<8x32xf32>, vector<32x8xf32>, vector<8x8xf32> -> vector<8x8xf32>
    %535 = vector.broadcast %420 : vector<1x8xf32> to vector<8x8xf32>
    %536 = arith.addf %534, %535 : vector<8x8xf32>
    %537 = vector.broadcast %533 : f32 to vector<8x8xf32>
    %538 = arith.mulf %537, %536 : vector<8x8xf32>
    %539 = arith.addf %522, %538 : vector<8x8xf32>
    %540 = tpu.concatenate %393, %437, %454, %471, %488, %505, %522, %539 in 0 : vector<8x8xf32>, vector<8x8xf32>, vector<8x8xf32>, vector<8x8xf32>, vector<8x8xf32>, vector<8x8xf32>, vector<8x8xf32>, vector<8x8xf32> -> vector<64x8xf32>
    %c0_235 = arith.constant 0 : index
    %c0_236 = arith.constant 0 : index
    %541 = vector.load %arg31[%c0_235, %c0_236] : memref<8x4xf32, #tpu.memory_space<vmem>>, vector<8x4xf32>
    %cst_237 = arith.constant dense<0.000000e+00> : vector<64x4xf32>
    %542 = tpu.matmul %540, %541, %cst_237 {dimension_numbers = #tpu.dot_dimension_numbers<[1], [0], [0], [1], [0, 0, 1, 1], [], []>} : vector<64x8xf32>, vector<8x4xf32>, vector<64x4xf32> -> vector<64x4xf32>
    %c0_238 = arith.constant 0 : index
    %c0_239 = arith.constant 0 : index
    %543 = vector.load %arg32[%c0_238, %c0_239] : memref<1x4xf32, #tpu.memory_space<vmem>>, vector<1x4xf32>
    %544 = vector.broadcast %543 : vector<1x4xf32> to vector<64x4xf32>
    %545 = arith.addf %542, %544 : vector<64x4xf32>
    %546 = tpu.concatenate %393, %395, %414 in 1 : vector<8x8xf32>, vector<8x8xf32>, vector<8x1xf32> -> vector<8x17xf32>
    %cst_240 = arith.constant 0.000000e+00 : f32
    %547 = vector.broadcast %cst_240 : f32 to vector<56x17xf32>
    %548 = tpu.concatenate %546, %547 in 0 : vector<8x17xf32>, vector<56x17xf32> -> vector<64x17xf32>
    %cst_241 = arith.constant 0.000000e+00 : f32
    %549 = vector.broadcast %cst_241 : f32 to vector<64x99xf32>
    %550 = tpu.concatenate %540, %545, %548, %549 in 1 : vector<64x8xf32>, vector<64x4xf32>, vector<64x17xf32>, vector<64x99xf32> -> vector<64x128xf32>
    %c0_242 = arith.constant 0 : index
    %c0_243 = arith.constant 0 : index
    %551 = vector.load %arg39[%c0_242, %c0_243] : memref<64x128xf32, #tpu.memory_space<vmem>>, vector<64x128xf32>
    tpu.vector_store %arg39[%c0_242, %c0_243], %550 {strides = array<i32>} : memref<64x128xf32, #tpu.memory_space<vmem>>, vector<64x128xf32>,
    return
  }
}

</mosaic_0001>

<llo_original>
// kernel: latent_ode_forward.1
$region0: #{latent_ode_forward.1}
  #allocation0 [shape = 'u32[]', space=smem, size = 0x4, offset = 0x4, fixed_abs, tag = 'smem constant byte address 0x4 - core index']
  #allocation1 [shape = 'u32[72,128]{1,0:T(1,128)}', space=vmem, size = 0x9000, scoped, tag = 'internal scratch']
  #allocation2 [shape = 'f32[1,1]{1,0:T(1,128)S(1)}', space=vmem, size = 0x200, scoped, tag = 'scoped memory for latent_ode_forward.1']
  %s0 = inlined_call_operand.smem [shape: u32[40], index: -1, kind: input, shape index: {}]
  %s1 = sld [smem:[%s0]]
  %s2 = scalar_lea.smem %s0, 1
  %s3 = sld [smem:[%s2]]
  %s4 = scalar_lea.smem %s0, 2
  %s5 = sld [smem:[%s4]]
  %s6 = scalar_lea.smem %s0, 3
  %s7 = sld [smem:[%s6]]
  %s8 = scalar_lea.smem %s0, 4
  %s9 = sld [smem:[%s8]]
  %s10 = scalar_lea.smem %s0, 5
  %s11 = sld [smem:[%s10]]
  %s12 = scalar_lea.smem %s0, 6
  %s13 = sld [smem:[%s12]]
  %s14 = scalar_lea.smem %s0, 7
  %s15 = sld [smem:[%s14]]
  %s16 = scalar_lea.smem %s0, 8
  %s17 = sld [smem:[%s16]]
  %s18 = scalar_lea.smem %s0, 9
  %s19 = sld [smem:[%s18]]
  %s20 = scalar_lea.smem %s0, 10
  %s21 = sld [smem:[%s20]]
  %s22 = scalar_lea.smem %s0, 11
  %s23 = sld [smem:[%s22]]
  %s24 = scalar_lea.smem %s0, 12
  %s25 = sld [smem:[%s24]]
  %s26 = scalar_lea.smem %s0, 13
  %s27 = sld [smem:[%s26]]
  %s28 = scalar_lea.smem %s0, 14
  %s29 = sld [smem:[%s28]]
  %s30 = scalar_lea.smem %s0, 15
  %s31 = sld [smem:[%s30]]
  %s32 = scalar_lea.smem %s0, 16
  %s33 = sld [smem:[%s32]]
  %s34 = scalar_lea.smem %s0, 17
  %s35 = sld [smem:[%s34]]
  %s36 = scalar_lea.smem %s0, 18
  %s37 = sld [smem:[%s36]]
  %s38 = scalar_lea.smem %s0, 19
  %s39 = sld [smem:[%s38]]
  %s40 = scalar_lea.smem %s0, 20
  %s41 = sld [smem:[%s40]]
  %s42 = scalar_lea.smem %s0, 21
  %s43 = sld [smem:[%s42]]
  %s44 = scalar_lea.smem %s0, 22
  %s45 = sld [smem:[%s44]]
  %s46 = scalar_lea.smem %s0, 23
  %s47 = sld [smem:[%s46]]
  %s48 = scalar_lea.smem %s0, 24
  %s49 = sld [smem:[%s48]]
  %s50 = scalar_lea.smem %s0, 25
  %s51 = sld [smem:[%s50]]
  %s52 = scalar_lea.smem %s0, 26
  %s53 = sld [smem:[%s52]]
  %s54 = scalar_lea.smem %s0, 27
  %s55 = sld [smem:[%s54]]
  %s56 = scalar_lea.smem %s0, 28
  %s57 = sld [smem:[%s56]]
  %s58 = scalar_lea.smem %s0, 29
  %s59 = sld [smem:[%s58]]
  %s60 = scalar_lea.smem %s0, 30
  %s61 = sld [smem:[%s60]]
  %s62 = scalar_lea.smem %s0, 31
  %s63 = sld [smem:[%s62]]
  %s64 = scalar_lea.smem %s0, 32
  %s65 = sld [smem:[%s64]]
  %s66 = scalar_lea.smem %s0, 33
  %s67 = sld [smem:[%s66]]
  %s68 = scalar_lea.smem %s0, 34
  %s69 = sld [smem:[%s68]]
  %s70 = scalar_lea.smem %s0, 35
  %s71 = sld [smem:[%s70]]
  %s72 = scalar_lea.smem %s0, 36
  %s73 = sld [smem:[%s72]]
  %s74 = scalar_lea.smem %s0, 37
  %s75 = sld [smem:[%s74]]
  %s76 = scalar_lea.smem %s0, 38
  %s77 = sld [smem:[%s76]]
  %s78 = scalar_lea.smem %s0, 39
  %s79 = sld [smem:[%s78]]
  %s80 = sld [smem:[#allocation0]]
  $region174: #{latent_ode_forward.1} parent=0
    _
  %s82 = ssub.s32 1, %s80
  %s83 = scalar_select 0, %s82, %s80
  %v84 = vstv %s77
  %85 = vst [vmem:[#allocation2] sm:$0x1] %v84
  $region1: #{latent_ode_forward.1} parent=0
    #allocation3 [shape = 'u8[512]{0}', space=smem, size = 0x200, scoped, tag = 'input window, operand 3, single buffered']
    #allocation4 [shape = 's32[1]{0}', space=sflag, size = 0x4, scoped, tag = 'scoped memory for latent_ode_forward.1']
    #allocation5 [shape = 'u8[512]{0}', space=smem, size = 0x200, scoped, tag = 'input window, operand 4, single buffered']
    #allocation6 [shape = 's32[1]{0}', space=sflag, size = 0x4, scoped, tag = 'scoped memory for latent_ode_forward.1']
    %86 = vsyncpa [#allocation4], 0
    %87 = vsyncpa [#allocation6], 0
    // Predicated region
    $region2: #{latent_ode_forward.1} parent=1 // pred_check
      _
    $region3: #{latent_ode_forward.1} parent=1 // pred_check_branch
      %89 = sbr.rel (0) target = $region5
    $region4: #{latent_ode_forward.1} parent=1 // pred_region
      _
    $region5: #{latent_ode_forward.1} parent=1 // pred_fallthru
      _
    // Predicated region
    $region6: #{latent_ode_forward.1} parent=1 // pred_check
      _
    $region7: #{latent_ode_forward.1} parent=1 // pred_check_branch
      %91 = sbr.rel (0) target = $region9
    $region8: #{latent_ode_forward.1} parent=1 // pred_region
      _
    $region9: #{latent_ode_forward.1} parent=1 // pred_fallthru
      _
    // Predicated region
    $region10: #{latent_ode_forward.1} parent=1 // pred_check
      _
    $region11: #{latent_ode_forward.1} parent=1 // pred_check_branch
      %93 = sbr.rel (0) target = $region13
    $region12: #{latent_ode_forward.1} parent=1 // pred_region
      _
    $region13: #{latent_ode_forward.1} parent=1 // pred_fallthru
      _
    // Predicated region
    $region14: #{latent_ode_forward.1} parent=1 // pred_check
      _
    $region15: #{latent_ode_forward.1} parent=1 // pred_check_branch
      %95 = sbr.rel (0) target = $region17
    $region16: #{latent_ode_forward.1} parent=1 // pred_region
      %97 = vsyncadd [#allocation4], 0
      %s99 = sshll.u32 %s7, 4
      %s100 = int_to_ptr.vmem [resolvable:$true] %s99
      %102 = dma.vmem_to_smem %s100, 16, [#allocation3], [#allocation4]
    $region17: #{latent_ode_forward.1} parent=1 // pred_fallthru
      _
    // Predicated region
    $region18: #{latent_ode_forward.1} parent=1 // pred_check
      _
    $region19: #{latent_ode_forward.1} parent=1 // pred_check_branch
      %104 = sbr.rel (0) target = $region21
    $region20: #{latent_ode_forward.1} parent=1 // pred_region
      %106 = vsyncadd [#allocation6], 0
      %s108 = sshll.u32 %s9, 4
      %s109 = int_to_ptr.vmem [resolvable:$true] %s108
      %111 = dma.vmem_to_smem %s109, 16, [#allocation5], [#allocation6]
    $region21: #{latent_ode_forward.1} parent=1 // pred_fallthru
      _
    // Predicated region
    $region22: #{latent_ode_forward.1} parent=1 // pred_check
      _
    $region23: #{latent_ode_forward.1} parent=1 // pred_check_branch
      %113 = sbr.rel (0) target = $region25
    $region24: #{latent_ode_forward.1} parent=1 // pred_region
      _
    $region25: #{latent_ode_forward.1} parent=1 // pred_fallthru
      _
    // Predicated region
    $region26: #{latent_ode_forward.1} parent=1 // pred_check
      _
    $region27: #{latent_ode_forward.1} parent=1 // pred_check_branch
      %115 = sbr.rel (0) target = $region29
    $region28: #{latent_ode_forward.1} parent=1 // pred_region
      _
    $region29: #{latent_ode_forward.1} parent=1 // pred_fallthru
      _
    // Predicated region
    $region30: #{latent_ode_forward.1} parent=1 // pred_check
      _
    $region31: #{latent_ode_forward.1} parent=1 // pred_check_branch
      %117 = sbr.rel (0) target = $region33
    $region32: #{latent_ode_forward.1} parent=1 // pred_region
      _
    $region33: #{latent_ode_forward.1} parent=1 // pred_fallthru
      _
    // Predicated region
    $region34: #{latent_ode_forward.1} parent=1 // pred_check
      _
    $region35: #{latent_ode_forward.1} parent=1 // pred_check_branch
      %119 = sbr.rel (0) target = $region37
    $region36: #{latent_ode_forward.1} parent=1 // pred_region
      _
    $region37: #{latent_ode_forward.1} parent=1 // pred_fallthru
      _
    // Predicated region
    $region38: #{latent_ode_forward.1} parent=1 // pred_check
      _
    $region39: #{latent_ode_forward.1} parent=1 // pred_check_branch
      %121 = sbr.rel (0) target = $region41
    $region40: #{latent_ode_forward.1} parent=1 // pred_region
      _
    $region41: #{latent_ode_forward.1} parent=1 // pred_fallthru
      _
    // Predicated region
    $region42: #{latent_ode_forward.1} parent=1 // pred_check
      _
    $region43: #{latent_ode_forward.1} parent=1 // pred_check_branch
      %123 = sbr.rel (0) target = $region45
    $region44: #{latent_ode_forward.1} parent=1 // pred_region
      _
    $region45: #{latent_ode_forward.1} parent=1 // pred_fallthru
      _
    // Predicated region
    $region46: #{latent_ode_forward.1} parent=1 // pred_check
      _
    $region47: #{latent_ode_forward.1} parent=1 // pred_check_branch
      %125 = sbr.rel (0) target = $region49
    $region48: #{latent_ode_forward.1} parent=1 // pred_region
      _
    $region49: #{latent_ode_forward.1} parent=1 // pred_fallthru
      _
    // Predicated region
    $region50: #{latent_ode_forward.1} parent=1 // pred_check
      _
    $region51: #{latent_ode_forward.1} parent=1 // pred_check_branch
      %127 = sbr.rel (0) target = $region53
    $region52: #{latent_ode_forward.1} parent=1 // pred_region
      _
    $region53: #{latent_ode_forward.1} parent=1 // pred_fallthru
      _
    // Predicated region
    $region54: #{latent_ode_forward.1} parent=1 // pred_check
      _
    $region55: #{latent_ode_forward.1} parent=1 // pred_check_branch
      %129 = sbr.rel (0) target = $region57
    $region56: #{latent_ode_forward.1} parent=1 // pred_region
      _
    $region57: #{latent_ode_forward.1} parent=1 // pred_fallthru
      _
    // Predicated region
    $region58: #{latent_ode_forward.1} parent=1 // pred_check
      _
    $region59: #{latent_ode_forward.1} parent=1 // pred_check_branch
      %131 = sbr.rel (0) target = $region61
    $region60: #{latent_ode_forward.1} parent=1 // pred_region
      _
    $region61: #{latent_ode_forward.1} parent=1 // pred_fallthru
      _
    // Predicated region
    $region62: #{latent_ode_forward.1} parent=1 // pred_check
      _
    $region63: #{latent_ode_forward.1} parent=1 // pred_check_branch
      %133 = sbr.rel (0) target = $region65
    $region64: #{latent_ode_forward.1} parent=1 // pred_region
      _
    $region65: #{latent_ode_forward.1} parent=1 // pred_fallthru
      _
    // Predicated region
    $region66: #{latent_ode_forward.1} parent=1 // pred_check
      _
    $region67: #{latent_ode_forward.1} parent=1 // pred_check_branch
      %135 = sbr.rel (0) target = $region69
    $region68: #{latent_ode_forward.1} parent=1 // pred_region
      _
    $region69: #{latent_ode_forward.1} parent=1 // pred_fallthru
      _
    // Predicated region
    $region70: #{latent_ode_forward.1} parent=1 // pred_check
      _
    $region71: #{latent_ode_forward.1} parent=1 // pred_check_branch
      %137 = sbr.rel (0) target = $region73
    $region72: #{latent_ode_forward.1} parent=1 // pred_region
      _
    $region73: #{latent_ode_forward.1} parent=1 // pred_fallthru
      _
    // Predicated region
    $region74: #{latent_ode_forward.1} parent=1 // pred_check
      _
    $region75: #{latent_ode_forward.1} parent=1 // pred_check_branch
      %139 = sbr.rel (0) target = $region77
    $region76: #{latent_ode_forward.1} parent=1 // pred_region
      _
    $region77: #{latent_ode_forward.1} parent=1 // pred_fallthru
      _
    // Predicated region
    $region78: #{latent_ode_forward.1} parent=1 // pred_check
      _
    $region79: #{latent_ode_forward.1} parent=1 // pred_check_branch
      %141 = sbr.rel (0) target = $region81
    $region80: #{latent_ode_forward.1} parent=1 // pred_region
      _
    $region81: #{latent_ode_forward.1} parent=1 // pred_fallthru
      _
    // Predicated region
    $region82: #{latent_ode_forward.1} parent=1 // pred_check
      _
    $region83: #{latent_ode_forward.1} parent=1 // pred_check_branch
      %143 = sbr.rel (0) target = $region85
    $region84: #{latent_ode_forward.1} parent=1 // pred_region
      _
    $region85: #{latent_ode_forward.1} parent=1 // pred_fallthru
      _
    // Predicated region
    $region86: #{latent_ode_forward.1} parent=1 // pred_check
      _
    $region87: #{latent_ode_forward.1} parent=1 // pred_check_branch
      %145 = sbr.rel (0) target = $region89
    $region88: #{latent_ode_forward.1} parent=1 // pred_region
      _
    $region89: #{latent_ode_forward.1} parent=1 // pred_fallthru
      _
    // Predicated region
    $region90: #{latent_ode_forward.1} parent=1 // pred_check
      _
    $region91: #{latent_ode_forward.1} parent=1 // pred_check_branch
      %147 = sbr.rel (0) target = $region93
    $region92: #{latent_ode_forward.1} parent=1 // pred_region
      _
    $region93: #{latent_ode_forward.1} parent=1 // pred_fallthru
      _
    // Predicated region
    $region94: #{latent_ode_forward.1} parent=1 // pred_check
      _
    $region95: #{latent_ode_forward.1} parent=1 // pred_check_branch
      %149 = sbr.rel (0) target = $region97
    $region96: #{latent_ode_forward.1} parent=1 // pred_region
      _
    $region97: #{latent_ode_forward.1} parent=1 // pred_fallthru
      _
    // Predicated region
    $region98: #{latent_ode_forward.1} parent=1 // pred_check
      _
    $region99: #{latent_ode_forward.1} parent=1 // pred_check_branch
      %151 = sbr.rel (0) target = $region101
    $region100: #{latent_ode_forward.1} parent=1 // pred_region
      _
    $region101: #{latent_ode_forward.1} parent=1 // pred_fallthru
      _
    // Predicated region
    $region102: #{latent_ode_forward.1} parent=1 // pred_check
      _
    $region103: #{latent_ode_forward.1} parent=1 // pred_check_branch
      %153 = sbr.rel (0) target = $region105
    $region104: #{latent_ode_forward.1} parent=1 // pred_region
      _
    $region105: #{latent_ode_forward.1} parent=1 // pred_fallthru
      _
    // Predicated region
    $region106: #{latent_ode_forward.1} parent=1 // pred_check
      _
    $region107: #{latent_ode_forward.1} parent=1 // pred_check_branch
      %155 = sbr.rel (0) target = $region109
    $region108: #{latent_ode_forward.1} parent=1 // pred_region
      _
    $region109: #{latent_ode_forward.1} parent=1 // pred_fallthru
      _
    // Predicated region
    $region110: #{latent_ode_forward.1} parent=1 // pred_check
      _
    $region111: #{latent_ode_forward.1} parent=1 // pred_check_branch
      %157 = sbr.rel (0) target = $region113
    $region112: #{latent_ode_forward.1} parent=1 // pred_region
      _
    $region113: #{latent_ode_forward.1} parent=1 // pred_fallthru
      _
    // Predicated region
    $region114: #{latent_ode_forward.1} parent=1 // pred_check
      _
    $region115: #{latent_ode_forward.1} parent=1 // pred_check_branch
      %159 = sbr.rel (0) target = $region117
    $region116: #{latent_ode_forward.1} parent=1 // pred_region
      _
    $region117: #{latent_ode_forward.1} parent=1 // pred_fallthru
      _
    // Predicated region
    $region118: #{latent_ode_forward.1} parent=1 // pred_check
      _
    $region119: #{latent_ode_forward.1} parent=1 // pred_check_branch
      %161 = sbr.rel (0) target = $region121
    $region120: #{latent_ode_forward.1} parent=1 // pred_region
      _
    $region121: #{latent_ode_forward.1} parent=1 // pred_fallthru
      _
    // Predicated region
    $region122: #{latent_ode_forward.1} parent=1 // pred_check
      _
    $region123: #{latent_ode_forward.1} parent=1 // pred_check_branch
      %163 = sbr.rel (0) target = $region125
    $region124: #{latent_ode_forward.1} parent=1 // pred_region
      _
    $region125: #{latent_ode_forward.1} parent=1 // pred_fallthru
      _
    // Predicated region
    $region126: #{latent_ode_forward.1} parent=1 // pred_check
      _
    $region127: #{latent_ode_forward.1} parent=1 // pred_check_branch
      %165 = sbr.rel (0) target = $region129
    $region128: #{latent_ode_forward.1} parent=1 // pred_region
      _
    $region129: #{latent_ode_forward.1} parent=1 // pred_fallthru
      _
    // Predicated region
    $region130: #{latent_ode_forward.1} parent=1 // pred_check
      _
    $region131: #{latent_ode_forward.1} parent=1 // pred_check_branch
      %167 = sbr.rel (0) target = $region133
    $region132: #{latent_ode_forward.1} parent=1 // pred_region
      _
    $region133: #{latent_ode_forward.1} parent=1 // pred_fallthru
      _
    // Predicated region
    $region134: #{latent_ode_forward.1} parent=1 // pred_check
      _
    $region135: #{latent_ode_forward.1} parent=1 // pred_check_branch
      %169 = sbr.rel (0) target = $region137
    $region136: #{latent_ode_forward.1} parent=1 // pred_region
      _
    $region137: #{latent_ode_forward.1} parent=1 // pred_fallthru
      _
    // Predicated region
    $region138: #{latent_ode_forward.1} parent=1 // pred_check
      _
    $region139: #{latent_ode_forward.1} parent=1 // pred_check_branch
      %171 = sbr.rel (0) target = $region141
    $region140: #{latent_ode_forward.1} parent=1 // pred_region
      _
    $region141: #{latent_ode_forward.1} parent=1 // pred_fallthru
      _
    // Predicated region
    $region142: #{latent_ode_forward.1} parent=1 // pred_check
      _
    $region143: #{latent_ode_forward.1} parent=1 // pred_check_branch
      %173 = sbr.rel (0) target = $region145
    $region144: #{latent_ode_forward.1} parent=1 // pred_region
      _
    $region145: #{latent_ode_forward.1} parent=1 // pred_fallthru
      _
    // Predicated region
    $region146: #{latent_ode_forward.1} parent=1 // pred_check
      _
    $region147: #{latent_ode_forward.1} parent=1 // pred_check_branch
      %175 = sbr.rel (0) target = $region149
    $region148: #{latent_ode_forward.1} parent=1 // pred_region
      _
    $region149: #{latent_ode_forward.1} parent=1 // pred_fallthru
      _
    // Predicated region
    $region150: #{latent_ode_forward.1} parent=1 // pred_check
      _
    $region151: #{latent_ode_forward.1} parent=1 // pred_check_branch
      %177 = sbr.rel (0) target = $region153
    $region152: #{latent_ode_forward.1} parent=1 // pred_region
      _
    $region153: #{latent_ode_forward.1} parent=1 // pred_fallthru
      _
    // Predicated region
    $region154: #{latent_ode_forward.1} parent=1 // pred_check
      _
    $region155: #{latent_ode_forward.1} parent=1 // pred_check_branch
      %179 = sbr.rel (0) target = $region157
    $region156: #{latent_ode_forward.1} parent=1 // pred_region
      _
    $region157: #{latent_ode_forward.1} parent=1 // pred_fallthru
      _
    // Predicated region
    $region158: #{latent_ode_forward.1} parent=1 // pred_check
      _
    $region159: #{latent_ode_forward.1} parent=1 // pred_check_branch
      %181 = sbr.rel (0) target = $region161
    $region160: #{latent_ode_forward.1} parent=1 // pred_region
      %183 = dma.done [#allocation4], 16
    $region161: #{latent_ode_forward.1} parent=1 // pred_fallthru
      _
    // Predicated region
    $region162: #{latent_ode_forward.1} parent=1 // pred_check
      _
    $region163: #{latent_ode_forward.1} parent=1 // pred_check_branch
      %185 = sbr.rel (0) target = $region165
    $region164: #{latent_ode_forward.1} parent=1 // pred_region
      %187 = dma.done [#allocation6], 16
    $region165: #{latent_ode_forward.1} parent=1 // pred_fallthru
      _
    %188 = sfence
    %v189 = vlaneseq
    %v190 = vand.u32 %v189, 127
    %vm191 = vcmp.ge.s32.totalorder %v190, 16
    %v192 = vld [vmem:[%s5] sm:$0xff]
    %v193 = vld [vmem:[%s11] sm:$0xff]
    %v194 = vld [vmem:[%s13] sm:$0x1]
    %v196 = vperm.slane %v194, 0
    %vm198 = vcmask 64512
    %v200 = vsel %vm198, %v192, 0
    %202 = vmatpush.msra.mxu0 0.0
    %203 = vmatpush.msra.mxu0 0.0
    %204 = vmatpush.msra.mxu0 0.0
    %205 = vmatpush.msra.mxu0 0.0
    %206 = vmatpush.msra.mxu0 0.0
    %207 = vmatpush.msra.mxu0 0.0
    %208 = vmatpush.msra.mxu0 0.0
    %209 = vmatpush.msra.mxu0 0.0
    %210 = vmatpush.msra.mxu0 0.0
    %211 = vmatpush.msra.mxu0 0.0
    %212 = vmatpush.msra.mxu0 0.0
    %213 = vmatpush.msra.mxu0 0.0
    %214 = vmatpush.msra.mxu0 0.0
    %215 = vmatpush.msra.mxu0 0.0
    %216 = vmatpush.msra.mxu0 0.0
    %217 = vmatpush.msra.mxu0 %v193
    %218 = vmatmul.f32.gmra.mxu0 %v200
    %v219 = vpop.f32.mrf.mxu0
    %v220 = vadd.f32 %v196, %v219
    %221 = vdwg.mxu0
    %v222 = vmax.f32 %v220, 0.0
    %v223 = vand.u32 2147483647, %v222
    %v224 = vsel %vm191, %v223, %v222
    %v225 = vld [vmem:[%s15] sm:$0xff]
    %v226 = vld [vmem:[%s15 + $0x8] sm:$0xff]
    %v227 = vld [vmem:[%s15 + $0x10] sm:$0xff]
    %v228 = vld [vmem:[%s15 + $0x18] sm:$0xff]
    %v229 = vld [vmem:[%s17] sm:$0x1]
    %v230 = vld [vmem:[%s19] sm:$0xff]
    %v231 = vld [vmem:[%s19 + $0x8] sm:$0xff]
    %v232 = vld [vmem:[%s19 + $0x10] sm:$0xff]
    %v233 = vld [vmem:[%s19 + $0x18] sm:$0xff]
    %v234 = vld [vmem:[%s21] sm:$0x1]
    %v235 = vld [vmem:[%s23] sm:$0xff]
    %v236 = vld [vmem:[%s23 + $0x8] sm:$0xff]
    %v237 = vld [vmem:[%s23 + $0x10] sm:$0xff]
    %v238 = vld [vmem:[%s23 + $0x18] sm:$0xff]
    %v239 = vld [vmem:[%s25] sm:$0x1]
    %v240 = vld [vmem:[%s27] sm:$0xff]
    %v241 = vld [vmem:[%s27 + $0x8] sm:$0xff]
    %v242 = vld [vmem:[%s27 + $0x10] sm:$0xff]
    %v243 = vld [vmem:[%s27 + $0x18] sm:$0xff]
    %v244 = vld [vmem:[%s27 + $0x20] sm:$0xf]
    %v245 = vld [vmem:[%s29] sm:$0x1]
    %v246 = vld [vmem:[%s31] sm:$0xff]
    %v247 = vld [vmem:[%s31 + $0x8] sm:$0xff]
    %v248 = vld [vmem:[%s31 + $0x10] sm:$0xff]
    %v249 = vld [vmem:[%s31 + $0x18] sm:$0xff]
    %v250 = vld [vmem:[%s31 + $0x20] sm:$0xff]
    %v251 = vld [vmem:[%s31 + $0x28] sm:$0xff]
    %v252 = vld [vmem:[%s31 + $0x30] sm:$0xff]
    %v253 = vld [vmem:[%s31 + $0x38] sm:$0xff]
    %v254 = vld [vmem:[%s33] sm:$0x1]
    %v255 = vld [vmem:[%s35] sm:$0xff]
    %v256 = vld [vmem:[%s35 + $0x8] sm:$0xff]
    %v257 = vld [vmem:[%s35 + $0x10] sm:$0xff]
    %v258 = vld [vmem:[%s35 + $0x18] sm:$0xff]
    %v259 = vld [vmem:[%s35 + $0x20] sm:$0xf]
    %v260 = vld [vmem:[%s37] sm:$0x1]
    %v261 = vld [vmem:[%s39] sm:$0xff]
    %v262 = vld [vmem:[%s39 + $0x8] sm:$0xff]
    %v263 = vld [vmem:[%s39 + $0x10] sm:$0xff]
    %v264 = vld [vmem:[%s39 + $0x18] sm:$0xff]
    %v265 = vld [vmem:[%s41] sm:$0x1]
    %s266 = sld [smem:[#allocation3]]
    %v268 = vperm.slane %v229, 0
    %vm270 = vcmask 261120
    %v272 = vsel %vm270, %v224, 0
    %274 = vmatpush.msra.mxu0 0.0
    %275 = vmatpush.msra.mxu0 0.0
    %276 = vmatpush.msra.mxu0 0.0
    %277 = vmatpush.msra.mxu0 0.0
    %278 = vmatpush.msra.mxu0 0.0
    %279 = vmatpush.msra.mxu0 0.0
    %280 = vmatpush.msra.mxu0 0.0
    %281 = vmatpush.msra.mxu0 0.0
    %282 = vmatpush.msra.mxu0 0.0
    %283 = vmatpush.msra.mxu0 0.0
    %284 = vmatpush.msra.mxu0 0.0
    %285 = vmatpush.msra.mxu0 0.0
    %286 = vmatpush.msra.mxu0 %v228
    %287 = vmatpush.msra.mxu0 %v227
    %288 = vmatpush.msra.mxu0 %v226
    %289 = vmatpush.msra.mxu0 %v225
    %290 = vmatmul.f32.gmra.mxu0 %v272
    %v291 = vpop.f32.mrf.mxu0
    %v292 = vadd.f32 %v268, %v291
    %293 = vdwg.mxu0
    %v294 = vmax.f32 %v292, 0.0
    %v296 = vperm.slane %v234, 0
    %v299 = vsel %vm270, %v294, 0
    %301 = vmatpush.msra.mxu0 0.0
    %302 = vmatpush.msra.mxu0 0.0
    %303 = vmatpush.msra.mxu0 0.0
    %304 = vmatpush.msra.mxu0 0.0
    %305 = vmatpush.msra.mxu0 0.0
    %306 = vmatpush.msra.mxu0 0.0
    %307 = vmatpush.msra.mxu0 0.0
    %308 = vmatpush.msra.mxu0 0.0
    %309 = vmatpush.msra.mxu0 0.0
    %310 = vmatpush.msra.mxu0 0.0
    %311 = vmatpush.msra.mxu0 0.0
    %312 = vmatpush.msra.mxu0 0.0
    %313 = vmatpush.msra.mxu0 %v233
    %314 = vmatpush.msra.mxu0 %v232
    %315 = vmatpush.msra.mxu0 %v231
    %316 = vmatpush.msra.mxu0 %v230
    %317 = vmatmul.f32.gmra.mxu0 %v299
    %v318 = vpop.f32.mrf.mxu0
    %v319 = vadd.f32 %v296, %v318
    %320 = vdwg.mxu0
    %v321 = vmax.f32 %v319, 0.0
    %v323 = vperm.slane %v239, 0
    %v326 = vsel %vm270, %v321, 0
    %328 = vmatpush.msra.mxu0 0.0
    %329 = vmatpush.msra.mxu0 0.0
    %330 = vmatpush.msra.mxu0 0.0
    %331 = vmatpush.msra.mxu0 0.0
    %332 = vmatpush.msra.mxu0 0.0
    %333 = vmatpush.msra.mxu0 0.0
    %334 = vmatpush.msra.mxu0 0.0
    %335 = vmatpush.msra.mxu0 0.0
    %336 = vmatpush.msra.mxu0 0.0
    %337 = vmatpush.msra.mxu0 0.0
    %338 = vmatpush.msra.mxu0 0.0
    %339 = vmatpush.msra.mxu0 0.0
    %340 = vmatpush.msra.mxu0 %v238
    %341 = vmatpush.msra.mxu0 %v237
    %342 = vmatpush.msra.mxu0 %v236
    %343 = vmatpush.msra.mxu0 %v235
    %344 = vmatmul.f32.gmra.mxu0 %v326
    %v345 = vpop.f32.mrf.mxu0
    %v346 = vadd.f32 %v323, %v345
    %347 = vdwg.mxu0
    %v348 = vstv %s266
    %v349 = vmul.f32 %v348, %v346
    %v350 = vadd.f32 %v224, %v349
    %v351 = vld [vmem:[%s1] sm:$0xff]
    %v352 = vld [vmem:[%s3] sm:$0xff]
    %354 = vrot.lane.b32.xlu0 %v351, 32
    %v355 = vpop.permute.xlu0 %354
    %v357 = vsel %vm270, %v350, %v355
    %v359 = vperm.slane %v245, 0
    %vm361 = vcmask 293888
    %v363 = vsel %vm361, %v357, 0
    %vm365 = vcmask 1043456
    %v367 = vsel %vm365, %v244, 0
    %369 = vmatpush.msra.mxu0 0.0
    %370 = vmatpush.msra.mxu0 0.0
    %371 = vmatpush.msra.mxu0 0.0
    %372 = vmatpush.msra.mxu0 0.0
    %373 = vmatpush.msra.mxu0 0.0
    %374 = vmatpush.msra.mxu0 0.0
    %375 = vmatpush.msra.mxu0 0.0
    %376 = vmatpush.msra.mxu0 0.0
    %377 = vmatpush.msra.mxu0 0.0
    %378 = vmatpush.msra.mxu0 0.0
    %379 = vmatpush.msra.mxu0 0.0
    %380 = vmatpush.msra.mxu0 %v367
    %381 = vmatpush.msra.mxu0 %v243
    %382 = vmatpush.msra.mxu0 %v242
    %383 = vmatpush.msra.mxu0 %v241
    %384 = vmatpush.msra.mxu0 %v240
    %385 = vmatmul.f32.gmra.mxu0 %v363
    %v386 = vpop.f32.mrf.mxu0
    %v387 = vadd.f32 %v359, %v386
    %388 = vdwg.mxu0
    %v389 = vmax.f32 %v387, 0.0
    %v391 = vperm.slane %v254, 0
    %vm393 = vcmask 523264
    %v395 = vsel %vm393, %v389, 0
    %397 = vmatpush.msra.mxu0 0.0
    %398 = vmatpush.msra.mxu0 0.0
    %399 = vmatpush.msra.mxu0 0.0
    %400 = vmatpush.msra.mxu0 0.0
    %401 = vmatpush.msra.mxu0 0.0
    %402 = vmatpush.msra.mxu0 0.0
    %403 = vmatpush.msra.mxu0 0.0
    %404 = vmatpush.msra.mxu0 0.0
    %405 = vmatpush.msra.mxu0 %v253
    %406 = vmatpush.msra.mxu0 %v252
    %407 = vmatpush.msra.mxu0 %v251
    %408 = vmatpush.msra.mxu0 %v250
    %409 = vmatpush.msra.mxu0 %v249
    %410 = vmatpush.msra.mxu0 %v248
    %411 = vmatpush.msra.mxu0 %v247
    %412 = vmatpush.msra.mxu0 %v246
    %413 = vmatmul.f32.gmra.mxu0 %v395
    %v414 = vpop.f32.mrf.mxu0
    %v415 = vadd.f32 %v391, %v414
    %416 = vdwg.mxu0
    %v417 = vxor.u32 %v415, 2147483648
    %v418 = vmul.f32 %v417, 1.442695
    %v419 = vpow.pop %v418
    %v420 = vadd.f32 %v419, 1.0
    %v421 = vrcp.pop %v420
    %v422 = vmul.f32 %v420, %v421
    %v423 = vsub.f32 1.0, %v422
    %v424 = vmul.f32 %v421, %v423
    %v425 = vadd.f32 %v421, %v424
    %vm426 = vweird.f32 %v420
    %vm427 = vweird.f32 %v421
    %vm428 = vmor %vm426, %vm427
    %v429 = vsel %vm428, %v421, %v425
    %v430 = vand.u32 2147483647, %v420
    %vm431 = vcmp.eq.f32.partialorder %v430, 8.507059e+37
    %v432 = vand.u32 %v420, 2147483648
    %v433 = vor.u32 1.1754944e-38, %v432
    %v434 = vsel %vm431, %v433, %v429
    %v435 = vmul.f32 1.0, %v434
    %437 = vrot.lane.b32.xlu0 %v435, 96
    %v438 = vpop.permute.xlu0 %437
    %v440 = vmul.f32 %v350, %v438
    %v441 = vsel %vm270, %v440, %v355
    %v443 = vperm.slane %v260, 0
    %v446 = vsel %vm361, %v441, 0
    %v449 = vsel %vm365, %v259, 0
    %451 = vmatpush.msra.mxu0 0.0
    %452 = vmatpush.msra.mxu0 0.0
    %453 = vmatpush.msra.mxu0 0.0
    %454 = vmatpush.msra.mxu0 0.0
    %455 = vmatpush.msra.mxu0 0.0
    %456 = vmatpush.msra.mxu0 0.0
    %457 = vmatpush.msra.mxu0 0.0
    %458 = vmatpush.msra.mxu0 0.0
    %459 = vmatpush.msra.mxu0 0.0
    %460 = vmatpush.msra.mxu0 0.0
    %461 = vmatpush.msra.mxu0 0.0
    %462 = vmatpush.msra.mxu0 %v449
    %463 = vmatpush.msra.mxu0 %v258
    %464 = vmatpush.msra.mxu0 %v257
    %465 = vmatpush.msra.mxu0 %v256
    %466 = vmatpush.msra.mxu0 %v255
    %467 = vmatmul.f32.gmra.mxu0 %v446
    %v468 = vpop.f32.mrf.mxu0
    %v469 = vadd.f32 %v443, %v468
    %470 = vdwg.mxu0
    %v471 = vmax.f32 %v469, 0.0
    %v473 = vperm.slane %v265, 0
    %v476 = vsel %vm270, %v471, 0
    %478 = vmatpush.msra.mxu0 0.0
    %479 = vmatpush.msra.mxu0 0.0
    %480 = vmatpush.msra.mxu0 0.0
    %481 = vmatpush.msra.mxu0 0.0
    %482 = vmatpush.msra.mxu0 0.0
    %483 = vmatpush.msra.mxu0 0.0
    %484 = vmatpush.msra.mxu0 0.0
    %485 = vmatpush.msra.mxu0 0.0
    %486 = vmatpush.msra.mxu0 0.0
    %487 = vmatpush.msra.mxu0 0.0
    %488 = vmatpush.msra.mxu0 0.0
    %489 = vmatpush.msra.mxu0 0.0
    %490 = vmatpush.msra.mxu0 %v264
    %491 = vmatpush.msra.mxu0 %v263
    %492 = vmatpush.msra.mxu0 %v262
    %493 = vmatpush.msra.mxu0 %v261
    %494 = vmatmul.f32.gmra.mxu0 %v476
    %v495 = vpop.f32.mrf.mxu0
    %v496 = vadd.f32 %v473, %v495
    %497 = vdwg.mxu0
    %v498 = vand.u32 2147483647, %v496
    %v499 = vsel %vm191, %v498, %v496
    %v500 = vsub.f32 1.0, %v435
    %v501 = vmul.f32 %v500, %v499
    %v502 = vmul.f32 %v435, %v350
    %v503 = vadd.f32 %v501, %v502
    %v504 = vmul.f32 %v352, %v503
    %v505 = vsub.f32 1.0, %v352
    %v506 = vmul.f32 %v505, %v350
    %v507 = vadd.f32 %v504, %v506
    %s508 = sld [smem:[#allocation3 + $0x1]]
    %v510 = vsel %vm270, %v507, 0
    %512 = vmatpush.msra.mxu0 0.0
    %513 = vmatpush.msra.mxu0 0.0
    %514 = vmatpush.msra.mxu0 0.0
    %515 = vmatpush.msra.mxu0 0.0
    %516 = vmatpush.msra.mxu0 0.0
    %517 = vmatpush.msra.mxu0 0.0
    %518 = vmatpush.msra.mxu0 0.0
    %519 = vmatpush.msra.mxu0 0.0
    %520 = vmatpush.msra.mxu0 0.0
    %521 = vmatpush.msra.mxu0 0.0
    %522 = vmatpush.msra.mxu0 0.0
    %523 = vmatpush.msra.mxu0 0.0
    %524 = vmatpush.msra.mxu0 %v228
    %525 = vmatpush.msra.mxu0 %v227
    %526 = vmatpush.msra.mxu0 %v226
    %527 = vmatpush.msra.mxu0 %v225
    %528 = vmatmul.f32.gmra.mxu0 %v510
    %v529 = vpop.f32.mrf.mxu0
    %v530 = vadd.f32 %v268, %v529
    %531 = vdwg.mxu0
    %v532 = vmax.f32 %v530, 0.0
    %v534 = vsel %vm270, %v532, 0
    %536 = vmatpush.msra.mxu0 0.0
    %537 = vmatpush.msra.mxu0 0.0
    %538 = vmatpush.msra.mxu0 0.0
    %539 = vmatpush.msra.mxu0 0.0
    %540 = vmatpush.msra.mxu0 0.0
    %541 = vmatpush.msra.mxu0 0.0
    %542 = vmatpush.msra.mxu0 0.0
    %543 = vmatpush.msra.mxu0 0.0
    %544 = vmatpush.msra.mxu0 0.0
    %545 = vmatpush.msra.mxu0 0.0
    %546 = vmatpush.msra.mxu0 0.0
    %547 = vmatpush.msra.mxu0 0.0
    %548 = vmatpush.msra.mxu0 %v233
    %549 = vmatpush.msra.mxu0 %v232
    %550 = vmatpush.msra.mxu0 %v231
    %551 = vmatpush.msra.mxu0 %v230
    %552 = vmatmul.f32.gmra.mxu0 %v534
    %v553 = vpop.f32.mrf.mxu0
    %v554 = vadd.f32 %v296, %v553
    %555 = vdwg.mxu0
    %v556 = vmax.f32 %v554, 0.0
    %v558 = vsel %vm270, %v556, 0
    %560 = vmatpush.msra.mxu0 0.0
    %561 = vmatpush.msra.mxu0 0.0
    %562 = vmatpush.msra.mxu0 0.0
    %563 = vmatpush.msra.mxu0 0.0
    %564 = vmatpush.msra.mxu0 0.0
    %565 = vmatpush.msra.mxu0 0.0
    %566 = vmatpush.msra.mxu0 0.0
    %567 = vmatpush.msra.mxu0 0.0
    %568 = vmatpush.msra.mxu0 0.0
    %569 = vmatpush.msra.mxu0 0.0
    %570 = vmatpush.msra.mxu0 0.0
    %571 = vmatpush.msra.mxu0 0.0
    %572 = vmatpush.msra.mxu0 %v238
    %573 = vmatpush.msra.mxu0 %v237
    %574 = vmatpush.msra.mxu0 %v236
    %575 = vmatpush.msra.mxu0 %v235
    %576 = vmatmul.f32.gmra.mxu0 %v558
    %v577 = vpop.f32.mrf.mxu0
    %v578 = vadd.f32 %v323, %v577
    %579 = vdwg.mxu0
    %v580 = vstv %s508
    %v581 = vmul.f32 %v580, %v578
    %v582 = vadd.f32 %v507, %v581
    %s583 = scalar_lea.vmem %s1, 8
    %v584 = vld [vmem:[%s583] sm:$0xff]
    %s585 = scalar_lea.vmem %s3, 8
    %v586 = vld [vmem:[%s585] sm:$0xff]
    %588 = vrot.lane.b32.xlu0 %v584, 32
    %v589 = vpop.permute.xlu0 %588
    %v591 = vsel %vm270, %v582, %v589
    %v593 = vsel %vm361, %v591, 0
    %595 = vmatpush.msra.mxu0 0.0
    %596 = vmatpush.msra.mxu0 0.0
    %597 = vmatpush.msra.mxu0 0.0
    %598 = vmatpush.msra.mxu0 0.0
    %599 = vmatpush.msra.mxu0 0.0
    %600 = vmatpush.msra.mxu0 0.0
    %601 = vmatpush.msra.mxu0 0.0
    %602 = vmatpush.msra.mxu0 0.0
    %603 = vmatpush.msra.mxu0 0.0
    %604 = vmatpush.msra.mxu0 0.0
    %605 = vmatpush.msra.mxu0 0.0
    %606 = vmatpush.msra.mxu0 %v367
    %607 = vmatpush.msra.mxu0 %v243
    %608 = vmatpush.msra.mxu0 %v242
    %609 = vmatpush.msra.mxu0 %v241
    %610 = vmatpush.msra.mxu0 %v240
    %611 = vmatmul.f32.gmra.mxu0 %v593
    %v612 = vpop.f32.mrf.mxu0
    %v613 = vadd.f32 %v359, %v612
    %614 = vdwg.mxu0
    %v615 = vmax.f32 %v613, 0.0
    %v617 = vsel %vm393, %v615, 0
    %619 = vmatpush.msra.mxu0 0.0
    %620 = vmatpush.msra.mxu0 0.0
    %621 = vmatpush.msra.mxu0 0.0
    %622 = vmatpush.msra.mxu0 0.0
    %623 = vmatpush.msra.mxu0 0.0
    %624 = vmatpush.msra.mxu0 0.0
    %625 = vmatpush.msra.mxu0 0.0
    %626 = vmatpush.msra.mxu0 0.0
    %627 = vmatpush.msra.mxu0 %v253
    %628 = vmatpush.msra.mxu0 %v252
    %629 = vmatpush.msra.mxu0 %v251
    %630 = vmatpush.msra.mxu0 %v250
    %631 = vmatpush.msra.mxu0 %v249
    %632 = vmatpush.msra.mxu0 %v248
    %633 = vmatpush.msra.mxu0 %v247
    %634 = vmatpush.msra.mxu0 %v246
    %635 = vmatmul.f32.gmra.mxu0 %v617
    %v636 = vpop.f32.mrf.mxu0
    %v637 = vadd.f32 %v391, %v636
    %638 = vdwg.mxu0
    %v639 = vxor.u32 %v637, 2147483648
    %v640 = vmul.f32 %v639, 1.442695
    %v641 = vpow.pop %v640
    %v642 = vadd.f32 %v641, 1.0
    %v643 = vrcp.pop %v642
    %v644 = vmul.f32 %v642, %v643
    %v645 = vsub.f32 1.0, %v644
    %v646 = vmul.f32 %v643, %v645
    %v647 = vadd.f32 %v643, %v646
    %vm648 = vweird.f32 %v642
    %vm649 = vweird.f32 %v643
    %vm650 = vmor %vm648, %vm649
    %v651 = vsel %vm650, %v643, %v647
    %v652 = vand.u32 2147483647, %v642
    %vm653 = vcmp.eq.f32.partialorder %v652, 8.507059e+37
    %v654 = vand.u32 %v642, 2147483648
    %v655 = vor.u32 1.1754944e-38, %v654
    %v656 = vsel %vm653, %v655, %v651
    %v657 = vmul.f32 1.0, %v656
    %659 = vrot.lane.b32.xlu0 %v657, 96
    %v660 = vpop.permute.xlu0 %659
    %v662 = vmul.f32 %v582, %v660
    %v663 = vsel %vm270, %v662, %v589
    %v665 = vsel %vm361, %v663, 0
    %667 = vmatpush.msra.mxu0 0.0
    %668 = vmatpush.msra.mxu0 0.0
    %669 = vmatpush.msra.mxu0 0.0
    %670 = vmatpush.msra.mxu0 0.0
    %671 = vmatpush.msra.mxu0 0.0
    %672 = vmatpush.msra.mxu0 0.0
    %673 = vmatpush.msra.mxu0 0.0
    %674 = vmatpush.msra.mxu0 0.0
    %675 = vmatpush.msra.mxu0 0.0
    %676 = vmatpush.msra.mxu0 0.0
    %677 = vmatpush.msra.mxu0 0.0
    %678 = vmatpush.msra.mxu0 %v449
    %679 = vmatpush.msra.mxu0 %v258
    %680 = vmatpush.msra.mxu0 %v257
    %681 = vmatpush.msra.mxu0 %v256
    %682 = vmatpush.msra.mxu0 %v255
    %683 = vmatmul.f32.gmra.mxu0 %v665
    %v684 = vpop.f32.mrf.mxu0
    %v685 = vadd.f32 %v443, %v684
    %686 = vdwg.mxu0
    %v687 = vmax.f32 %v685, 0.0
    %v689 = vsel %vm270, %v687, 0
    %691 = vmatpush.msra.mxu0 0.0
    %692 = vmatpush.msra.mxu0 0.0
    %693 = vmatpush.msra.mxu0 0.0
    %694 = vmatpush.msra.mxu0 0.0
    %695 = vmatpush.msra.mxu0 0.0
    %696 = vmatpush.msra.mxu0 0.0
    %697 = vmatpush.msra.mxu0 0.0
    %698 = vmatpush.msra.mxu0 0.0
    %699 = vmatpush.msra.mxu0 0.0
    %700 = vmatpush.msra.mxu0 0.0
    %701 = vmatpush.msra.mxu0 0.0
    %702 = vmatpush.msra.mxu0 0.0
    %703 = vmatpush.msra.mxu0 %v264
    %704 = vmatpush.msra.mxu0 %v263
    %705 = vmatpush.msra.mxu0 %v262
    %706 = vmatpush.msra.mxu0 %v261
    %707 = vmatmul.f32.gmra.mxu0 %v689
    %v708 = vpop.f32.mrf.mxu0
    %v709 = vadd.f32 %v473, %v708
    %710 = vdwg.mxu0
    %v711 = vand.u32 2147483647, %v709
    %v712 = vsel %vm191, %v711, %v709
    %v713 = vsub.f32 1.0, %v657
    %v714 = vmul.f32 %v713, %v712
    %v715 = vmul.f32 %v657, %v582
    %v716 = vadd.f32 %v714, %v715
    %v717 = vmul.f32 %v586, %v716
    %v718 = vsub.f32 1.0, %v586
    %v719 = vmul.f32 %v718, %v582
    %v720 = vadd.f32 %v717, %v719
    %s721 = sld [smem:[#allocation3 + $0x2]]
    %v723 = vsel %vm270, %v720, 0
    %725 = vmatpush.msra.mxu0 0.0
    %726 = vmatpush.msra.mxu0 0.0
    %727 = vmatpush.msra.mxu0 0.0
    %728 = vmatpush.msra.mxu0 0.0
    %729 = vmatpush.msra.mxu0 0.0
    %730 = vmatpush.msra.mxu0 0.0
    %731 = vmatpush.msra.mxu0 0.0
    %732 = vmatpush.msra.mxu0 0.0
    %733 = vmatpush.msra.mxu0 0.0
    %734 = vmatpush.msra.mxu0 0.0
    %735 = vmatpush.msra.mxu0 0.0
    %736 = vmatpush.msra.mxu0 0.0
    %737 = vmatpush.msra.mxu0 %v228
    %738 = vmatpush.msra.mxu0 %v227
    %739 = vmatpush.msra.mxu0 %v226
    %740 = vmatpush.msra.mxu0 %v225
    %741 = vmatmul.f32.gmra.mxu0 %v723
    %v742 = vpop.f32.mrf.mxu0
    %v743 = vadd.f32 %v268, %v742
    %744 = vdwg.mxu0
    %v745 = vmax.f32 %v743, 0.0
    %v747 = vsel %vm270, %v745, 0
    %749 = vmatpush.msra.mxu0 0.0
    %750 = vmatpush.msra.mxu0 0.0
    %751 = vmatpush.msra.mxu0 0.0
    %752 = vmatpush.msra.mxu0 0.0
    %753 = vmatpush.msra.mxu0 0.0
    %754 = vmatpush.msra.mxu0 0.0
    %755 = vmatpush.msra.mxu0 0.0
    %756 = vmatpush.msra.mxu0 0.0
    %757 = vmatpush.msra.mxu0 0.0
    %758 = vmatpush.msra.mxu0 0.0
    %759 = vmatpush.msra.mxu0 0.0
    %760 = vmatpush.msra.mxu0 0.0
    %761 = vmatpush.msra.mxu0 %v233
    %762 = vmatpush.msra.mxu0 %v232
    %763 = vmatpush.msra.mxu0 %v231
    %764 = vmatpush.msra.mxu0 %v230
    %765 = vmatmul.f32.gmra.mxu0 %v747
    %v766 = vpop.f32.mrf.mxu0
    %v767 = vadd.f32 %v296, %v766
    %768 = vdwg.mxu0
    %v769 = vmax.f32 %v767, 0.0
    %v771 = vsel %vm270, %v769, 0
    %773 = vmatpush.msra.mxu0 0.0
    %774 = vmatpush.msra.mxu0 0.0
    %775 = vmatpush.msra.mxu0 0.0
    %776 = vmatpush.msra.mxu0 0.0
    %777 = vmatpush.msra.mxu0 0.0
    %778 = vmatpush.msra.mxu0 0.0
    %779 = vmatpush.msra.mxu0 0.0
    %780 = vmatpush.msra.mxu0 0.0
    %781 = vmatpush.msra.mxu0 0.0
    %782 = vmatpush.msra.mxu0 0.0
    %783 = vmatpush.msra.mxu0 0.0
    %784 = vmatpush.msra.mxu0 0.0
    %785 = vmatpush.msra.mxu0 %v238
    %786 = vmatpush.msra.mxu0 %v237
    %787 = vmatpush.msra.mxu0 %v236
    %788 = vmatpush.msra.mxu0 %v235
    %789 = vmatmul.f32.gmra.mxu0 %v771
    %v790 = vpop.f32.mrf.mxu0
    %v791 = vadd.f32 %v323, %v790
    %792 = vdwg.mxu0
    %v793 = vstv %s721
    %v794 = vmul.f32 %v793, %v791
    %v795 = vadd.f32 %v720, %v794
    %s796 = scalar_lea.vmem %s1, 16
    %v797 = vld [vmem:[%s796] sm:$0xff]
    %s798 = scalar_lea.vmem %s3, 16
    %v799 = vld [vmem:[%s798] sm:$0xff]
    %801 = vrot.lane.b32.xlu0 %v797, 32
    %v802 = vpop.permute.xlu0 %801
    %v804 = vsel %vm270, %v795, %v802
    %v806 = vsel %vm361, %v804, 0
    %808 = vmatpush.msra.mxu0 0.0
    %809 = vmatpush.msra.mxu0 0.0
    %810 = vmatpush.msra.mxu0 0.0
    %811 = vmatpush.msra.mxu0 0.0
    %812 = vmatpush.msra.mxu0 0.0
    %813 = vmatpush.msra.mxu0 0.0
    %814 = vmatpush.msra.mxu0 0.0
    %815 = vmatpush.msra.mxu0 0.0
    %816 = vmatpush.msra.mxu0 0.0
    %817 = vmatpush.msra.mxu0 0.0
    %818 = vmatpush.msra.mxu0 0.0
    %819 = vmatpush.msra.mxu0 %v367
    %820 = vmatpush.msra.mxu0 %v243
    %821 = vmatpush.msra.mxu0 %v242
    %822 = vmatpush.msra.mxu0 %v241
    %823 = vmatpush.msra.mxu0 %v240
    %824 = vmatmul.f32.gmra.mxu0 %v806
    %v825 = vpop.f32.mrf.mxu0
    %v826 = vadd.f32 %v359, %v825
    %827 = vdwg.mxu0
    %v828 = vmax.f32 %v826, 0.0
    %v830 = vsel %vm393, %v828, 0
    %832 = vmatpush.msra.mxu0 0.0
    %833 = vmatpush.msra.mxu0 0.0
    %834 = vmatpush.msra.mxu0 0.0
    %835 = vmatpush.msra.mxu0 0.0
    %836 = vmatpush.msra.mxu0 0.0
    %837 = vmatpush.msra.mxu0 0.0
    %838 = vmatpush.msra.mxu0 0.0
    %839 = vmatpush.msra.mxu0 0.0
    %840 = vmatpush.msra.mxu0 %v253
    %841 = vmatpush.msra.mxu0 %v252
    %842 = vmatpush.msra.mxu0 %v251
    %843 = vmatpush.msra.mxu0 %v250
    %844 = vmatpush.msra.mxu0 %v249
    %845 = vmatpush.msra.mxu0 %v248
    %846 = vmatpush.msra.mxu0 %v247
    %847 = vmatpush.msra.mxu0 %v246
    %848 = vmatmul.f32.gmra.mxu0 %v830
    %v849 = vpop.f32.mrf.mxu0
    %v850 = vadd.f32 %v391, %v849
    %851 = vdwg.mxu0
    %v852 = vxor.u32 %v850, 2147483648
    %v853 = vmul.f32 %v852, 1.442695
    %v854 = vpow.pop %v853
    %v855 = vadd.f32 %v854, 1.0
    %v856 = vrcp.pop %v855
    %v857 = vmul.f32 %v855, %v856
    %v858 = vsub.f32 1.0, %v857
    %v859 = vmul.f32 %v856, %v858
    %v860 = vadd.f32 %v856, %v859
    %vm861 = vweird.f32 %v855
    %vm862 = vweird.f32 %v856
    %vm863 = vmor %vm861, %vm862
    %v864 = vsel %vm863, %v856, %v860
    %v865 = vand.u32 2147483647, %v855
    %vm866 = vcmp.eq.f32.partialorder %v865, 8.507059e+37
    %v867 = vand.u32 %v855, 2147483648
    %v868 = vor.u32 1.1754944e-38, %v867
    %v869 = vsel %vm866, %v868, %v864
    %v870 = vmul.f32 1.0, %v869
    %872 = vrot.lane.b32.xlu0 %v870, 96
    %v873 = vpop.permute.xlu0 %872
    %v875 = vmul.f32 %v795, %v873
    %v876 = vsel %vm270, %v875, %v802
    %v878 = vsel %vm361, %v876, 0
    %880 = vmatpush.msra.mxu0 0.0
    %881 = vmatpush.msra.mxu0 0.0
    %882 = vmatpush.msra.mxu0 0.0
    %883 = vmatpush.msra.mxu0 0.0
    %884 = vmatpush.msra.mxu0 0.0
    %885 = vmatpush.msra.mxu0 0.0
    %886 = vmatpush.msra.mxu0 0.0
    %887 = vmatpush.msra.mxu0 0.0
    %888 = vmatpush.msra.mxu0 0.0
    %889 = vmatpush.msra.mxu0 0.0
    %890 = vmatpush.msra.mxu0 0.0
    %891 = vmatpush.msra.mxu0 %v449
    %892 = vmatpush.msra.mxu0 %v258
    %893 = vmatpush.msra.mxu0 %v257
    %894 = vmatpush.msra.mxu0 %v256
    %895 = vmatpush.msra.mxu0 %v255
    %896 = vmatmul.f32.gmra.mxu0 %v878
    %v897 = vpop.f32.mrf.mxu0
    %v898 = vadd.f32 %v443, %v897
    %899 = vdwg.mxu0
    %v900 = vmax.f32 %v898, 0.0
    %v902 = vsel %vm270, %v900, 0
    %904 = vmatpush.msra.mxu0 0.0
    %905 = vmatpush.msra.mxu0 0.0
    %906 = vmatpush.msra.mxu0 0.0
    %907 = vmatpush.msra.mxu0 0.0
    %908 = vmatpush.msra.mxu0 0.0
    %909 = vmatpush.msra.mxu0 0.0
    %910 = vmatpush.msra.mxu0 0.0
    %911 = vmatpush.msra.mxu0 0.0
    %912 = vmatpush.msra.mxu0 0.0
    %913 = vmatpush.msra.mxu0 0.0
    %914 = vmatpush.msra.mxu0 0.0
    %915 = vmatpush.msra.mxu0 0.0
    %916 = vmatpush.msra.mxu0 %v264
    %917 = vmatpush.msra.mxu0 %v263
    %918 = vmatpush.msra.mxu0 %v262
    %919 = vmatpush.msra.mxu0 %v261
    %920 = vmatmul.f32.gmra.mxu0 %v902
    %v921 = vpop.f32.mrf.mxu0
    %v922 = vadd.f32 %v473, %v921
    %923 = vdwg.mxu0
    %v924 = vand.u32 2147483647, %v922
    %v925 = vsel %vm191, %v924, %v922
    %v926 = vsub.f32 1.0, %v870
    %v927 = vmul.f32 %v926, %v925
    %v928 = vmul.f32 %v870, %v795
    %v929 = vadd.f32 %v927, %v928
    %v930 = vmul.f32 %v799, %v929
    %v931 = vsub.f32 1.0, %v799
    %v932 = vmul.f32 %v931, %v795
    %v933 = vadd.f32 %v930, %v932
    %s934 = sld [smem:[#allocation3 + $0x3]]
    %v936 = vsel %vm270, %v933, 0
    %938 = vmatpush.msra.mxu0 0.0
    %939 = vmatpush.msra.mxu0 0.0
    %940 = vmatpush.msra.mxu0 0.0
    %941 = vmatpush.msra.mxu0 0.0
    %942 = vmatpush.msra.mxu0 0.0
    %943 = vmatpush.msra.mxu0 0.0
    %944 = vmatpush.msra.mxu0 0.0
    %945 = vmatpush.msra.mxu0 0.0
    %946 = vmatpush.msra.mxu0 0.0
    %947 = vmatpush.msra.mxu0 0.0
    %948 = vmatpush.msra.mxu0 0.0
    %949 = vmatpush.msra.mxu0 0.0
    %950 = vmatpush.msra.mxu0 %v228
    %951 = vmatpush.msra.mxu0 %v227
    %952 = vmatpush.msra.mxu0 %v226
    %953 = vmatpush.msra.mxu0 %v225
    %954 = vmatmul.f32.gmra.mxu0 %v936
    %v955 = vpop.f32.mrf.mxu0
    %v956 = vadd.f32 %v268, %v955
    %957 = vdwg.mxu0
    %v958 = vmax.f32 %v956, 0.0
    %v960 = vsel %vm270, %v958, 0
    %962 = vmatpush.msra.mxu0 0.0
    %963 = vmatpush.msra.mxu0 0.0
    %964 = vmatpush.msra.mxu0 0.0
    %965 = vmatpush.msra.mxu0 0.0
    %966 = vmatpush.msra.mxu0 0.0
    %967 = vmatpush.msra.mxu0 0.0
    %968 = vmatpush.msra.mxu0 0.0
    %969 = vmatpush.msra.mxu0 0.0
    %970 = vmatpush.msra.mxu0 0.0
    %971 = vmatpush.msra.mxu0 0.0
    %972 = vmatpush.msra.mxu0 0.0
    %973 = vmatpush.msra.mxu0 0.0
    %974 = vmatpush.msra.mxu0 %v233
    %975 = vmatpush.msra.mxu0 %v232
    %976 = vmatpush.msra.mxu0 %v231
    %977 = vmatpush.msra.mxu0 %v230
    %978 = vmatmul.f32.gmra.mxu0 %v960
    %v979 = vpop.f32.mrf.mxu0
    %v980 = vadd.f32 %v296, %v979
    %981 = vdwg.mxu0
    %v982 = vmax.f32 %v980, 0.0
    %v984 = vsel %vm270, %v982, 0
    %986 = vmatpush.msra.mxu0 0.0
    %987 = vmatpush.msra.mxu0 0.0
    %988 = vmatpush.msra.mxu0 0.0
    %989 = vmatpush.msra.mxu0 0.0
    %990 = vmatpush.msra.mxu0 0.0
    %991 = vmatpush.msra.mxu0 0.0
    %992 = vmatpush.msra.mxu0 0.0
    %993 = vmatpush.msra.mxu0 0.0
    %994 = vmatpush.msra.mxu0 0.0
    %995 = vmatpush.msra.mxu0 0.0
    %996 = vmatpush.msra.mxu0 0.0
    %997 = vmatpush.msra.mxu0 0.0
    %998 = vmatpush.msra.mxu0 %v238
    %999 = vmatpush.msra.mxu0 %v237
    %1000 = vmatpush.msra.mxu0 %v236
    %1001 = vmatpush.msra.mxu0 %v235
    %1002 = vmatmul.f32.gmra.mxu0 %v984
    %v1003 = vpop.f32.mrf.mxu0
    %v1004 = vadd.f32 %v323, %v1003
    %1005 = vdwg.mxu0
    %v1006 = vstv %s934
    %v1007 = vmul.f32 %v1006, %v1004
    %v1008 = vadd.f32 %v933, %v1007
    %s1009 = scalar_lea.vmem %s1, 24
    %v1010 = vld [vmem:[%s1009] sm:$0xff]
    %s1011 = scalar_lea.vmem %s3, 24
    %v1012 = vld [vmem:[%s1011] sm:$0xff]
    %1014 = vrot.lane.b32.xlu0 %v1010, 32
    %v1015 = vpop.permute.xlu0 %1014
    %v1017 = vsel %vm270, %v1008, %v1015
    %v1019 = vsel %vm361, %v1017, 0
    %1021 = vmatpush.msra.mxu0 0.0
    %1022 = vmatpush.msra.mxu0 0.0
    %1023 = vmatpush.msra.mxu0 0.0
    %1024 = vmatpush.msra.mxu0 0.0
    %1025 = vmatpush.msra.mxu0 0.0
    %1026 = vmatpush.msra.mxu0 0.0
    %1027 = vmatpush.msra.mxu0 0.0
    %1028 = vmatpush.msra.mxu0 0.0
    %1029 = vmatpush.msra.mxu0 0.0
    %1030 = vmatpush.msra.mxu0 0.0
    %1031 = vmatpush.msra.mxu0 0.0
    %1032 = vmatpush.msra.mxu0 %v367
    %1033 = vmatpush.msra.mxu0 %v243
    %1034 = vmatpush.msra.mxu0 %v242
    %1035 = vmatpush.msra.mxu0 %v241
    %1036 = vmatpush.msra.mxu0 %v240
    %1037 = vmatmul.f32.gmra.mxu0 %v1019
    %v1038 = vpop.f32.mrf.mxu0
    %v1039 = vadd.f32 %v359, %v1038
    %1040 = vdwg.mxu0
    %v1041 = vmax.f32 %v1039, 0.0
    %v1043 = vsel %vm393, %v1041, 0
    %1045 = vmatpush.msra.mxu0 0.0
    %1046 = vmatpush.msra.mxu0 0.0
    %1047 = vmatpush.msra.mxu0 0.0
    %1048 = vmatpush.msra.mxu0 0.0
    %1049 = vmatpush.msra.mxu0 0.0
    %1050 = vmatpush.msra.mxu0 0.0
    %1051 = vmatpush.msra.mxu0 0.0
    %1052 = vmatpush.msra.mxu0 0.0
    %1053 = vmatpush.msra.mxu0 %v253
    %1054 = vmatpush.msra.mxu0 %v252
    %1055 = vmatpush.msra.mxu0 %v251
    %1056 = vmatpush.msra.mxu0 %v250
    %1057 = vmatpush.msra.mxu0 %v249
    %1058 = vmatpush.msra.mxu0 %v248
    %1059 = vmatpush.msra.mxu0 %v247
    %1060 = vmatpush.msra.mxu0 %v246
    %1061 = vmatmul.f32.gmra.mxu0 %v1043
    %v1062 = vpop.f32.mrf.mxu0
    %v1063 = vadd.f32 %v391, %v1062
    %1064 = vdwg.mxu0
    %v1065 = vxor.u32 %v1063, 2147483648
    %v1066 = vmul.f32 %v1065, 1.442695
    %v1067 = vpow.pop %v1066
    %v1068 = vadd.f32 %v1067, 1.0
    %v1069 = vrcp.pop %v1068
    %v1070 = vmul.f32 %v1068, %v1069
    %v1071 = vsub.f32 1.0, %v1070
    %v1072 = vmul.f32 %v1069, %v1071
    %v1073 = vadd.f32 %v1069, %v1072
    %vm1074 = vweird.f32 %v1068
    %vm1075 = vweird.f32 %v1069
    %vm1076 = vmor %vm1074, %vm1075
    %v1077 = vsel %vm1076, %v1069, %v1073
    %v1078 = vand.u32 2147483647, %v1068
    %vm1079 = vcmp.eq.f32.partialorder %v1078, 8.507059e+37
    %v1080 = vand.u32 %v1068, 2147483648
    %v1081 = vor.u32 1.1754944e-38, %v1080
    %v1082 = vsel %vm1079, %v1081, %v1077
    %v1083 = vmul.f32 1.0, %v1082
    %1085 = vrot.lane.b32.xlu0 %v1083, 96
    %v1086 = vpop.permute.xlu0 %1085
    %v1088 = vmul.f32 %v1008, %v1086
    %v1089 = vsel %vm270, %v1088, %v1015
    %v1091 = vsel %vm361, %v1089, 0
    %1093 = vmatpush.msra.mxu0 0.0
    %1094 = vmatpush.msra.mxu0 0.0
    %1095 = vmatpush.msra.mxu0 0.0
    %1096 = vmatpush.msra.mxu0 0.0
    %1097 = vmatpush.msra.mxu0 0.0
    %1098 = vmatpush.msra.mxu0 0.0
    %1099 = vmatpush.msra.mxu0 0.0
    %1100 = vmatpush.msra.mxu0 0.0
    %1101 = vmatpush.msra.mxu0 0.0
    %1102 = vmatpush.msra.mxu0 0.0
    %1103 = vmatpush.msra.mxu0 0.0
    %1104 = vmatpush.msra.mxu0 %v449
    %1105 = vmatpush.msra.mxu0 %v258
    %1106 = vmatpush.msra.mxu0 %v257
    %1107 = vmatpush.msra.mxu0 %v256
    %1108 = vmatpush.msra.mxu0 %v255
    %1109 = vmatmul.f32.gmra.mxu0 %v1091
    %v1110 = vpop.f32.mrf.mxu0
    %v1111 = vadd.f32 %v443, %v1110
    %1112 = vdwg.mxu0
    %v1113 = vmax.f32 %v1111, 0.0
    %v1115 = vsel %vm270, %v1113, 0
    %1117 = vmatpush.msra.mxu0 0.0
    %1118 = vmatpush.msra.mxu0 0.0
    %1119 = vmatpush.msra.mxu0 0.0
    %1120 = vmatpush.msra.mxu0 0.0
    %1121 = vmatpush.msra.mxu0 0.0
    %1122 = vmatpush.msra.mxu0 0.0
    %1123 = vmatpush.msra.mxu0 0.0
    %1124 = vmatpush.msra.mxu0 0.0
    %1125 = vmatpush.msra.mxu0 0.0
    %1126 = vmatpush.msra.mxu0 0.0
    %1127 = vmatpush.msra.mxu0 0.0
    %1128 = vmatpush.msra.mxu0 0.0
    %1129 = vmatpush.msra.mxu0 %v264
    %1130 = vmatpush.msra.mxu0 %v263
    %1131 = vmatpush.msra.mxu0 %v262
    %1132 = vmatpush.msra.mxu0 %v261
    %1133 = vmatmul.f32.gmra.mxu0 %v1115
    %v1134 = vpop.f32.mrf.mxu0
    %v1135 = vadd.f32 %v473, %v1134
    %1136 = vdwg.mxu0
    %v1137 = vand.u32 2147483647, %v1135
    %v1138 = vsel %vm191, %v1137, %v1135
    %v1139 = vsub.f32 1.0, %v1083
    %v1140 = vmul.f32 %v1139, %v1138
    %v1141 = vmul.f32 %v1083, %v1008
    %v1142 = vadd.f32 %v1140, %v1141
    %v1143 = vmul.f32 %v1012, %v1142
    %v1144 = vsub.f32 1.0, %v1012
    %v1145 = vmul.f32 %v1144, %v1008
    %v1146 = vadd.f32 %v1143, %v1145
    %s1147 = sld [smem:[#allocation3 + $0x4]]
    %v1149 = vsel %vm270, %v1146, 0
    %1151 = vmatpush.msra.mxu0 0.0
    %1152 = vmatpush.msra.mxu0 0.0
    %1153 = vmatpush.msra.mxu0 0.0
    %1154 = vmatpush.msra.mxu0 0.0
    %1155 = vmatpush.msra.mxu0 0.0
    %1156 = vmatpush.msra.mxu0 0.0
    %1157 = vmatpush.msra.mxu0 0.0
    %1158 = vmatpush.msra.mxu0 0.0
    %1159 = vmatpush.msra.mxu0 0.0
    %1160 = vmatpush.msra.mxu0 0.0
    %1161 = vmatpush.msra.mxu0 0.0
    %1162 = vmatpush.msra.mxu0 0.0
    %1163 = vmatpush.msra.mxu0 %v228
    %1164 = vmatpush.msra.mxu0 %v227
    %1165 = vmatpush.msra.mxu0 %v226
    %1166 = vmatpush.msra.mxu0 %v225
    %1167 = vmatmul.f32.gmra.mxu0 %v1149
    %v1168 = vpop.f32.mrf.mxu0
    %v1169 = vadd.f32 %v268, %v1168
    %1170 = vdwg.mxu0
    %v1171 = vmax.f32 %v1169, 0.0
    %v1173 = vsel %vm270, %v1171, 0
    %1175 = vmatpush.msra.mxu0 0.0
    %1176 = vmatpush.msra.mxu0 0.0
    %1177 = vmatpush.msra.mxu0 0.0
    %1178 = vmatpush.msra.mxu0 0.0
    %1179 = vmatpush.msra.mxu0 0.0
    %1180 = vmatpush.msra.mxu0 0.0
    %1181 = vmatpush.msra.mxu0 0.0
    %1182 = vmatpush.msra.mxu0 0.0
    %1183 = vmatpush.msra.mxu0 0.0
    %1184 = vmatpush.msra.mxu0 0.0
    %1185 = vmatpush.msra.mxu0 0.0
    %1186 = vmatpush.msra.mxu0 0.0
    %1187 = vmatpush.msra.mxu0 %v233
    %1188 = vmatpush.msra.mxu0 %v232
    %1189 = vmatpush.msra.mxu0 %v231
    %1190 = vmatpush.msra.mxu0 %v230
    %1191 = vmatmul.f32.gmra.mxu0 %v1173
    %v1192 = vpop.f32.mrf.mxu0
    %v1193 = vadd.f32 %v296, %v1192
    %1194 = vdwg.mxu0
    %v1195 = vmax.f32 %v1193, 0.0
    %v1197 = vsel %vm270, %v1195, 0
    %1199 = vmatpush.msra.mxu0 0.0
    %1200 = vmatpush.msra.mxu0 0.0
    %1201 = vmatpush.msra.mxu0 0.0
    %1202 = vmatpush.msra.mxu0 0.0
    %1203 = vmatpush.msra.mxu0 0.0
    %1204 = vmatpush.msra.mxu0 0.0
    %1205 = vmatpush.msra.mxu0 0.0
    %1206 = vmatpush.msra.mxu0 0.0
    %1207 = vmatpush.msra.mxu0 0.0
    %1208 = vmatpush.msra.mxu0 0.0
    %1209 = vmatpush.msra.mxu0 0.0
    %1210 = vmatpush.msra.mxu0 0.0
    %1211 = vmatpush.msra.mxu0 %v238
    %1212 = vmatpush.msra.mxu0 %v237
    %1213 = vmatpush.msra.mxu0 %v236
    %1214 = vmatpush.msra.mxu0 %v235
    %1215 = vmatmul.f32.gmra.mxu0 %v1197
    %v1216 = vpop.f32.mrf.mxu0
    %v1217 = vadd.f32 %v323, %v1216
    %1218 = vdwg.mxu0
    %v1219 = vstv %s1147
    %v1220 = vmul.f32 %v1219, %v1217
    %v1221 = vadd.f32 %v1146, %v1220
    %s1222 = scalar_lea.vmem %s1, 32
    %v1223 = vld [vmem:[%s1222] sm:$0xff]
    %s1224 = scalar_lea.vmem %s3, 32
    %v1225 = vld [vmem:[%s1224] sm:$0xff]
    %1227 = vrot.lane.b32.xlu0 %v1223, 32
    %v1228 = vpop.permute.xlu0 %1227
    %v1230 = vsel %vm270, %v1221, %v1228
    %v1232 = vsel %vm361, %v1230, 0
    %1234 = vmatpush.msra.mxu0 0.0
    %1235 = vmatpush.msra.mxu0 0.0
    %1236 = vmatpush.msra.mxu0 0.0
    %1237 = vmatpush.msra.mxu0 0.0
    %1238 = vmatpush.msra.mxu0 0.0
    %1239 = vmatpush.msra.mxu0 0.0
    %1240 = vmatpush.msra.mxu0 0.0
    %1241 = vmatpush.msra.mxu0 0.0
    %1242 = vmatpush.msra.mxu0 0.0
    %1243 = vmatpush.msra.mxu0 0.0
    %1244 = vmatpush.msra.mxu0 0.0
    %1245 = vmatpush.msra.mxu0 %v367
    %1246 = vmatpush.msra.mxu0 %v243
    %1247 = vmatpush.msra.mxu0 %v242
    %1248 = vmatpush.msra.mxu0 %v241
    %1249 = vmatpush.msra.mxu0 %v240
    %1250 = vmatmul.f32.gmra.mxu0 %v1232
    %v1251 = vpop.f32.mrf.mxu0
    %v1252 = vadd.f32 %v359, %v1251
    %1253 = vdwg.mxu0
    %v1254 = vmax.f32 %v1252, 0.0
    %v1256 = vsel %vm393, %v1254, 0
    %1258 = vmatpush.msra.mxu0 0.0
    %1259 = vmatpush.msra.mxu0 0.0
    %1260 = vmatpush.msra.mxu0 0.0
    %1261 = vmatpush.msra.mxu0 0.0
    %1262 = vmatpush.msra.mxu0 0.0
    %1263 = vmatpush.msra.mxu0 0.0
    %1264 = vmatpush.msra.mxu0 0.0
    %1265 = vmatpush.msra.mxu0 0.0
    %1266 = vmatpush.msra.mxu0 %v253
    %1267 = vmatpush.msra.mxu0 %v252
    %1268 = vmatpush.msra.mxu0 %v251
    %1269 = vmatpush.msra.mxu0 %v250
    %1270 = vmatpush.msra.mxu0 %v249
    %1271 = vmatpush.msra.mxu0 %v248
    %1272 = vmatpush.msra.mxu0 %v247
    %1273 = vmatpush.msra.mxu0 %v246
    %1274 = vmatmul.f32.gmra.mxu0 %v1256
    %v1275 = vpop.f32.mrf.mxu0
    %v1276 = vadd.f32 %v391, %v1275
    %1277 = vdwg.mxu0
    %v1278 = vxor.u32 %v1276, 2147483648
    %v1279 = vmul.f32 %v1278, 1.442695
    %v1280 = vpow.pop %v1279
    %v1281 = vadd.f32 %v1280, 1.0
    %v1282 = vrcp.pop %v1281
    %v1283 = vmul.f32 %v1281, %v1282
    %v1284 = vsub.f32 1.0, %v1283
    %v1285 = vmul.f32 %v1282, %v1284
    %v1286 = vadd.f32 %v1282, %v1285
    %vm1287 = vweird.f32 %v1281
    %vm1288 = vweird.f32 %v1282
    %vm1289 = vmor %vm1287, %vm1288
    %v1290 = vsel %vm1289, %v1282, %v1286
    %v1291 = vand.u32 2147483647, %v1281
    %vm1292 = vcmp.eq.f32.partialorder %v1291, 8.507059e+37
    %v1293 = vand.u32 %v1281, 2147483648
    %v1294 = vor.u32 1.1754944e-38, %v1293
    %v1295 = vsel %vm1292, %v1294, %v1290
    %v1296 = vmul.f32 1.0, %v1295
    %1298 = vrot.lane.b32.xlu0 %v1296, 96
    %v1299 = vpop.permute.xlu0 %1298
    %v1301 = vmul.f32 %v1221, %v1299
    %v1302 = vsel %vm270, %v1301, %v1228
    %v1304 = vsel %vm361, %v1302, 0
    %1306 = vmatpush.msra.mxu0 0.0
    %1307 = vmatpush.msra.mxu0 0.0
    %1308 = vmatpush.msra.mxu0 0.0
    %1309 = vmatpush.msra.mxu0 0.0
    %1310 = vmatpush.msra.mxu0 0.0
    %1311 = vmatpush.msra.mxu0 0.0
    %1312 = vmatpush.msra.mxu0 0.0
    %1313 = vmatpush.msra.mxu0 0.0
    %1314 = vmatpush.msra.mxu0 0.0
    %1315 = vmatpush.msra.mxu0 0.0
    %1316 = vmatpush.msra.mxu0 0.0
    %1317 = vmatpush.msra.mxu0 %v449
    %1318 = vmatpush.msra.mxu0 %v258
    %1319 = vmatpush.msra.mxu0 %v257
    %1320 = vmatpush.msra.mxu0 %v256
    %1321 = vmatpush.msra.mxu0 %v255
    %1322 = vmatmul.f32.gmra.mxu0 %v1304
    %v1323 = vpop.f32.mrf.mxu0
    %v1324 = vadd.f32 %v443, %v1323
    %1325 = vdwg.mxu0
    %v1326 = vmax.f32 %v1324, 0.0
    %v1328 = vsel %vm270, %v1326, 0
    %1330 = vmatpush.msra.mxu0 0.0
    %1331 = vmatpush.msra.mxu0 0.0
    %1332 = vmatpush.msra.mxu0 0.0
    %1333 = vmatpush.msra.mxu0 0.0
    %1334 = vmatpush.msra.mxu0 0.0
    %1335 = vmatpush.msra.mxu0 0.0
    %1336 = vmatpush.msra.mxu0 0.0
    %1337 = vmatpush.msra.mxu0 0.0
    %1338 = vmatpush.msra.mxu0 0.0
    %1339 = vmatpush.msra.mxu0 0.0
    %1340 = vmatpush.msra.mxu0 0.0
    %1341 = vmatpush.msra.mxu0 0.0
    %1342 = vmatpush.msra.mxu0 %v264
    %1343 = vmatpush.msra.mxu0 %v263
    %1344 = vmatpush.msra.mxu0 %v262
    %1345 = vmatpush.msra.mxu0 %v261
    %1346 = vmatmul.f32.gmra.mxu0 %v1328
    %v1347 = vpop.f32.mrf.mxu0
    %v1348 = vadd.f32 %v473, %v1347
    %1349 = vdwg.mxu0
    %v1350 = vand.u32 2147483647, %v1348
    %v1351 = vsel %vm191, %v1350, %v1348
    %v1352 = vsub.f32 1.0, %v1296
    %v1353 = vmul.f32 %v1352, %v1351
    %v1354 = vmul.f32 %v1296, %v1221
    %v1355 = vadd.f32 %v1353, %v1354
    %v1356 = vmul.f32 %v1225, %v1355
    %v1357 = vsub.f32 1.0, %v1225
    %v1358 = vmul.f32 %v1357, %v1221
    %v1359 = vadd.f32 %v1356, %v1358
    %s1360 = sld [smem:[#allocation3 + $0x5]]
    %v1362 = vsel %vm270, %v1359, 0
    %1364 = vmatpush.msra.mxu0 0.0
    %1365 = vmatpush.msra.mxu0 0.0
    %1366 = vmatpush.msra.mxu0 0.0
    %1367 = vmatpush.msra.mxu0 0.0
    %1368 = vmatpush.msra.mxu0 0.0
    %1369 = vmatpush.msra.mxu0 0.0
    %1370 = vmatpush.msra.mxu0 0.0
    %1371 = vmatpush.msra.mxu0 0.0
    %1372 = vmatpush.msra.mxu0 0.0
    %1373 = vmatpush.msra.mxu0 0.0
    %1374 = vmatpush.msra.mxu0 0.0
    %1375 = vmatpush.msra.mxu0 0.0
    %1376 = vmatpush.msra.mxu0 %v228
    %1377 = vmatpush.msra.mxu0 %v227
    %1378 = vmatpush.msra.mxu0 %v226
    %1379 = vmatpush.msra.mxu0 %v225
    %1380 = vmatmul.f32.gmra.mxu0 %v1362
    %v1381 = vpop.f32.mrf.mxu0
    %v1382 = vadd.f32 %v268, %v1381
    %1383 = vdwg.mxu0
    %v1384 = vmax.f32 %v1382, 0.0
    %v1386 = vsel %vm270, %v1384, 0
    %1388 = vmatpush.msra.mxu0 0.0
    %1389 = vmatpush.msra.mxu0 0.0
    %1390 = vmatpush.msra.mxu0 0.0
    %1391 = vmatpush.msra.mxu0 0.0
    %1392 = vmatpush.msra.mxu0 0.0
    %1393 = vmatpush.msra.mxu0 0.0
    %1394 = vmatpush.msra.mxu0 0.0
    %1395 = vmatpush.msra.mxu0 0.0
    %1396 = vmatpush.msra.mxu0 0.0
    %1397 = vmatpush.msra.mxu0 0.0
    %1398 = vmatpush.msra.mxu0 0.0
    %1399 = vmatpush.msra.mxu0 0.0
    %1400 = vmatpush.msra.mxu0 %v233
    %1401 = vmatpush.msra.mxu0 %v232
    %1402 = vmatpush.msra.mxu0 %v231
    %1403 = vmatpush.msra.mxu0 %v230
    %1404 = vmatmul.f32.gmra.mxu0 %v1386
    %v1405 = vpop.f32.mrf.mxu0
    %v1406 = vadd.f32 %v296, %v1405
    %1407 = vdwg.mxu0
    %v1408 = vmax.f32 %v1406, 0.0
    %v1410 = vsel %vm270, %v1408, 0
    %1412 = vmatpush.msra.mxu0 0.0
    %1413 = vmatpush.msra.mxu0 0.0
    %1414 = vmatpush.msra.mxu0 0.0
    %1415 = vmatpush.msra.mxu0 0.0
    %1416 = vmatpush.msra.mxu0 0.0
    %1417 = vmatpush.msra.mxu0 0.0
    %1418 = vmatpush.msra.mxu0 0.0
    %1419 = vmatpush.msra.mxu0 0.0
    %1420 = vmatpush.msra.mxu0 0.0
    %1421 = vmatpush.msra.mxu0 0.0
    %1422 = vmatpush.msra.mxu0 0.0
    %1423 = vmatpush.msra.mxu0 0.0
    %1424 = vmatpush.msra.mxu0 %v238
    %1425 = vmatpush.msra.mxu0 %v237
    %1426 = vmatpush.msra.mxu0 %v236
    %1427 = vmatpush.msra.mxu0 %v235
    %1428 = vmatmul.f32.gmra.mxu0 %v1410
    %v1429 = vpop.f32.mrf.mxu0
    %v1430 = vadd.f32 %v323, %v1429
    %1431 = vdwg.mxu0
    %v1432 = vstv %s1360
    %v1433 = vmul.f32 %v1432, %v1430
    %v1434 = vadd.f32 %v1359, %v1433
    %s1435 = scalar_lea.vmem %s1, 40
    %v1436 = vld [vmem:[%s1435] sm:$0xff]
    %s1437 = scalar_lea.vmem %s3, 40
    %v1438 = vld [vmem:[%s1437] sm:$0xff]
    %1440 = vrot.lane.b32.xlu0 %v1436, 32
    %v1441 = vpop.permute.xlu0 %1440
    %v1443 = vsel %vm270, %v1434, %v1441
    %v1445 = vsel %vm361, %v1443, 0
    %1447 = vmatpush.msra.mxu0 0.0
    %1448 = vmatpush.msra.mxu0 0.0
    %1449 = vmatpush.msra.mxu0 0.0
    %1450 = vmatpush.msra.mxu0 0.0
    %1451 = vmatpush.msra.mxu0 0.0
    %1452 = vmatpush.msra.mxu0 0.0
    %1453 = vmatpush.msra.mxu0 0.0
    %1454 = vmatpush.msra.mxu0 0.0
    %1455 = vmatpush.msra.mxu0 0.0
    %1456 = vmatpush.msra.mxu0 0.0
    %1457 = vmatpush.msra.mxu0 0.0
    %1458 = vmatpush.msra.mxu0 %v367
    %1459 = vmatpush.msra.mxu0 %v243
    %1460 = vmatpush.msra.mxu0 %v242
    %1461 = vmatpush.msra.mxu0 %v241
    %1462 = vmatpush.msra.mxu0 %v240
    %1463 = vmatmul.f32.gmra.mxu0 %v1445
    %v1464 = vpop.f32.mrf.mxu0
    %v1465 = vadd.f32 %v359, %v1464
    %1466 = vdwg.mxu0
    %v1467 = vmax.f32 %v1465, 0.0
    %v1469 = vsel %vm393, %v1467, 0
    %1471 = vmatpush.msra.mxu0 0.0
    %1472 = vmatpush.msra.mxu0 0.0
    %1473 = vmatpush.msra.mxu0 0.0
    %1474 = vmatpush.msra.mxu0 0.0
    %1475 = vmatpush.msra.mxu0 0.0
    %1476 = vmatpush.msra.mxu0 0.0
    %1477 = vmatpush.msra.mxu0 0.0
    %1478 = vmatpush.msra.mxu0 0.0
    %1479 = vmatpush.msra.mxu0 %v253
    %1480 = vmatpush.msra.mxu0 %v252
    %1481 = vmatpush.msra.mxu0 %v251
    %1482 = vmatpush.msra.mxu0 %v250
    %1483 = vmatpush.msra.mxu0 %v249
    %1484 = vmatpush.msra.mxu0 %v248
    %1485 = vmatpush.msra.mxu0 %v247
    %1486 = vmatpush.msra.mxu0 %v246
    %1487 = vmatmul.f32.gmra.mxu0 %v1469
    %v1488 = vpop.f32.mrf.mxu0
    %v1489 = vadd.f32 %v391, %v1488
    %1490 = vdwg.mxu0
    %v1491 = vxor.u32 %v1489, 2147483648
    %v1492 = vmul.f32 %v1491, 1.442695
    %v1493 = vpow.pop %v1492
    %v1494 = vadd.f32 %v1493, 1.0
    %v1495 = vrcp.pop %v1494
    %v1496 = vmul.f32 %v1494, %v1495
    %v1497 = vsub.f32 1.0, %v1496
    %v1498 = vmul.f32 %v1495, %v1497
    %v1499 = vadd.f32 %v1495, %v1498
    %vm1500 = vweird.f32 %v1494
    %vm1501 = vweird.f32 %v1495
    %vm1502 = vmor %vm1500, %vm1501
    %v1503 = vsel %vm1502, %v1495, %v1499
    %v1504 = vand.u32 2147483647, %v1494
    %vm1505 = vcmp.eq.f32.partialorder %v1504, 8.507059e+37
    %v1506 = vand.u32 %v1494, 2147483648
    %v1507 = vor.u32 1.1754944e-38, %v1506
    %v1508 = vsel %vm1505, %v1507, %v1503
    %v1509 = vmul.f32 1.0, %v1508
    %1511 = vrot.lane.b32.xlu0 %v1509, 96
    %v1512 = vpop.permute.xlu0 %1511
    %v1514 = vmul.f32 %v1434, %v1512
    %v1515 = vsel %vm270, %v1514, %v1441
    %v1517 = vsel %vm361, %v1515, 0
    %1519 = vmatpush.msra.mxu0 0.0
    %1520 = vmatpush.msra.mxu0 0.0
    %1521 = vmatpush.msra.mxu0 0.0
    %1522 = vmatpush.msra.mxu0 0.0
    %1523 = vmatpush.msra.mxu0 0.0
    %1524 = vmatpush.msra.mxu0 0.0
    %1525 = vmatpush.msra.mxu0 0.0
    %1526 = vmatpush.msra.mxu0 0.0
    %1527 = vmatpush.msra.mxu0 0.0
    %1528 = vmatpush.msra.mxu0 0.0
    %1529 = vmatpush.msra.mxu0 0.0
    %1530 = vmatpush.msra.mxu0 %v449
    %1531 = vmatpush.msra.mxu0 %v258
    %1532 = vmatpush.msra.mxu0 %v257
    %1533 = vmatpush.msra.mxu0 %v256
    %1534 = vmatpush.msra.mxu0 %v255
    %1535 = vmatmul.f32.gmra.mxu0 %v1517
    %v1536 = vpop.f32.mrf.mxu0
    %v1537 = vadd.f32 %v443, %v1536
    %1538 = vdwg.mxu0
    %v1539 = vmax.f32 %v1537, 0.0
    %v1541 = vsel %vm270, %v1539, 0
    %1543 = vmatpush.msra.mxu0 0.0
    %1544 = vmatpush.msra.mxu0 0.0
    %1545 = vmatpush.msra.mxu0 0.0
    %1546 = vmatpush.msra.mxu0 0.0
    %1547 = vmatpush.msra.mxu0 0.0
    %1548 = vmatpush.msra.mxu0 0.0
    %1549 = vmatpush.msra.mxu0 0.0
    %1550 = vmatpush.msra.mxu0 0.0
    %1551 = vmatpush.msra.mxu0 0.0
    %1552 = vmatpush.msra.mxu0 0.0
    %1553 = vmatpush.msra.mxu0 0.0
    %1554 = vmatpush.msra.mxu0 0.0
    %1555 = vmatpush.msra.mxu0 %v264
    %1556 = vmatpush.msra.mxu0 %v263
    %1557 = vmatpush.msra.mxu0 %v262
    %1558 = vmatpush.msra.mxu0 %v261
    %1559 = vmatmul.f32.gmra.mxu0 %v1541
    %v1560 = vpop.f32.mrf.mxu0
    %v1561 = vadd.f32 %v473, %v1560
    %1562 = vdwg.mxu0
    %v1563 = vand.u32 2147483647, %v1561
    %v1564 = vsel %vm191, %v1563, %v1561
    %v1565 = vsub.f32 1.0, %v1509
    %v1566 = vmul.f32 %v1565, %v1564
    %v1567 = vmul.f32 %v1509, %v1434
    %v1568 = vadd.f32 %v1566, %v1567
    %v1569 = vmul.f32 %v1438, %v1568
    %v1570 = vsub.f32 1.0, %v1438
    %v1571 = vmul.f32 %v1570, %v1434
    %v1572 = vadd.f32 %v1569, %v1571
    %v1573 = vld [vmem:[%s43] sm:$0xff]
    %v1574 = vld [vmem:[%s43 + $0x8] sm:$0xff]
    %v1575 = vld [vmem:[%s43 + $0x10] sm:$0xff]
    %v1576 = vld [vmem:[%s43 + $0x18] sm:$0xff]
    %v1577 = vld [vmem:[%s45] sm:$0x1]
    %v1579 = vperm.slane %v1577, 0
    %v1582 = vsel %vm270, %v1572, 0
    %1584 = vmatpush.msra.mxu0 0.0
    %1585 = vmatpush.msra.mxu0 0.0
    %1586 = vmatpush.msra.mxu0 0.0
    %1587 = vmatpush.msra.mxu0 0.0
    %1588 = vmatpush.msra.mxu0 0.0
    %1589 = vmatpush.msra.mxu0 0.0
    %1590 = vmatpush.msra.mxu0 0.0
    %1591 = vmatpush.msra.mxu0 0.0
    %1592 = vmatpush.msra.mxu0 0.0
    %1593 = vmatpush.msra.mxu0 0.0
    %1594 = vmatpush.msra.mxu0 0.0
    %1595 = vmatpush.msra.mxu0 0.0
    %1596 = vmatpush.msra.mxu0 %v1576
    %1597 = vmatpush.msra.mxu0 %v1575
    %1598 = vmatpush.msra.mxu0 %v1574
    %1599 = vmatpush.msra.mxu0 %v1573
    %1600 = vmatmul.f32.gmra.mxu0 %v1582
    %v1601 = vpop.f32.mrf.mxu0
    %v1602 = vadd.f32 %v1579, %v1601
    %1603 = vdwg.mxu0
    %v1604 = vmax.f32 %v1602, 0.0
    %v1605 = vld [vmem:[%s47] sm:$0xff]
    %v1606 = vld [vmem:[%s47 + $0x8] sm:$0xff]
    %v1607 = vld [vmem:[%s47 + $0x10] sm:$0xff]
    %v1608 = vld [vmem:[%s47 + $0x18] sm:$0xff]
    %v1609 = vld [vmem:[%s47 + $0x20] sm:$0xff]
    %v1610 = vld [vmem:[%s47 + $0x28] sm:$0xff]
    %v1611 = vld [vmem:[%s47 + $0x30] sm:$0xff]
    %v1612 = vld [vmem:[%s47 + $0x38] sm:$0xff]
    %v1613 = vld [vmem:[%s47 + $0x40] sm:$0xff]
    %v1614 = vld [vmem:[%s47 + $0x48] sm:$0xff]
    %v1615 = vld [vmem:[%s47 + $0x50] sm:$0xff]
    %v1616 = vld [vmem:[%s47 + $0x58] sm:$0xff]
    %v1617 = vld [vmem:[%s47 + $0x60] sm:$0xf]
    %v1618 = vld [vmem:[%s49] sm:$0x1]
    %v1620 = vperm.slane %v1618, 0
    %vm1622 = vcmask 818176
    %v1624 = vsel %vm1622, %v1604, 0
    %v1627 = vsel %vm365, %v1617, 0
    %1629 = vmatpush.msra.mxu0 0.0
    %1630 = vmatpush.msra.mxu0 0.0
    %1631 = vmatpush.msra.mxu0 0.0
    %1632 = vmatpush.msra.mxu0 %v1627
    %1633 = vmatpush.msra.mxu0 %v1616
    %1634 = vmatpush.msra.mxu0 %v1615
    %1635 = vmatpush.msra.mxu0 %v1614
    %1636 = vmatpush.msra.mxu0 %v1613
    %1637 = vmatpush.msra.mxu0 %v1612
    %1638 = vmatpush.msra.mxu0 %v1611
    %1639 = vmatpush.msra.mxu0 %v1610
    %1640 = vmatpush.msra.mxu0 %v1609
    %1641 = vmatpush.msra.mxu0 %v1608
    %1642 = vmatpush.msra.mxu0 %v1607
    %1643 = vmatpush.msra.mxu0 %v1606
    %1644 = vmatpush.msra.mxu0 %v1605
    %1645 = vmatmul.f32.gmra.mxu0 %v1624
    %v1646 = vpop.f32.mrf.mxu0
    %v1647 = vadd.f32 %v1620, %v1646
    %1648 = vdwg.mxu0
    %v1649 = vand.u32 2147483647, %v1647
    %v1650 = vld [vmem:[%s67] sm:$0xff]
    %v1651 = vld [vmem:[%s67 + $0x8] sm:$0xff]
    %v1652 = vld [vmem:[%s67 + $0x10] sm:$0xff]
    %v1653 = vld [vmem:[%s67 + $0x18] sm:$0xff]
    %v1654 = vld [vmem:[%s67 + $0x20] sm:$0xff]
    %v1655 = vld [vmem:[%s67 + $0x28] sm:$0xff]
    %v1656 = vld [vmem:[%s67 + $0x30] sm:$0xff]
    %v1657 = vld [vmem:[%s67 + $0x38] sm:$0xff]
    %v1658 = vld [vmem:[%s67 + $0x40] sm:$0xff]
    %v1659 = vld [vmem:[%s67 + $0x48] sm:$0xff]
    %v1660 = vld [vmem:[%s67 + $0x50] sm:$0xff]
    %v1661 = vld [vmem:[%s67 + $0x58] sm:$0xff]
    %v1662 = vld [vmem:[%s67 + $0x60] sm:$0xf]
    %v1663 = vld [vmem:[%s69] sm:$0x1]
    %v1665 = vperm.slane %v1663, 0
    %v1668 = vsel %vm365, %v1662, 0
    %1670 = vmatpush.msra.mxu0 0.0
    %1671 = vmatpush.msra.mxu0 0.0
    %1672 = vmatpush.msra.mxu0 0.0
    %1673 = vmatpush.msra.mxu0 %v1668
    %1674 = vmatpush.msra.mxu0 %v1661
    %1675 = vmatpush.msra.mxu0 %v1660
    %1676 = vmatpush.msra.mxu0 %v1659
    %1677 = vmatpush.msra.mxu0 %v1658
    %1678 = vmatpush.msra.mxu0 %v1657
    %1679 = vmatpush.msra.mxu0 %v1656
    %1680 = vmatpush.msra.mxu0 %v1655
    %1681 = vmatpush.msra.mxu0 %v1654
    %1682 = vmatpush.msra.mxu0 %v1653
    %1683 = vmatpush.msra.mxu0 %v1652
    %1684 = vmatpush.msra.mxu0 %v1651
    %1685 = vmatpush.msra.mxu0 %v1650
    %1686 = vmatmul.f32.gmra.mxu0 %v1624
    %v1687 = vpop.f32.mrf.mxu0
    %v1688 = vadd.f32 %v1665, %v1687
    %1689 = vdwg.mxu0
    %v1690 = vmax.f32 %v1688, 0.0
    %v1691 = vld [vmem:[%s71] sm:$0xff]
    %v1692 = vld [vmem:[%s71 + $0x8] sm:$0xff]
    %v1693 = vld [vmem:[%s71 + $0x10] sm:$0xff]
    %v1694 = vld [vmem:[%s71 + $0x18] sm:$0xff]
    %v1695 = vld [vmem:[%s71 + $0x20] sm:$0xff]
    %v1696 = vld [vmem:[%s71 + $0x28] sm:$0xff]
    %v1697 = vld [vmem:[%s71 + $0x30] sm:$0x3]
    %v1698 = vld [vmem:[%s73] sm:$0x1]
    %v1700 = vperm.slane %v1698, 0
    %vm1702 = vcmask 408576
    %v1704 = vsel %vm1702, %v1690, 0
    %vm1706 = vcmask 1041408
    %v1708 = vsel %vm1706, %v1697, 0
    %1710 = vmatpush.msra.mxu0 0.0
    %1711 = vmatpush.msra.mxu0 0.0
    %1712 = vmatpush.msra.mxu0 0.0
    %1713 = vmatpush.msra.mxu0 0.0
    %1714 = vmatpush.msra.mxu0 0.0
    %1715 = vmatpush.msra.mxu0 0.0
    %1716 = vmatpush.msra.mxu0 0.0
    %1717 = vmatpush.msra.mxu0 0.0
    %1718 = vmatpush.msra.mxu0 0.0
    %1719 = vmatpush.msra.mxu0 %v1708
    %1720 = vmatpush.msra.mxu0 %v1696
    %1721 = vmatpush.msra.mxu0 %v1695
    %1722 = vmatpush.msra.mxu0 %v1694
    %1723 = vmatpush.msra.mxu0 %v1693
    %1724 = vmatpush.msra.mxu0 %v1692
    %1725 = vmatpush.msra.mxu0 %v1691
    %1726 = vmatmul.f32.gmra.mxu0 %v1704
    %v1727 = vpop.f32.mrf.mxu0
    %v1728 = vadd.f32 %v1700, %v1727
    %1729 = vdwg.mxu0
    %v1730 = vmax.f32 %v1728, 0.0
    %v1731 = vld [vmem:[%s75] sm:$0xff]
    %v1732 = vld [vmem:[%s75 + $0x8] sm:$0xff]
    %v1733 = vld [vmem:[%s75 + $0x10] sm:$0xff]
    %v1734 = vld [vmem:[%s75 + $0x18] sm:$0xff]
    %v1735 = vld [vmem:[%s75 + $0x20] sm:$0xff]
    %v1736 = vld [vmem:[%s75 + $0x28] sm:$0xff]
    %v1737 = vld [vmem:[%s75 + $0x30] sm:$0x3]
    %v1738 = vld [vmem:[#allocation2] sm:$0x1]
    %v1740 = vperm.slane %v1738, 0
    %v1743 = vsel %vm1702, %v1730, 0
    %v1746 = vsel %vm1706, %v1737, 0
    %1748 = vmatpush.msra.mxu0 0.0
    %1749 = vmatpush.msra.mxu0 0.0
    %1750 = vmatpush.msra.mxu0 0.0
    %1751 = vmatpush.msra.mxu0 0.0
    %1752 = vmatpush.msra.mxu0 0.0
    %1753 = vmatpush.msra.mxu0 0.0
    %1754 = vmatpush.msra.mxu0 0.0
    %1755 = vmatpush.msra.mxu0 0.0
    %1756 = vmatpush.msra.mxu0 0.0
    %1757 = vmatpush.msra.mxu0 %v1746
    %1758 = vmatpush.msra.mxu0 %v1736
    %1759 = vmatpush.msra.mxu0 %v1735
    %1760 = vmatpush.msra.mxu0 %v1734
    %1761 = vmatpush.msra.mxu0 %v1733
    %1762 = vmatpush.msra.mxu0 %v1732
    %1763 = vmatpush.msra.mxu0 %v1731
    %1764 = vmatmul.f32.gmra.mxu0 %v1743
    %v1765 = vpop.f32.mrf.mxu0
    %v1766 = vadd.f32 %v1740, %v1765
    %1767 = vdwg.mxu0
    %v1768 = vld [vmem:[%s51] sm:$0xff]
    %v1769 = vld [vmem:[%s53] sm:$0x1]
    %v1770 = vld [vmem:[%s55] sm:$0xff]
    %v1771 = vld [vmem:[%s55 + $0x8] sm:$0xff]
    %v1772 = vld [vmem:[%s55 + $0x10] sm:$0xff]
    %v1773 = vld [vmem:[%s55 + $0x18] sm:$0xff]
    %v1774 = vld [vmem:[%s57] sm:$0x1]
    %v1775 = vld [vmem:[%s59] sm:$0xff]
    %v1776 = vld [vmem:[%s59 + $0x8] sm:$0xff]
    %v1777 = vld [vmem:[%s59 + $0x10] sm:$0xff]
    %v1778 = vld [vmem:[%s59 + $0x18] sm:$0xff]
    %v1779 = vld [vmem:[%s61] sm:$0x1]
    %v1781 = vperm.slane %v1769, 0
    %v1784 = vsel %vm198, %v1647, 0
    %1786 = vmatpush.msra.mxu0 0.0
    %1787 = vmatpush.msra.mxu0 0.0
    %1788 = vmatpush.msra.mxu0 0.0
    %1789 = vmatpush.msra.mxu0 0.0
    %1790 = vmatpush.msra.mxu0 0.0
    %1791 = vmatpush.msra.mxu0 0.0
    %1792 = vmatpush.msra.mxu0 0.0
    %1793 = vmatpush.msra.mxu0 0.0
    %1794 = vmatpush.msra.mxu0 0.0
    %1795 = vmatpush.msra.mxu0 0.0
    %1796 = vmatpush.msra.mxu0 0.0
    %1797 = vmatpush.msra.mxu0 0.0
    %1798 = vmatpush.msra.mxu0 0.0
    %1799 = vmatpush.msra.mxu0 0.0
    %1800 = vmatpush.msra.mxu0 0.0
    %1801 = vmatpush.msra.mxu0 %v1768
    %1802 = vmatmul.f32.gmra.mxu0 %v1784
    %v1803 = vpop.f32.mrf.mxu0
    %v1804 = vadd.f32 %v1781, %v1803
    %1805 = vdwg.mxu0
    %v1806 = vmax.f32 %v1804, 0.0
    %v1808 = vperm.slane %v1774, 0
    %v1811 = vsel %vm270, %v1806, 0
    %1813 = vmatpush.msra.mxu0 0.0
    %1814 = vmatpush.msra.mxu0 0.0
    %1815 = vmatpush.msra.mxu0 0.0
    %1816 = vmatpush.msra.mxu0 0.0
    %1817 = vmatpush.msra.mxu0 0.0
    %1818 = vmatpush.msra.mxu0 0.0
    %1819 = vmatpush.msra.mxu0 0.0
    %1820 = vmatpush.msra.mxu0 0.0
    %1821 = vmatpush.msra.mxu0 0.0
    %1822 = vmatpush.msra.mxu0 0.0
    %1823 = vmatpush.msra.mxu0 0.0
    %1824 = vmatpush.msra.mxu0 0.0
    %1825 = vmatpush.msra.mxu0 %v1773
    %1826 = vmatpush.msra.mxu0 %v1772
    %1827 = vmatpush.msra.mxu0 %v1771
    %1828 = vmatpush.msra.mxu0 %v1770
    %1829 = vmatmul.f32.gmra.mxu0 %v1811
    %v1830 = vpop.f32.mrf.mxu0
    %v1831 = vadd.f32 %v1808, %v1830
    %1832 = vdwg.mxu0
    %v1833 = vmax.f32 %v1831, 0.0
    %s1834 = sld [smem:[#allocation5 + $0x1]]
    %v1836 = vperm.slane %v1779, 0
    %v1839 = vsel %vm270, %v1833, 0
    %1841 = vmatpush.msra.mxu0 0.0
    %1842 = vmatpush.msra.mxu0 0.0
    %1843 = vmatpush.msra.mxu0 0.0
    %1844 = vmatpush.msra.mxu0 0.0
    %1845 = vmatpush.msra.mxu0 0.0
    %1846 = vmatpush.msra.mxu0 0.0
    %1847 = vmatpush.msra.mxu0 0.0
    %1848 = vmatpush.msra.mxu0 0.0
    %1849 = vmatpush.msra.mxu0 0.0
    %1850 = vmatpush.msra.mxu0 0.0
    %1851 = vmatpush.msra.mxu0 0.0
    %1852 = vmatpush.msra.mxu0 0.0
    %1853 = vmatpush.msra.mxu0 %v1778
    %1854 = vmatpush.msra.mxu0 %v1777
    %1855 = vmatpush.msra.mxu0 %v1776
    %1856 = vmatpush.msra.mxu0 %v1775
    %1857 = vmatmul.f32.gmra.mxu0 %v1839
    %v1858 = vpop.f32.mrf.mxu0
    %v1859 = vadd.f32 %v1836, %v1858
    %1860 = vdwg.mxu0
    %v1861 = vstv %s1834
    %v1862 = vmul.f32 %v1861, %v1859
    %v1863 = vadd.f32 %v1647, %v1862
    %v1865 = vsel %vm198, %v1863, 0
    %1867 = vmatpush.msra.mxu0 0.0
    %1868 = vmatpush.msra.mxu0 0.0
    %1869 = vmatpush.msra.mxu0 0.0
    %1870 = vmatpush.msra.mxu0 0.0
    %1871 = vmatpush.msra.mxu0 0.0
    %1872 = vmatpush.msra.mxu0 0.0
    %1873 = vmatpush.msra.mxu0 0.0
    %1874 = vmatpush.msra.mxu0 0.0
    %1875 = vmatpush.msra.mxu0 0.0
    %1876 = vmatpush.msra.mxu0 0.0
    %1877 = vmatpush.msra.mxu0 0.0
    %1878 = vmatpush.msra.mxu0 0.0
    %1879 = vmatpush.msra.mxu0 0.0
    %1880 = vmatpush.msra.mxu0 0.0
    %1881 = vmatpush.msra.mxu0 0.0
    %1882 = vmatpush.msra.mxu0 %v1768
    %1883 = vmatmul.f32.gmra.mxu0 %v1865
    %v1884 = vpop.f32.mrf.mxu0
    %v1885 = vadd.f32 %v1781, %v1884
    %1886 = vdwg.mxu0
    %v1887 = vmax.f32 %v1885, 0.0
    %v1889 = vsel %vm270, %v1887, 0
    %1891 = vmatpush.msra.mxu0 0.0
    %1892 = vmatpush.msra.mxu0 0.0
    %1893 = vmatpush.msra.mxu0 0.0
    %1894 = vmatpush.msra.mxu0 0.0
    %1895 = vmatpush.msra.mxu0 0.0
    %1896 = vmatpush.msra.mxu0 0.0
    %1897 = vmatpush.msra.mxu0 0.0
    %1898 = vmatpush.msra.mxu0 0.0
    %1899 = vmatpush.msra.mxu0 0.0
    %1900 = vmatpush.msra.mxu0 0.0
    %1901 = vmatpush.msra.mxu0 0.0
    %1902 = vmatpush.msra.mxu0 0.0
    %1903 = vmatpush.msra.mxu0 %v1773
    %1904 = vmatpush.msra.mxu0 %v1772
    %1905 = vmatpush.msra.mxu0 %v1771
    %1906 = vmatpush.msra.mxu0 %v1770
    %1907 = vmatmul.f32.gmra.mxu0 %v1889
    %v1908 = vpop.f32.mrf.mxu0
    %v1909 = vadd.f32 %v1808, %v1908
    %1910 = vdwg.mxu0
    %v1911 = vmax.f32 %v1909, 0.0
    %s1912 = sld [smem:[#allocation5 + $0x2]]
    %v1914 = vsel %vm270, %v1911, 0
    %1916 = vmatpush.msra.mxu0 0.0
    %1917 = vmatpush.msra.mxu0 0.0
    %1918 = vmatpush.msra.mxu0 0.0
    %1919 = vmatpush.msra.mxu0 0.0
    %1920 = vmatpush.msra.mxu0 0.0
    %1921 = vmatpush.msra.mxu0 0.0
    %1922 = vmatpush.msra.mxu0 0.0
    %1923 = vmatpush.msra.mxu0 0.0
    %1924 = vmatpush.msra.mxu0 0.0
    %1925 = vmatpush.msra.mxu0 0.0
    %1926 = vmatpush.msra.mxu0 0.0
    %1927 = vmatpush.msra.mxu0 0.0
    %1928 = vmatpush.msra.mxu0 %v1778
    %1929 = vmatpush.msra.mxu0 %v1777
    %1930 = vmatpush.msra.mxu0 %v1776
    %1931 = vmatpush.msra.mxu0 %v1775
    %1932 = vmatmul.f32.gmra.mxu0 %v1914
    %v1933 = vpop.f32.mrf.mxu0
    %v1934 = vadd.f32 %v1836, %v1933
    %1935 = vdwg.mxu0
    %v1936 = vstv %s1912
    %v1937 = vmul.f32 %v1936, %v1934
    %v1938 = vadd.f32 %v1863, %v1937
    %v1940 = vsel %vm198, %v1938, 0
    %1942 = vmatpush.msra.mxu0 0.0
    %1943 = vmatpush.msra.mxu0 0.0
    %1944 = vmatpush.msra.mxu0 0.0
    %1945 = vmatpush.msra.mxu0 0.0
    %1946 = vmatpush.msra.mxu0 0.0
    %1947 = vmatpush.msra.mxu0 0.0
    %1948 = vmatpush.msra.mxu0 0.0
    %1949 = vmatpush.msra.mxu0 0.0
    %1950 = vmatpush.msra.mxu0 0.0
    %1951 = vmatpush.msra.mxu0 0.0
    %1952 = vmatpush.msra.mxu0 0.0
    %1953 = vmatpush.msra.mxu0 0.0
    %1954 = vmatpush.msra.mxu0 0.0
    %1955 = vmatpush.msra.mxu0 0.0
    %1956 = vmatpush.msra.mxu0 0.0
    %1957 = vmatpush.msra.mxu0 %v1768
    %1958 = vmatmul.f32.gmra.mxu0 %v1940
    %v1959 = vpop.f32.mrf.mxu0
    %v1960 = vadd.f32 %v1781, %v1959
    %1961 = vdwg.mxu0
    %v1962 = vmax.f32 %v1960, 0.0
    %v1964 = vsel %vm270, %v1962, 0
    %1966 = vmatpush.msra.mxu0 0.0
    %1967 = vmatpush.msra.mxu0 0.0
    %1968 = vmatpush.msra.mxu0 0.0
    %1969 = vmatpush.msra.mxu0 0.0
    %1970 = vmatpush.msra.mxu0 0.0
    %1971 = vmatpush.msra.mxu0 0.0
    %1972 = vmatpush.msra.mxu0 0.0
    %1973 = vmatpush.msra.mxu0 0.0
    %1974 = vmatpush.msra.mxu0 0.0
    %1975 = vmatpush.msra.mxu0 0.0
    %1976 = vmatpush.msra.mxu0 0.0
    %1977 = vmatpush.msra.mxu0 0.0
    %1978 = vmatpush.msra.mxu0 %v1773
    %1979 = vmatpush.msra.mxu0 %v1772
    %1980 = vmatpush.msra.mxu0 %v1771
    %1981 = vmatpush.msra.mxu0 %v1770
    %1982 = vmatmul.f32.gmra.mxu0 %v1964
    %v1983 = vpop.f32.mrf.mxu0
    %v1984 = vadd.f32 %v1808, %v1983
    %1985 = vdwg.mxu0
    %v1986 = vmax.f32 %v1984, 0.0
    %s1987 = sld [smem:[#allocation5 + $0x3]]
    %v1989 = vsel %vm270, %v1986, 0
    %1991 = vmatpush.msra.mxu0 0.0
    %1992 = vmatpush.msra.mxu0 0.0
    %1993 = vmatpush.msra.mxu0 0.0
    %1994 = vmatpush.msra.mxu0 0.0
    %1995 = vmatpush.msra.mxu0 0.0
    %1996 = vmatpush.msra.mxu0 0.0
    %1997 = vmatpush.msra.mxu0 0.0
    %1998 = vmatpush.msra.mxu0 0.0
    %1999 = vmatpush.msra.mxu0 0.0
    %2000 = vmatpush.msra.mxu0 0.0
    %2001 = vmatpush.msra.mxu0 0.0
    %2002 = vmatpush.msra.mxu0 0.0
    %2003 = vmatpush.msra.mxu0 %v1778
    %2004 = vmatpush.msra.mxu0 %v1777
    %2005 = vmatpush.msra.mxu0 %v1776
    %2006 = vmatpush.msra.mxu0 %v1775
    %2007 = vmatmul.f32.gmra.mxu0 %v1989
    %v2008 = vpop.f32.mrf.mxu0
    %v2009 = vadd.f32 %v1836, %v2008
    %2010 = vdwg.mxu0
    %v2011 = vstv %s1987
    %v2012 = vmul.f32 %v2011, %v2009
    %v2013 = vadd.f32 %v1938, %v2012
    %v2015 = vsel %vm198, %v2013, 0
    %2017 = vmatpush.msra.mxu0 0.0
    %2018 = vmatpush.msra.mxu0 0.0
    %2019 = vmatpush.msra.mxu0 0.0
    %2020 = vmatpush.msra.mxu0 0.0
    %2021 = vmatpush.msra.mxu0 0.0
    %2022 = vmatpush.msra.mxu0 0.0
    %2023 = vmatpush.msra.mxu0 0.0
    %2024 = vmatpush.msra.mxu0 0.0
    %2025 = vmatpush.msra.mxu0 0.0
    %2026 = vmatpush.msra.mxu0 0.0
    %2027 = vmatpush.msra.mxu0 0.0
    %2028 = vmatpush.msra.mxu0 0.0
    %2029 = vmatpush.msra.mxu0 0.0
    %2030 = vmatpush.msra.mxu0 0.0
    %2031 = vmatpush.msra.mxu0 0.0
    %2032 = vmatpush.msra.mxu0 %v1768
    %2033 = vmatmul.f32.gmra.mxu0 %v2015
    %v2034 = vpop.f32.mrf.mxu0
    %v2035 = vadd.f32 %v1781, %v2034
    %2036 = vdwg.mxu0
    %v2037 = vmax.f32 %v2035, 0.0
    %v2039 = vsel %vm270, %v2037, 0
    %2041 = vmatpush.msra.mxu0 0.0
    %2042 = vmatpush.msra.mxu0 0.0
    %2043 = vmatpush.msra.mxu0 0.0
    %2044 = vmatpush.msra.mxu0 0.0
    %2045 = vmatpush.msra.mxu0 0.0
    %2046 = vmatpush.msra.mxu0 0.0
    %2047 = vmatpush.msra.mxu0 0.0
    %2048 = vmatpush.msra.mxu0 0.0
    %2049 = vmatpush.msra.mxu0 0.0
    %2050 = vmatpush.msra.mxu0 0.0
    %2051 = vmatpush.msra.mxu0 0.0
    %2052 = vmatpush.msra.mxu0 0.0
    %2053 = vmatpush.msra.mxu0 %v1773
    %2054 = vmatpush.msra.mxu0 %v1772
    %2055 = vmatpush.msra.mxu0 %v1771
    %2056 = vmatpush.msra.mxu0 %v1770
    %2057 = vmatmul.f32.gmra.mxu0 %v2039
    %v2058 = vpop.f32.mrf.mxu0
    %v2059 = vadd.f32 %v1808, %v2058
    %2060 = vdwg.mxu0
    %v2061 = vmax.f32 %v2059, 0.0
    %s2062 = sld [smem:[#allocation5 + $0x4]]
    %v2064 = vsel %vm270, %v2061, 0
    %2066 = vmatpush.msra.mxu0 0.0
    %2067 = vmatpush.msra.mxu0 0.0
    %2068 = vmatpush.msra.mxu0 0.0
    %2069 = vmatpush.msra.mxu0 0.0
    %2070 = vmatpush.msra.mxu0 0.0
    %2071 = vmatpush.msra.mxu0 0.0
    %2072 = vmatpush.msra.mxu0 0.0
    %2073 = vmatpush.msra.mxu0 0.0
    %2074 = vmatpush.msra.mxu0 0.0
    %2075 = vmatpush.msra.mxu0 0.0
    %2076 = vmatpush.msra.mxu0 0.0
    %2077 = vmatpush.msra.mxu0 0.0
    %2078 = vmatpush.msra.mxu0 %v1778
    %2079 = vmatpush.msra.mxu0 %v1777
    %2080 = vmatpush.msra.mxu0 %v1776
    %2081 = vmatpush.msra.mxu0 %v1775
    %2082 = vmatmul.f32.gmra.mxu0 %v2064
    %v2083 = vpop.f32.mrf.mxu0
    %v2084 = vadd.f32 %v1836, %v2083
    %2085 = vdwg.mxu0
    %v2086 = vstv %s2062
    %v2087 = vmul.f32 %v2086, %v2084
    %v2088 = vadd.f32 %v2013, %v2087
    %v2090 = vsel %vm198, %v2088, 0
    %2092 = vmatpush.msra.mxu0 0.0
    %2093 = vmatpush.msra.mxu0 0.0
    %2094 = vmatpush.msra.mxu0 0.0
    %2095 = vmatpush.msra.mxu0 0.0
    %2096 = vmatpush.msra.mxu0 0.0
    %2097 = vmatpush.msra.mxu0 0.0
    %2098 = vmatpush.msra.mxu0 0.0
    %2099 = vmatpush.msra.mxu0 0.0
    %2100 = vmatpush.msra.mxu0 0.0
    %2101 = vmatpush.msra.mxu0 0.0
    %2102 = vmatpush.msra.mxu0 0.0
    %2103 = vmatpush.msra.mxu0 0.0
    %2104 = vmatpush.msra.mxu0 0.0
    %2105 = vmatpush.msra.mxu0 0.0
    %2106 = vmatpush.msra.mxu0 0.0
    %2107 = vmatpush.msra.mxu0 %v1768
    %2108 = vmatmul.f32.gmra.mxu0 %v2090
    %v2109 = vpop.f32.mrf.mxu0
    %v2110 = vadd.f32 %v1781, %v2109
    %2111 = vdwg.mxu0
    %v2112 = vmax.f32 %v2110, 0.0
    %v2114 = vsel %vm270, %v2112, 0
    %2116 = vmatpush.msra.mxu0 0.0
    %2117 = vmatpush.msra.mxu0 0.0
    %2118 = vmatpush.msra.mxu0 0.0
    %2119 = vmatpush.msra.mxu0 0.0
    %2120 = vmatpush.msra.mxu0 0.0
    %2121 = vmatpush.msra.mxu0 0.0
    %2122 = vmatpush.msra.mxu0 0.0
    %2123 = vmatpush.msra.mxu0 0.0
    %2124 = vmatpush.msra.mxu0 0.0
    %2125 = vmatpush.msra.mxu0 0.0
    %2126 = vmatpush.msra.mxu0 0.0
    %2127 = vmatpush.msra.mxu0 0.0
    %2128 = vmatpush.msra.mxu0 %v1773
    %2129 = vmatpush.msra.mxu0 %v1772
    %2130 = vmatpush.msra.mxu0 %v1771
    %2131 = vmatpush.msra.mxu0 %v1770
    %2132 = vmatmul.f32.gmra.mxu0 %v2114
    %v2133 = vpop.f32.mrf.mxu0
    %v2134 = vadd.f32 %v1808, %v2133
    %2135 = vdwg.mxu0
    %v2136 = vmax.f32 %v2134, 0.0
    %s2137 = sld [smem:[#allocation5 + $0x5]]
    %v2139 = vsel %vm270, %v2136, 0
    %2141 = vmatpush.msra.mxu0 0.0
    %2142 = vmatpush.msra.mxu0 0.0
    %2143 = vmatpush.msra.mxu0 0.0
    %2144 = vmatpush.msra.mxu0 0.0
    %2145 = vmatpush.msra.mxu0 0.0
    %2146 = vmatpush.msra.mxu0 0.0
    %2147 = vmatpush.msra.mxu0 0.0
    %2148 = vmatpush.msra.mxu0 0.0
    %2149 = vmatpush.msra.mxu0 0.0
    %2150 = vmatpush.msra.mxu0 0.0
    %2151 = vmatpush.msra.mxu0 0.0
    %2152 = vmatpush.msra.mxu0 0.0
    %2153 = vmatpush.msra.mxu0 %v1778
    %2154 = vmatpush.msra.mxu0 %v1777
    %2155 = vmatpush.msra.mxu0 %v1776
    %2156 = vmatpush.msra.mxu0 %v1775
    %2157 = vmatmul.f32.gmra.mxu0 %v2139
    %v2158 = vpop.f32.mrf.mxu0
    %v2159 = vadd.f32 %v1836, %v2158
    %2160 = vdwg.mxu0
    %v2161 = vstv %s2137
    %v2162 = vmul.f32 %v2161, %v2159
    %v2163 = vadd.f32 %v2088, %v2162
    %v2165 = vsel %vm198, %v2163, 0
    %2167 = vmatpush.msra.mxu0 0.0
    %2168 = vmatpush.msra.mxu0 0.0
    %2169 = vmatpush.msra.mxu0 0.0
    %2170 = vmatpush.msra.mxu0 0.0
    %2171 = vmatpush.msra.mxu0 0.0
    %2172 = vmatpush.msra.mxu0 0.0
    %2173 = vmatpush.msra.mxu0 0.0
    %2174 = vmatpush.msra.mxu0 0.0
    %2175 = vmatpush.msra.mxu0 0.0
    %2176 = vmatpush.msra.mxu0 0.0
    %2177 = vmatpush.msra.mxu0 0.0
    %2178 = vmatpush.msra.mxu0 0.0
    %2179 = vmatpush.msra.mxu0 0.0
    %2180 = vmatpush.msra.mxu0 0.0
    %2181 = vmatpush.msra.mxu0 0.0
    %2182 = vmatpush.msra.mxu0 %v1768
    %2183 = vmatmul.f32.gmra.mxu0 %v2165
    %v2184 = vpop.f32.mrf.mxu0
    %v2185 = vadd.f32 %v1781, %v2184
    %2186 = vdwg.mxu0
    %v2187 = vmax.f32 %v2185, 0.0
    %v2189 = vsel %vm270, %v2187, 0
    %2191 = vmatpush.msra.mxu0 0.0
    %2192 = vmatpush.msra.mxu0 0.0
    %2193 = vmatpush.msra.mxu0 0.0
    %2194 = vmatpush.msra.mxu0 0.0
    %2195 = vmatpush.msra.mxu0 0.0
    %2196 = vmatpush.msra.mxu0 0.0
    %2197 = vmatpush.msra.mxu0 0.0
    %2198 = vmatpush.msra.mxu0 0.0
    %2199 = vmatpush.msra.mxu0 0.0
    %2200 = vmatpush.msra.mxu0 0.0
    %2201 = vmatpush.msra.mxu0 0.0
    %2202 = vmatpush.msra.mxu0 0.0
    %2203 = vmatpush.msra.mxu0 %v1773
    %2204 = vmatpush.msra.mxu0 %v1772
    %2205 = vmatpush.msra.mxu0 %v1771
    %2206 = vmatpush.msra.mxu0 %v1770
    %2207 = vmatmul.f32.gmra.mxu0 %v2189
    %v2208 = vpop.f32.mrf.mxu0
    %v2209 = vadd.f32 %v1808, %v2208
    %2210 = vdwg.mxu0
    %v2211 = vmax.f32 %v2209, 0.0
    %s2212 = sld [smem:[#allocation5 + $0x6]]
    %v2214 = vsel %vm270, %v2211, 0
    %2216 = vmatpush.msra.mxu0 0.0
    %2217 = vmatpush.msra.mxu0 0.0
    %2218 = vmatpush.msra.mxu0 0.0
    %2219 = vmatpush.msra.mxu0 0.0
    %2220 = vmatpush.msra.mxu0 0.0
    %2221 = vmatpush.msra.mxu0 0.0
    %2222 = vmatpush.msra.mxu0 0.0
    %2223 = vmatpush.msra.mxu0 0.0
    %2224 = vmatpush.msra.mxu0 0.0
    %2225 = vmatpush.msra.mxu0 0.0
    %2226 = vmatpush.msra.mxu0 0.0
    %2227 = vmatpush.msra.mxu0 0.0
    %2228 = vmatpush.msra.mxu0 %v1778
    %2229 = vmatpush.msra.mxu0 %v1777
    %2230 = vmatpush.msra.mxu0 %v1776
    %2231 = vmatpush.msra.mxu0 %v1775
    %2232 = vmatmul.f32.gmra.mxu0 %v2214
    %v2233 = vpop.f32.mrf.mxu0
    %v2234 = vadd.f32 %v1836, %v2233
    %2235 = vdwg.mxu0
    %v2236 = vstv %s2212
    %v2237 = vmul.f32 %v2236, %v2234
    %v2238 = vadd.f32 %v2163, %v2237
    %v2240 = vsel %vm198, %v2238, 0
    %2242 = vmatpush.msra.mxu0 0.0
    %2243 = vmatpush.msra.mxu0 0.0
    %2244 = vmatpush.msra.mxu0 0.0
    %2245 = vmatpush.msra.mxu0 0.0
    %2246 = vmatpush.msra.mxu0 0.0
    %2247 = vmatpush.msra.mxu0 0.0
    %2248 = vmatpush.msra.mxu0 0.0
    %2249 = vmatpush.msra.mxu0 0.0
    %2250 = vmatpush.msra.mxu0 0.0
    %2251 = vmatpush.msra.mxu0 0.0
    %2252 = vmatpush.msra.mxu0 0.0
    %2253 = vmatpush.msra.mxu0 0.0
    %2254 = vmatpush.msra.mxu0 0.0
    %2255 = vmatpush.msra.mxu0 0.0
    %2256 = vmatpush.msra.mxu0 0.0
    %2257 = vmatpush.msra.mxu0 %v1768
    %2258 = vmatmul.f32.gmra.mxu0 %v2240
    %v2259 = vpop.f32.mrf.mxu0
    %v2260 = vadd.f32 %v1781, %v2259
    %2261 = vdwg.mxu0
    %v2262 = vmax.f32 %v2260, 0.0
    %v2264 = vsel %vm270, %v2262, 0
    %2266 = vmatpush.msra.mxu0 0.0
    %2267 = vmatpush.msra.mxu0 0.0
    %2268 = vmatpush.msra.mxu0 0.0
    %2269 = vmatpush.msra.mxu0 0.0
    %2270 = vmatpush.msra.mxu0 0.0
    %2271 = vmatpush.msra.mxu0 0.0
    %2272 = vmatpush.msra.mxu0 0.0
    %2273 = vmatpush.msra.mxu0 0.0
    %2274 = vmatpush.msra.mxu0 0.0
    %2275 = vmatpush.msra.mxu0 0.0
    %2276 = vmatpush.msra.mxu0 0.0
    %2277 = vmatpush.msra.mxu0 0.0
    %2278 = vmatpush.msra.mxu0 %v1773
    %2279 = vmatpush.msra.mxu0 %v1772
    %2280 = vmatpush.msra.mxu0 %v1771
    %2281 = vmatpush.msra.mxu0 %v1770
    %2282 = vmatmul.f32.gmra.mxu0 %v2264
    %v2283 = vpop.f32.mrf.mxu0
    %v2284 = vadd.f32 %v1808, %v2283
    %2285 = vdwg.mxu0
    %v2286 = vmax.f32 %v2284, 0.0
    %s2287 = sld [smem:[#allocation5 + $0x7]]
    %v2289 = vsel %vm270, %v2286, 0
    %2291 = vmatpush.msra.mxu0 0.0
    %2292 = vmatpush.msra.mxu0 0.0
    %2293 = vmatpush.msra.mxu0 0.0
    %2294 = vmatpush.msra.mxu0 0.0
    %2295 = vmatpush.msra.mxu0 0.0
    %2296 = vmatpush.msra.mxu0 0.0
    %2297 = vmatpush.msra.mxu0 0.0
    %2298 = vmatpush.msra.mxu0 0.0
    %2299 = vmatpush.msra.mxu0 0.0
    %2300 = vmatpush.msra.mxu0 0.0
    %2301 = vmatpush.msra.mxu0 0.0
    %2302 = vmatpush.msra.mxu0 0.0
    %2303 = vmatpush.msra.mxu0 %v1778
    %2304 = vmatpush.msra.mxu0 %v1777
    %2305 = vmatpush.msra.mxu0 %v1776
    %2306 = vmatpush.msra.mxu0 %v1775
    %2307 = vmatmul.f32.gmra.mxu0 %v2289
    %v2308 = vpop.f32.mrf.mxu0
    %v2309 = vadd.f32 %v1836, %v2308
    %2310 = vdwg.mxu0
    %v2311 = vstv %s2287
    %v2312 = vmul.f32 %v2311, %v2309
    %v2313 = vadd.f32 %v2238, %v2312
    %v2314 = vld [vmem:[%s63] sm:$0xff]
    %v2315 = vld [vmem:[%s65] sm:$0x1]
    %v2317 = vperm.slane %v2315, 0
    %v2320 = vsel %vm198, %v2313, 0
    %2322 = vmatpush.msra.mxu0 0.0
    %2323 = vmatpush.msra.mxu0 0.0
    %2324 = vmatpush.msra.mxu0 0.0
    %2325 = vmatpush.msra.mxu0 0.0
    %2326 = vmatpush.msra.mxu0 0.0
    %2327 = vmatpush.msra.mxu0 0.0
    %2328 = vmatpush.msra.mxu0 0.0
    %2329 = vmatpush.msra.mxu0 0.0
    %2330 = vmatpush.msra.mxu0 0.0
    %2331 = vmatpush.msra.mxu0 0.0
    %2332 = vmatpush.msra.mxu0 0.0
    %2333 = vmatpush.msra.mxu0 0.0
    %2334 = vmatpush.msra.mxu0 0.0
    %2335 = vmatpush.msra.mxu0 0.0
    %2336 = vmatpush.msra.mxu0 0.0
    %2337 = vmatpush.msra.mxu0 %v2314
    %2338 = vmatmul.f32.gmra.mxu0 %v1784
    %v2339 = vpop.f32.mrf.mxu0
    %v2340 = vadd.f32 %v2317, %v2339
    %2341 = vmatmul.f32.gmra.mxu0 %v1865
    %v2342 = vpop.f32.mrf.mxu0
    %v2343 = vadd.f32 %v2317, %v2342
    %2344 = vmatmul.f32.gmra.mxu0 %v1940
    %v2345 = vpop.f32.mrf.mxu0
    %v2346 = vadd.f32 %v2317, %v2345
    %2347 = vmatmul.f32.gmra.mxu0 %v2015
    %v2348 = vpop.f32.mrf.mxu0
    %v2349 = vadd.f32 %v2317, %v2348
    %2350 = vmatmul.f32.gmra.mxu0 %v2090
    %v2351 = vpop.f32.mrf.mxu0
    %v2352 = vadd.f32 %v2317, %v2351
    %2353 = vmatmul.f32.gmra.mxu0 %v2165
    %v2354 = vpop.f32.mrf.mxu0
    %v2355 = vadd.f32 %v2317, %v2354
    %2356 = vmatmul.f32.gmra.mxu0 %v2240
    %v2357 = vpop.f32.mrf.mxu0
    %v2358 = vadd.f32 %v2317, %v2357
    %2359 = vmatmul.f32.gmra.mxu0 %v2320
    %v2360 = vpop.f32.mrf.mxu0
    %v2361 = vadd.f32 %v2317, %v2360
    %2362 = vdwg.mxu0
    %2364 = vrot.lane.b32.xlu0 %v1766, 16
    %v2365 = vpop.permute.xlu0 %2364
    %v2367 = vsel %vm198, %v1647, %v1649
    %vm2368 = vcmask 130048
    %v2369 = vsel %vm2368, %v2367, %v2365
    %2378 = vrot.lane.b32.xlu0 %v2340, 8
    %v2379 = vpop.permute.xlu0 %2378
    %2380 = vrot.lane.b32.xlu0 %v2343, 8
    %v2381 = vpop.permute.xlu0 %2380
    %2382 = vrot.lane.b32.xlu0 %v2346, 8
    %v2383 = vpop.permute.xlu0 %2382
    %2384 = vrot.lane.b32.xlu0 %v2349, 8
    %v2385 = vpop.permute.xlu0 %2384
    %2386 = vrot.lane.b32.xlu0 %v2352, 8
    %v2387 = vpop.permute.xlu0 %2386
    %2388 = vrot.lane.b32.xlu0 %v2355, 8
    %v2389 = vpop.permute.xlu0 %2388
    %2390 = vrot.lane.b32.xlu0 %v2358, 8
    %v2391 = vpop.permute.xlu0 %2390
    %2392 = vrot.lane.b32.xlu0 %v2361, 8
    %v2393 = vpop.permute.xlu0 %2392
    %2404 = vrot.lane.b32.xlu0 %v2369, 12
    %v2405 = vpop.permute.xlu0 %2404
    %2406 = vrot.lane.b32.xlu0 0.0, 12
    %v2407 = vpop.permute.xlu0 %2406
    %v2410 = vsel %vm198, %v1647, %v2379
    %v2411 = vsel %vm198, %v1863, %v2381
    %v2412 = vsel %vm198, %v1938, %v2383
    %v2413 = vsel %vm198, %v2013, %v2385
    %v2414 = vsel %vm198, %v2088, %v2387
    %v2415 = vsel %vm198, %v2163, %v2389
    %v2416 = vsel %vm198, %v2238, %v2391
    %v2417 = vsel %vm198, %v2313, %v2393
    %vm2418 = vcmask 97280
    %v2419 = vsel %vm2418, %v2410, %v2405
    %v2420 = vsel %vm2418, %v2411, %v2407
    %v2421 = vsel %vm2418, %v2412, %v2407
    %v2422 = vsel %vm2418, %v2413, %v2407
    %v2423 = vsel %vm2418, %v2414, %v2407
    %v2424 = vsel %vm2418, %v2415, %v2407
    %v2425 = vsel %vm2418, %v2416, %v2407
    %v2426 = vsel %vm2418, %v2417, %v2407
    %vm2427 = vcmask 236544
    %v2428 = vsel %vm2427, %v2419, 0.0
    %v2429 = vsel %vm2427, %v2420, 0.0
    %v2430 = vsel %vm2427, %v2421, 0.0
    %v2431 = vsel %vm2427, %v2422, 0.0
    %v2432 = vsel %vm2427, %v2423, 0.0
    %v2433 = vsel %vm2427, %v2424, 0.0
    %v2434 = vsel %vm2427, %v2425, 0.0
    %v2435 = vsel %vm2427, %v2426, 0.0
    %2436 = vst [vmem:[%s79] sm:$0xff] %v2428
    %2437 = vst [vmem:[%s79 + $0x8] sm:$0xff] %v2429
    %2438 = vst [vmem:[%s79 + $0x10] sm:$0xff] %v2430
    %2439 = vst [vmem:[%s79 + $0x18] sm:$0xff] %v2431
    %2440 = vst [vmem:[%s79 + $0x20] sm:$0xff] %v2432
    %2441 = vst [vmem:[%s79 + $0x28] sm:$0xff] %v2433
    %2442 = vst [vmem:[%s79 + $0x30] sm:$0xff] %v2434
    %2443 = vst [vmem:[%s79 + $0x38] sm:$0xff] %v2435
    // Predicated region
    $region166: #{latent_ode_forward.1} parent=1 // pred_check
      _
    $region167: #{latent_ode_forward.1} parent=1 // pred_check_branch
      %2445 = sbr.rel (0) target = $region169
    $region168: #{latent_ode_forward.1} parent=1 // pred_region
      _
    $region169: #{latent_ode_forward.1} parent=1 // pred_fallthru
      _
    // Predicated region
    $region170: #{latent_ode_forward.1} parent=1 // pred_check
      _
    $region171: #{latent_ode_forward.1} parent=1 // pred_check_branch
      %2447 = sbr.rel (0) target = $region173
    $region172: #{latent_ode_forward.1} parent=1 // pred_region
      _
    $region173: #{latent_ode_forward.1} parent=1 // pred_fallthru
      _
    %2448 = vsyncpa [#allocation4], 1
    %2449 = vsyncpa [#allocation6], 1

</llo_original>
